<compile_context>
chip_gen: v6e
topology: v6e:2x2x1
jax: 0.10.0
libtpu: 0.0.40
codegen_flags: <defaults>
</compile_context>

<pallas_src>
import jax
import jax.numpy as jnp
from jax import lax
from jax.experimental import pallas as pl
from jax.experimental.pallas import tpu as pltpu

# ---------------- small config (consistent with the module's forward) -------
IMG = 16
PATCH = 4
IN_CH = 4
EMBED = 32
DEPTH = 2
HEADS = 4
MLP_DIM = 64
NUM_CLASSES = 10
BATCH = 2

NP = (IMG // PATCH) ** 2          # 16 patches
SEQ = NP + 1                      # 17 tokens (cls + patches)
HEAD_DIM = EMBED // HEADS         # 8
SCALE = EMBED ** (-0.5)           # module scales by embed_dim**-0.5 (not head_dim)
EPS = 1e-5
NEG_INF = -1e30                   # additive mask value for cross-image attention


# ---------------- in-kernel math helpers ------------------------------------
def _layer_norm(x, w, b):
    mu = jnp.mean(x, axis=-1, keepdims=True)
    var = jnp.mean((x - mu) ** 2, axis=-1, keepdims=True)
    return (x - mu) * lax.rsqrt(var + EPS) * w + b


def _gelu(x):
    # tanh-approximate GELU: one EUP tanh instead of a ~10-op VALU erf polynomial.
    c = 0.7978845608028654  # sqrt(2/pi)
    return 0.5 * x * (1.0 + jnp.tanh(c * (x + 0.044715 * x * x * x)))


def _softmax_lanes(s):
    # numerically-stable softmax over the last axis; divide moved to the EUP.
    s = s - jnp.max(s, axis=-1, keepdims=True)
    p = jnp.exp(s)
    return p * pl.reciprocal(jnp.sum(p, axis=-1, keepdims=True), approx=True)


# ---------------- single fused Pallas kernel ---------------------------------
def _vit_kernel(patches_ref, convw_ref, ebias_ref, mask_ref,
                ln1w_ref, ln1b_ref, wqkv_ref, wproj_ref, bproj_ref,
                ln2w_ref, ln2b_ref, w1_ref, b1_ref, w2_ref, b2_ref,
                lnfw_ref, lnfb_ref, fcw_ref, fcb_ref, o_ref):
    """Whole ViT forward on one VMEM-resident (B*SEQ, D) activation."""
    n_batch = o_ref.shape[0]

    # ---- patch embedding (+ cls token & positional embedding, which were
    #      pre-combined into an additive per-token bias on the host) ----------
    x = (jnp.dot(patches_ref[...], convw_ref[...],
                 preferred_element_type=jnp.float32) + ebias_ref[...])   # (B*SEQ, D)
    mask = mask_ref[...]      # (B*SEQ, B*SEQ): 0 within an image, -1e30 across
    # pos_drop: identity (inference)

    # ---- transformer encoder layers (statically unrolled, weights resident) -
    for l in range(DEPTH):
        # -- attention block: x + proj(attn(LN1(x))) --
        h = _layer_norm(x, ln1w_ref[l], ln1b_ref[l])
        qkv = jnp.dot(h, wqkv_ref[l], preferred_element_type=jnp.float32)  # (BN, 3D)
        q = qkv[:, 0:EMBED]          # softmax scale already folded into these columns
        k = qkv[:, EMBED:2 * EMBED]
        v = qkv[:, 2 * EMBED:3 * EMBED]

        # head-leading layout (H, B*SEQ, HEAD_DIM); batch stays folded in rows.
        qh = jnp.stack([q[:, i * HEAD_DIM:(i + 1) * HEAD_DIM] for i in range(HEADS)], 0)
        kh = jnp.stack([k[:, i * HEAD_DIM:(i + 1) * HEAD_DIM] for i in range(HEADS)], 0)
        vh = jnp.stack([v[:, i * HEAD_DIM:(i + 1) * HEAD_DIM] for i in range(HEADS)], 0)

        s = jnp.einsum("hnd,hmd->hnm", qh, kh,
                       preferred_element_type=jnp.float32) + mask[None]
        p = _softmax_lanes(s)        # attention_dropout: identity (inference)
        o = jnp.einsum("hnm,hmd->hnd", p, vh,
                       preferred_element_type=jnp.float32)               # (H, BN, Dh)

        # head-merge folded into the output projection:
        #   concat_h(o_h) @ Wp == sum_h o_h @ Wp[h*Dh:(h+1)*Dh, :]
        wp = wproj_ref[l]
        attn = jnp.dot(o[0], wp[0:HEAD_DIM, :], preferred_element_type=jnp.float32)
        for i in range(1, HEADS):
            attn = attn + jnp.dot(o[i], wp[i * HEAD_DIM:(i + 1) * HEAD_DIM, :],
                                  preferred_element_type=jnp.float32)
        x = x + attn + bproj_ref[l]

        # -- MLP block: x + fc2(gelu(fc1(LN2(x)))) --
        h2 = _layer_norm(x, ln2w_ref[l], ln2b_ref[l])
        h2 = jnp.dot(h2, w1_ref[l], preferred_element_type=jnp.float32) + b1_ref[l]
        h2 = _gelu(h2)
        h2 = jnp.dot(h2, w2_ref[l], preferred_element_type=jnp.float32) + b2_ref[l]
        x = x + h2                   # mlp dropout: identity (inference)

    # ---- classification head: final LN + fc on the cls rows only -----------
    cls = jnp.concatenate([x[b * SEQ:b * SEQ + 1, :] for b in range(n_batch)], axis=0)
    hc = _layer_norm(cls, lnfw_ref[...], lnfb_ref[...])
    o_ref[...] = (jnp.dot(hc, fcw_ref[...], preferred_element_type=jnp.float32)
                  + fcb_ref[...]).astype(o_ref.dtype)


# ---------------- host-side (one-time) parameter prep ------------------------
def prepare_params(params):
    """Layout prep + scale folding; done once, offline w.r.t. the forward."""
    L = params["layers"]
    stack = lambda key: jnp.stack([lp[key] for lp in L], axis=0)

    wqkv = stack("wqkv_t")                              # (DEPTH, D, 3D)
    wqkv = wqkv.at[:, :, 0:EMBED].multiply(SCALE)       # fold softmax scale into q cols

    # combined per-token additive bias for the embedding matmul:
    #   row 0 (cls slot, zero "patch"): cls_token + pos[0]
    #   row i>=1 (patch i)            : conv bias + pos[i]
    pos = params["pos_embed"][0]                        # (SEQ, D)
    add = jnp.concatenate(
        [params["cls_token"].reshape(1, EMBED),
         jnp.broadcast_to(params["conv_b"].reshape(1, EMBED), (NP, EMBED))], axis=0)

    return dict(
        conv_w_t=params["conv_w"].reshape(EMBED, IN_CH * PATCH * PATCH).T,
        embed_bias=pos + add,                           # (SEQ, D)
        ln1_w=stack("ln1_w"), ln1_b=stack("ln1_b"),
        wqkv_t=wqkv, wproj_t=stack("wproj_t"), bproj=stack("bproj"),
        ln2_w=stack("ln2_w"), ln2_b=stack("ln2_b"),
        w1_t=stack("w1_t"), b1=stack("b1"), w2_t=stack("w2_t"), b2=stack("b2"),
        ln_f_w=params["ln_f_w"], ln_f_b=params["ln_f_b"],
        fc_w_t=params["fc_w_t"], fc_b=params["fc_b"],
    )


# ---------------- forward wrapper (single pallas_call) -----------------------
def vit_forward(x_nchw, prepped):
    B, C, H, W = x_nchw.shape
    p = PATCH
    # Patch extraction glue: Conv2d(kernel=stride=patch) == patchify + matmul.
    # Patch order is row-major over (H/p, W/p); within-patch order is (c, u, v),
    # matching the flattened conv weight (E, C, p, p) -> (E, C*p*p).
    patches = x_nchw.reshape(B, C, H // p, p, W // p, p).transpose(0, 2, 4, 1, 3, 5)
    patches = patches.reshape(B, NP, C * p * p)
    # prepend a zero "patch" per image for the cls slot -> token rows (B*SEQ, Cpp)
    patches = jnp.concatenate(
        [jnp.zeros((B, 1, C * p * p), jnp.float32), patches], axis=1
    ).reshape(B * SEQ, C * p * p)

    ebias = jnp.tile(prepped["embed_bias"], (B, 1))                   # (B*SEQ, D)

    # block-diagonal attention mask: 0 within an image, -1e30 across images
    img = jnp.arange(B * SEQ, dtype=jnp.int32) // SEQ
    mask = jnp.where(img[:, None] == img[None, :], 0.0, NEG_INF).astype(jnp.float32)

    args = (patches, prepped["conv_w_t"], ebias, mask,
            prepped["ln1_w"], prepped["ln1_b"], prepped["wqkv_t"],
            prepped["wproj_t"], prepped["bproj"],
            prepped["ln2_w"], prepped["ln2_b"], prepped["w1_t"], prepped["b1"],
            prepped["w2_t"], prepped["b2"],
            prepped["ln_f_w"], prepped["ln_f_b"], prepped["fc_w_t"], prepped["fc_b"])

    vmem_spec = pl.BlockSpec(memory_space=pltpu.MemorySpace.VMEM)
    return pl.pallas_call(
        _vit_kernel,
        out_shape=jax.ShapeDtypeStruct((B, NUM_CLASSES), jnp.float32),
        in_specs=[vmem_spec] * len(args),
        out_specs=vmem_spec,
    )(*args)


# ---------------- deterministic parameter init -------------------------------
def init_params(key):
    keys = iter(jax.random.split(key, 32))

    def nrm(shape, std=0.02):
        return std * jax.random.normal(next(keys), shape, jnp.float32)

    params = {
        "conv_w": nrm((EMBED, IN_CH, PATCH, PATCH)),
        "conv_b": nrm((EMBED,)),
        "cls_token": nrm((1, 1, EMBED)),
        "pos_embed": nrm((1, SEQ, EMBED)),
        "ln_f_w": jnp.ones((1, EMBED), jnp.float32),
        "ln_f_b": jnp.zeros((1, EMBED), jnp.float32),
        "fc_w_t": nrm((NUM_CLASSES, EMBED)).T,
        "fc_b": nrm((1, NUM_CLASSES)),
    }
    layers = []
    for _ in range(DEPTH):
        layers.append(dict(
            ln1_w=jnp.ones((1, EMBED), jnp.float32),
            ln1_b=jnp.zeros((1, EMBED), jnp.float32),
            # PyTorch Linear stores (out, in); kernels consume (in, out).
            wqkv_t=nrm((3 * EMBED, EMBED)).T,     # qkv Linear has bias=False
            wproj_t=nrm((EMBED, EMBED)).T,
            bproj=nrm((1, EMBED)),
            ln2_w=jnp.ones((1, EMBED), jnp.float32),
            ln2_b=jnp.zeros((1, EMBED), jnp.float32),
            w1_t=nrm((MLP_DIM, EMBED)).T,
            b1=nrm((1, MLP_DIM)),
            w2_t=nrm((EMBED, MLP_DIM)).T,
            b2=nrm((1, EMBED)),
        ))
    params["layers"] = layers
    return params


if __name__ == "__main__":
    key = jax.random.PRNGKey(0)
    pkey, xkey = jax.random.split(key)
    params = init_params(pkey)
    prepped = prepare_params(params)          # one-time host-side prep
    x = jax.random.normal(xkey, (BATCH, IN_CH, IMG, IMG), jnp.float32)

    fwd = jax.jit(vit_forward)
    out = jax.block_until_ready(fwd(x, prepped))
    assert out.shape == (BATCH, NUM_CLASSES), out.shape
    assert bool(jnp.all(jnp.isfinite(out)))
    print("KERNEL_OK")
</pallas_src>

<mosaic_0001>
module attributes {stable_mosaic.version = 11 : i64} {
  func.func @_vit_kernel(%arg0: memref<34x64xf32, #tpu.memory_space<vmem>>, %arg1: memref<64x32xf32, #tpu.memory_space<vmem>>, %arg2: memref<34x32xf32, #tpu.memory_space<vmem>>, %arg3: memref<34x34xf32, #tpu.memory_space<vmem>>, %arg4: memref<2x1x32xf32, #tpu.memory_space<vmem>>, %arg5: memref<2x1x32xf32, #tpu.memory_space<vmem>>, %arg6: memref<2x32x96xf32, #tpu.memory_space<vmem>>, %arg7: memref<2x32x32xf32, #tpu.memory_space<vmem>>, %arg8: memref<2x1x32xf32, #tpu.memory_space<vmem>>, %arg9: memref<2x1x32xf32, #tpu.memory_space<vmem>>, %arg10: memref<2x1x32xf32, #tpu.memory_space<vmem>>, %arg11: memref<2x32x64xf32, #tpu.memory_space<vmem>>, %arg12: memref<2x1x64xf32, #tpu.memory_space<vmem>>, %arg13: memref<2x64x32xf32, #tpu.memory_space<vmem>>, %arg14: memref<2x1x32xf32, #tpu.memory_space<vmem>>, %arg15: memref<1x32xf32, #tpu.memory_space<vmem>>, %arg16: memref<1x32xf32, #tpu.memory_space<vmem>>, %arg17: memref<32x10xf32, #tpu.memory_space<vmem>>, %arg18: memref<1x10xf32, #tpu.memory_space<vmem>>, %arg19: memref<2x10xf32, #tpu.memory_space<vmem>>) attributes {dimension_semantics = [], scalar_prefetch = 0 : i64, scratch_operands = 0 : i64, tpu.core_type = #tpu.core_type<tc>} {
    %c0 = arith.constant 0 : index
    %c0_0 = arith.constant 0 : index
    %0 = vector.load %arg0[%c0, %c0_0] : memref<34x64xf32, #tpu.memory_space<vmem>>, vector<34x64xf32>
    %c0_1 = arith.constant 0 : index
    %c0_2 = arith.constant 0 : index
    %1 = vector.load %arg1[%c0_1, %c0_2] : memref<64x32xf32, #tpu.memory_space<vmem>>, vector<64x32xf32>
    %cst = arith.constant dense<0.000000e+00> : vector<34x32xf32>
    %2 = tpu.matmul %0, %1, %cst {dimension_numbers = #tpu.dot_dimension_numbers<[1], [0], [0], [1], [0, 0, 1, 1], [], []>} : vector<34x64xf32>, vector<64x32xf32>, vector<34x32xf32> -> vector<34x32xf32>
    %c0_3 = arith.constant 0 : index
    %c0_4 = arith.constant 0 : index
    %3 = vector.load %arg2[%c0_3, %c0_4] : memref<34x32xf32, #tpu.memory_space<vmem>>, vector<34x32xf32>
    %4 = arith.addf %2, %3 : vector<34x32xf32>
    %c0_5 = arith.constant 0 : index
    %c0_6 = arith.constant 0 : index
    %5 = vector.load %arg3[%c0_5, %c0_6] : memref<34x34xf32, #tpu.memory_space<vmem>>, vector<34x34xf32>
    %c0_7 = arith.constant 0 : index
    %c0_8 = arith.constant 0 : index
    %c0_9 = arith.constant 0 : index
    %6 = vector.load %arg4[%c0_7, %c0_8, %c0_9] : memref<2x1x32xf32, #tpu.memory_space<vmem>>, vector<1x1x32xf32>
    %7 = vector.shape_cast %6 : vector<1x1x32xf32> to vector<1x32xf32>
    %c0_10 = arith.constant 0 : index
    %c0_11 = arith.constant 0 : index
    %c0_12 = arith.constant 0 : index
    %8 = vector.load %arg5[%c0_10, %c0_11, %c0_12] : memref<2x1x32xf32, #tpu.memory_space<vmem>>, vector<1x1x32xf32>
    %9 = vector.shape_cast %8 : vector<1x1x32xf32> to vector<1x32xf32>
    %cst_13 = arith.constant dense<0.000000e+00> : vector<34xf32>
    %10 = vector.multi_reduction <add>, %4, %cst_13 [1] : vector<34x32xf32> to vector<34xf32>
    %11 = vector.shape_cast %10 : vector<34xf32> to vector<34x1xf32>
    %cst_14 = arith.constant 3.200000e+01 : f32
    %12 = vector.broadcast %cst_14 : f32 to vector<34x1xf32>
    %13 = arith.divf %11, %12 : vector<34x1xf32>
    %14 = vector.broadcast %13 : vector<34x1xf32> to vector<34x32xf32>
    %15 = arith.subf %4, %14 : vector<34x32xf32>
    %16 = arith.mulf %15, %15 : vector<34x32xf32>
    %cst_15 = arith.constant dense<0.000000e+00> : vector<34xf32>
    %17 = vector.multi_reduction <add>, %16, %cst_15 [1] : vector<34x32xf32> to vector<34xf32>
    %18 = vector.shape_cast %17 : vector<34xf32> to vector<34x1xf32>
    %cst_16 = arith.constant 3.200000e+01 : f32
    %19 = vector.broadcast %cst_16 : f32 to vector<34x1xf32>
    %20 = arith.divf %18, %19 : vector<34x1xf32>
    %21 = vector.broadcast %13 : vector<34x1xf32> to vector<34x32xf32>
    %22 = arith.subf %4, %21 : vector<34x32xf32>
    %cst_17 = arith.constant 9.99999974E-6 : f32
    %23 = vector.broadcast %cst_17 : f32 to vector<34x1xf32>
    %24 = arith.addf %20, %23 : vector<34x1xf32>
    %25 = math.rsqrt %24 : vector<34x1xf32>
    %26 = vector.broadcast %25 : vector<34x1xf32> to vector<34x32xf32>
    %27 = arith.mulf %22, %26 : vector<34x32xf32>
    %28 = vector.broadcast %7 : vector<1x32xf32> to vector<34x32xf32>
    %29 = arith.mulf %27, %28 : vector<34x32xf32>
    %30 = vector.broadcast %9 : vector<1x32xf32> to vector<34x32xf32>
    %31 = arith.addf %29, %30 : vector<34x32xf32>
    %c0_18 = arith.constant 0 : index
    %c0_19 = arith.constant 0 : index
    %c0_20 = arith.constant 0 : index
    %32 = vector.load %arg6[%c0_18, %c0_19, %c0_20] : memref<2x32x96xf32, #tpu.memory_space<vmem>>, vector<1x32x96xf32>
    %33 = vector.shape_cast %32 : vector<1x32x96xf32> to vector<32x96xf32>
    %cst_21 = arith.constant dense<0.000000e+00> : vector<34x96xf32>
    %34 = tpu.matmul %31, %33, %cst_21 {dimension_numbers = #tpu.dot_dimension_numbers<[1], [0], [0], [1], [0, 0, 1, 1], [], []>} : vector<34x32xf32>, vector<32x96xf32>, vector<34x96xf32> -> vector<34x96xf32>
    %35 = vector.extract_strided_slice %34 {offsets = [0, 0], sizes = [34, 32], strides = [1, 1]} : vector<34x96xf32> to vector<34x32xf32>
    %36 = vector.extract_strided_slice %34 {offsets = [0, 32], sizes = [34, 32], strides = [1, 1]} : vector<34x96xf32> to vector<34x32xf32>
    %37 = vector.extract_strided_slice %34 {offsets = [0, 64], sizes = [34, 32], strides = [1, 1]} : vector<34x96xf32> to vector<34x32xf32>
    %38 = vector.extract_strided_slice %35 {offsets = [0, 0], sizes = [34, 8], strides = [1, 1]} : vector<34x32xf32> to vector<34x8xf32>
    %39 = vector.extract_strided_slice %35 {offsets = [0, 8], sizes = [34, 8], strides = [1, 1]} : vector<34x32xf32> to vector<34x8xf32>
    %40 = vector.extract_strided_slice %35 {offsets = [0, 16], sizes = [34, 8], strides = [1, 1]} : vector<34x32xf32> to vector<34x8xf32>
    %41 = vector.extract_strided_slice %35 {offsets = [0, 24], sizes = [34, 8], strides = [1, 1]} : vector<34x32xf32> to vector<34x8xf32>
    %42 = vector.shape_cast %38 : vector<34x8xf32> to vector<1x34x8xf32>
    %43 = vector.shape_cast %39 : vector<34x8xf32> to vector<1x34x8xf32>
    %44 = vector.shape_cast %40 : vector<34x8xf32> to vector<1x34x8xf32>
    %45 = vector.shape_cast %41 : vector<34x8xf32> to vector<1x34x8xf32>
    %46 = tpu.concatenate %42, %43, %44, %45 in 0 : vector<1x34x8xf32>, vector<1x34x8xf32>, vector<1x34x8xf32>, vector<1x34x8xf32> -> vector<4x34x8xf32>
    %47 = vector.extract_strided_slice %36 {offsets = [0, 0], sizes = [34, 8], strides = [1, 1]} : vector<34x32xf32> to vector<34x8xf32>
    %48 = vector.extract_strided_slice %36 {offsets = [0, 8], sizes = [34, 8], strides = [1, 1]} : vector<34x32xf32> to vector<34x8xf32>
    %49 = vector.extract_strided_slice %36 {offsets = [0, 16], sizes = [34, 8], strides = [1, 1]} : vector<34x32xf32> to vector<34x8xf32>
    %50 = vector.extract_strided_slice %36 {offsets = [0, 24], sizes = [34, 8], strides = [1, 1]} : vector<34x32xf32> to vector<34x8xf32>
    %51 = vector.shape_cast %47 : vector<34x8xf32> to vector<1x34x8xf32>
    %52 = vector.shape_cast %48 : vector<34x8xf32> to vector<1x34x8xf32>
    %53 = vector.shape_cast %49 : vector<34x8xf32> to vector<1x34x8xf32>
    %54 = vector.shape_cast %50 : vector<34x8xf32> to vector<1x34x8xf32>
    %55 = tpu.concatenate %51, %52, %53, %54 in 0 : vector<1x34x8xf32>, vector<1x34x8xf32>, vector<1x34x8xf32>, vector<1x34x8xf32> -> vector<4x34x8xf32>
    %56 = vector.extract_strided_slice %37 {offsets = [0, 0], sizes = [34, 8], strides = [1, 1]} : vector<34x32xf32> to vector<34x8xf32>
    %57 = vector.extract_strided_slice %37 {offsets = [0, 8], sizes = [34, 8], strides = [1, 1]} : vector<34x32xf32> to vector<34x8xf32>
    %58 = vector.extract_strided_slice %37 {offsets = [0, 16], sizes = [34, 8], strides = [1, 1]} : vector<34x32xf32> to vector<34x8xf32>
    %59 = vector.extract_strided_slice %37 {offsets = [0, 24], sizes = [34, 8], strides = [1, 1]} : vector<34x32xf32> to vector<34x8xf32>
    %60 = vector.shape_cast %56 : vector<34x8xf32> to vector<1x34x8xf32>
    %61 = vector.shape_cast %57 : vector<34x8xf32> to vector<1x34x8xf32>
    %62 = vector.shape_cast %58 : vector<34x8xf32> to vector<1x34x8xf32>
    %63 = vector.shape_cast %59 : vector<34x8xf32> to vector<1x34x8xf32>
    %64 = tpu.concatenate %60, %61, %62, %63 in 0 : vector<1x34x8xf32>, vector<1x34x8xf32>, vector<1x34x8xf32>, vector<1x34x8xf32> -> vector<4x34x8xf32>
    "tpu.trace_start"() <{level = 10 : i32, message = "hnd,hmd->hnm"}> : () -> ()
    %cst_22 = arith.constant dense<0.000000e+00> : vector<4x34x34xf32>
    %65 = tpu.matmul %46, %55, %cst_22 {dimension_numbers = #tpu.dot_dimension_numbers<[2], [2], [1], [1], [0, 0, 0, 1, 1, 1], [0], [0]>} : vector<4x34x8xf32>, vector<4x34x8xf32>, vector<4x34x34xf32> -> vector<4x34x34xf32>
    "tpu.trace_stop"() : () -> ()
    %66 = vector.shape_cast %5 : vector<34x34xf32> to vector<1x34x34xf32>
    %67 = vector.broadcast %66 : vector<1x34x34xf32> to vector<4x34x34xf32>
    %68 = arith.addf %65, %67 : vector<4x34x34xf32>
    %cst_23 = arith.constant dense<0xFF800000> : vector<4x34xf32>
    %69 = vector.multi_reduction <maximumf>, %68, %cst_23 [2] : vector<4x34x34xf32> to vector<4x34xf32>
    %70 = vector.shape_cast %69 : vector<4x34xf32> to vector<4x34x1xf32>
    %71 = vector.broadcast %70 : vector<4x34x1xf32> to vector<4x34x34xf32>
    %72 = arith.subf %68, %71 : vector<4x34x34xf32>
    %73 = math.exp %72 : vector<4x34x34xf32>
    %cst_24 = arith.constant dense<0.000000e+00> : vector<4x34xf32>
    %74 = vector.multi_reduction <add>, %73, %cst_24 [2] : vector<4x34x34xf32> to vector<4x34xf32>
    %75 = vector.shape_cast %74 : vector<4x34xf32> to vector<4x34x1xf32>
    %76 = tpu.reciprocal %75 {approx = true} : vector<4x34x1xf32> -> vector<4x34x1xf32>
    %77 = vector.broadcast %76 : vector<4x34x1xf32> to vector<4x34x34xf32>
    %78 = arith.mulf %73, %77 : vector<4x34x34xf32>
    "tpu.trace_start"() <{level = 10 : i32, message = "hnm,hmd->hnd"}> : () -> ()
    %cst_25 = arith.constant dense<0.000000e+00> : vector<4x34x8xf32>
    %79 = tpu.matmul %78, %64, %cst_25 {dimension_numbers = #tpu.dot_dimension_numbers<[2], [1], [1], [2], [0, 0, 0, 1, 1, 2], [0], [0]>} : vector<4x34x34xf32>, vector<4x34x8xf32>, vector<4x34x8xf32> -> vector<4x34x8xf32>
    "tpu.trace_stop"() : () -> ()
    %c0_26 = arith.constant 0 : index
    %c0_27 = arith.constant 0 : index
    %c0_28 = arith.constant 0 : index
    %80 = vector.load %arg7[%c0_26, %c0_27, %c0_28] : memref<2x32x32xf32, #tpu.memory_space<vmem>>, vector<1x32x32xf32>
    %81 = vector.shape_cast %80 : vector<1x32x32xf32> to vector<32x32xf32>
    %82 = vector.extract_strided_slice %79 {offsets = [0, 0, 0], sizes = [1, 34, 8], strides = [1, 1, 1]} : vector<4x34x8xf32> to vector<1x34x8xf32>
    %83 = vector.shape_cast %82 : vector<1x34x8xf32> to vector<34x8xf32>
    %84 = vector.extract_strided_slice %81 {offsets = [0, 0], sizes = [8, 32], strides = [1, 1]} : vector<32x32xf32> to vector<8x32xf32>
    %cst_29 = arith.constant dense<0.000000e+00> : vector<34x32xf32>
    %85 = tpu.matmul %83, %84, %cst_29 {dimension_numbers = #tpu.dot_dimension_numbers<[1], [0], [0], [1], [0, 0, 1, 1], [], []>} : vector<34x8xf32>, vector<8x32xf32>, vector<34x32xf32> -> vector<34x32xf32>
    %86 = vector.extract_strided_slice %79 {offsets = [1, 0, 0], sizes = [1, 34, 8], strides = [1, 1, 1]} : vector<4x34x8xf32> to vector<1x34x8xf32>
    %87 = vector.shape_cast %86 : vector<1x34x8xf32> to vector<34x8xf32>
    %88 = vector.extract_strided_slice %81 {offsets = [8, 0], sizes = [8, 32], strides = [1, 1]} : vector<32x32xf32> to vector<8x32xf32>
    %cst_30 = arith.constant dense<0.000000e+00> : vector<34x32xf32>
    %89 = tpu.matmul %87, %88, %cst_30 {dimension_numbers = #tpu.dot_dimension_numbers<[1], [0], [0], [1], [0, 0, 1, 1], [], []>} : vector<34x8xf32>, vector<8x32xf32>, vector<34x32xf32> -> vector<34x32xf32>
    %90 = arith.addf %85, %89 : vector<34x32xf32>
    %91 = vector.extract_strided_slice %79 {offsets = [2, 0, 0], sizes = [1, 34, 8], strides = [1, 1, 1]} : vector<4x34x8xf32> to vector<1x34x8xf32>
    %92 = vector.shape_cast %91 : vector<1x34x8xf32> to vector<34x8xf32>
    %93 = vector.extract_strided_slice %81 {offsets = [16, 0], sizes = [8, 32], strides = [1, 1]} : vector<32x32xf32> to vector<8x32xf32>
    %cst_31 = arith.constant dense<0.000000e+00> : vector<34x32xf32>
    %94 = tpu.matmul %92, %93, %cst_31 {dimension_numbers = #tpu.dot_dimension_numbers<[1], [0], [0], [1], [0, 0, 1, 1], [], []>} : vector<34x8xf32>, vector<8x32xf32>, vector<34x32xf32> -> vector<34x32xf32>
    %95 = arith.addf %90, %94 : vector<34x32xf32>
    %96 = vector.extract_strided_slice %79 {offsets = [3, 0, 0], sizes = [1, 34, 8], strides = [1, 1, 1]} : vector<4x34x8xf32> to vector<1x34x8xf32>
    %97 = vector.shape_cast %96 : vector<1x34x8xf32> to vector<34x8xf32>
    %98 = vector.extract_strided_slice %81 {offsets = [24, 0], sizes = [8, 32], strides = [1, 1]} : vector<32x32xf32> to vector<8x32xf32>
    %cst_32 = arith.constant dense<0.000000e+00> : vector<34x32xf32>
    %99 = tpu.matmul %97, %98, %cst_32 {dimension_numbers = #tpu.dot_dimension_numbers<[1], [0], [0], [1], [0, 0, 1, 1], [], []>} : vector<34x8xf32>, vector<8x32xf32>, vector<34x32xf32> -> vector<34x32xf32>
    %100 = arith.addf %95, %99 : vector<34x32xf32>
    %101 = arith.addf %4, %100 : vector<34x32xf32>
    %c0_33 = arith.constant 0 : index
    %c0_34 = arith.constant 0 : index
    %c0_35 = arith.constant 0 : index
    %102 = vector.load %arg8[%c0_33, %c0_34, %c0_35] : memref<2x1x32xf32, #tpu.memory_space<vmem>>, vector<1x1x32xf32>
    %103 = vector.shape_cast %102 : vector<1x1x32xf32> to vector<1x32xf32>
    %104 = vector.broadcast %103 : vector<1x32xf32> to vector<34x32xf32>
    %105 = arith.addf %101, %104 : vector<34x32xf32>
    %c0_36 = arith.constant 0 : index
    %c0_37 = arith.constant 0 : index
    %c0_38 = arith.constant 0 : index
    %106 = vector.load %arg9[%c0_36, %c0_37, %c0_38] : memref<2x1x32xf32, #tpu.memory_space<vmem>>, vector<1x1x32xf32>
    %107 = vector.shape_cast %106 : vector<1x1x32xf32> to vector<1x32xf32>
    %c0_39 = arith.constant 0 : index
    %c0_40 = arith.constant 0 : index
    %c0_41 = arith.constant 0 : index
    %108 = vector.load %arg10[%c0_39, %c0_40, %c0_41] : memref<2x1x32xf32, #tpu.memory_space<vmem>>, vector<1x1x32xf32>
    %109 = vector.shape_cast %108 : vector<1x1x32xf32> to vector<1x32xf32>
    %cst_42 = arith.constant dense<0.000000e+00> : vector<34xf32>
    %110 = vector.multi_reduction <add>, %105, %cst_42 [1] : vector<34x32xf32> to vector<34xf32>
    %111 = vector.shape_cast %110 : vector<34xf32> to vector<34x1xf32>
    %cst_43 = arith.constant 3.200000e+01 : f32
    %112 = vector.broadcast %cst_43 : f32 to vector<34x1xf32>
    %113 = arith.divf %111, %112 : vector<34x1xf32>
    %114 = vector.broadcast %113 : vector<34x1xf32> to vector<34x32xf32>
    %115 = arith.subf %105, %114 : vector<34x32xf32>
    %116 = arith.mulf %115, %115 : vector<34x32xf32>
    %cst_44 = arith.constant dense<0.000000e+00> : vector<34xf32>
    %117 = vector.multi_reduction <add>, %116, %cst_44 [1] : vector<34x32xf32> to vector<34xf32>
    %118 = vector.shape_cast %117 : vector<34xf32> to vector<34x1xf32>
    %cst_45 = arith.constant 3.200000e+01 : f32
    %119 = vector.broadcast %cst_45 : f32 to vector<34x1xf32>
    %120 = arith.divf %118, %119 : vector<34x1xf32>
    %121 = vector.broadcast %113 : vector<34x1xf32> to vector<34x32xf32>
    %122 = arith.subf %105, %121 : vector<34x32xf32>
    %cst_46 = arith.constant 9.99999974E-6 : f32
    %123 = vector.broadcast %cst_46 : f32 to vector<34x1xf32>
    %124 = arith.addf %120, %123 : vector<34x1xf32>
    %125 = math.rsqrt %124 : vector<34x1xf32>
    %126 = vector.broadcast %125 : vector<34x1xf32> to vector<34x32xf32>
    %127 = arith.mulf %122, %126 : vector<34x32xf32>
    %128 = vector.broadcast %107 : vector<1x32xf32> to vector<34x32xf32>
    %129 = arith.mulf %127, %128 : vector<34x32xf32>
    %130 = vector.broadcast %109 : vector<1x32xf32> to vector<34x32xf32>
    %131 = arith.addf %129, %130 : vector<34x32xf32>
    %c0_47 = arith.constant 0 : index
    %c0_48 = arith.constant 0 : index
    %c0_49 = arith.constant 0 : index
    %132 = vector.load %arg11[%c0_47, %c0_48, %c0_49] : memref<2x32x64xf32, #tpu.memory_space<vmem>>, vector<1x32x64xf32>
    %133 = vector.shape_cast %132 : vector<1x32x64xf32> to vector<32x64xf32>
    %cst_50 = arith.constant dense<0.000000e+00> : vector<34x64xf32>
    %134 = tpu.matmul %131, %133, %cst_50 {dimension_numbers = #tpu.dot_dimension_numbers<[1], [0], [0], [1], [0, 0, 1, 1], [], []>} : vector<34x32xf32>, vector<32x64xf32>, vector<34x64xf32> -> vector<34x64xf32>
    %c0_51 = arith.constant 0 : index
    %c0_52 = arith.constant 0 : index
    %c0_53 = arith.constant 0 : index
    %135 = vector.load %arg12[%c0_51, %c0_52, %c0_53] : memref<2x1x64xf32, #tpu.memory_space<vmem>>, vector<1x1x64xf32>
    %136 = vector.shape_cast %135 : vector<1x1x64xf32> to vector<1x64xf32>
    %137 = vector.broadcast %136 : vector<1x64xf32> to vector<34x64xf32>
    %138 = arith.addf %134, %137 : vector<34x64xf32>
    %cst_54 = arith.constant 5.000000e-01 : f32
    %139 = vector.broadcast %cst_54 : f32 to vector<34x64xf32>
    %140 = arith.mulf %139, %138 : vector<34x64xf32>
    %cst_55 = arith.constant 4.471500e-02 : f32
    %141 = vector.broadcast %cst_55 : f32 to vector<34x64xf32>
    %142 = arith.mulf %141, %138 : vector<34x64xf32>
    %143 = arith.mulf %142, %138 : vector<34x64xf32>
    %144 = arith.mulf %143, %138 : vector<34x64xf32>
    %145 = arith.addf %138, %144 : vector<34x64xf32>
    %cst_56 = arith.constant 0.797884583 : f32
    %146 = vector.broadcast %cst_56 : f32 to vector<34x64xf32>
    %147 = arith.mulf %146, %145 : vector<34x64xf32>
    %148 = math.tanh %147 : vector<34x64xf32>
    %cst_57 = arith.constant 1.000000e+00 : f32
    %149 = vector.broadcast %cst_57 : f32 to vector<34x64xf32>
    %150 = arith.addf %149, %148 : vector<34x64xf32>
    %151 = arith.mulf %140, %150 : vector<34x64xf32>
    %c0_58 = arith.constant 0 : index
    %c0_59 = arith.constant 0 : index
    %c0_60 = arith.constant 0 : index
    %152 = vector.load %arg13[%c0_58, %c0_59, %c0_60] : memref<2x64x32xf32, #tpu.memory_space<vmem>>, vector<1x64x32xf32>
    %153 = vector.shape_cast %152 : vector<1x64x32xf32> to vector<64x32xf32>
    %cst_61 = arith.constant dense<0.000000e+00> : vector<34x32xf32>
    %154 = tpu.matmul %151, %153, %cst_61 {dimension_numbers = #tpu.dot_dimension_numbers<[1], [0], [0], [1], [0, 0, 1, 1], [], []>} : vector<34x64xf32>, vector<64x32xf32>, vector<34x32xf32> -> vector<34x32xf32>
    %c0_62 = arith.constant 0 : index
    %c0_63 = arith.constant 0 : index
    %c0_64 = arith.constant 0 : index
    %155 = vector.load %arg14[%c0_62, %c0_63, %c0_64] : memref<2x1x32xf32, #tpu.memory_space<vmem>>, vector<1x1x32xf32>
    %156 = vector.shape_cast %155 : vector<1x1x32xf32> to vector<1x32xf32>
    %157 = vector.broadcast %156 : vector<1x32xf32> to vector<34x32xf32>
    %158 = arith.addf %154, %157 : vector<34x32xf32>
    %159 = arith.addf %105, %158 : vector<34x32xf32>
    %c1 = arith.constant 1 : index
    %c0_65 = arith.constant 0 : index
    %c0_66 = arith.constant 0 : index
    %160 = vector.load %arg4[%c1, %c0_65, %c0_66] : memref<2x1x32xf32, #tpu.memory_space<vmem>>, vector<1x1x32xf32>
    %161 = vector.shape_cast %160 : vector<1x1x32xf32> to vector<1x32xf32>
    %c1_67 = arith.constant 1 : index
    %c0_68 = arith.constant 0 : index
    %c0_69 = arith.constant 0 : index
    %162 = vector.load %arg5[%c1_67, %c0_68, %c0_69] : memref<2x1x32xf32, #tpu.memory_space<vmem>>, vector<1x1x32xf32>
    %163 = vector.shape_cast %162 : vector<1x1x32xf32> to vector<1x32xf32>
    %cst_70 = arith.constant dense<0.000000e+00> : vector<34xf32>
    %164 = vector.multi_reduction <add>, %159, %cst_70 [1] : vector<34x32xf32> to vector<34xf32>
    %165 = vector.shape_cast %164 : vector<34xf32> to vector<34x1xf32>
    %cst_71 = arith.constant 3.200000e+01 : f32
    %166 = vector.broadcast %cst_71 : f32 to vector<34x1xf32>
    %167 = arith.divf %165, %166 : vector<34x1xf32>
    %168 = vector.broadcast %167 : vector<34x1xf32> to vector<34x32xf32>
    %169 = arith.subf %159, %168 : vector<34x32xf32>
    %170 = arith.mulf %169, %169 : vector<34x32xf32>
    %cst_72 = arith.constant dense<0.000000e+00> : vector<34xf32>
    %171 = vector.multi_reduction <add>, %170, %cst_72 [1] : vector<34x32xf32> to vector<34xf32>
    %172 = vector.shape_cast %171 : vector<34xf32> to vector<34x1xf32>
    %cst_73 = arith.constant 3.200000e+01 : f32
    %173 = vector.broadcast %cst_73 : f32 to vector<34x1xf32>
    %174 = arith.divf %172, %173 : vector<34x1xf32>
    %175 = vector.broadcast %167 : vector<34x1xf32> to vector<34x32xf32>
    %176 = arith.subf %159, %175 : vector<34x32xf32>
    %cst_74 = arith.constant 9.99999974E-6 : f32
    %177 = vector.broadcast %cst_74 : f32 to vector<34x1xf32>
    %178 = arith.addf %174, %177 : vector<34x1xf32>
    %179 = math.rsqrt %178 : vector<34x1xf32>
    %180 = vector.broadcast %179 : vector<34x1xf32> to vector<34x32xf32>
    %181 = arith.mulf %176, %180 : vector<34x32xf32>
    %182 = vector.broadcast %161 : vector<1x32xf32> to vector<34x32xf32>
    %183 = arith.mulf %181, %182 : vector<34x32xf32>
    %184 = vector.broadcast %163 : vector<1x32xf32> to vector<34x32xf32>
    %185 = arith.addf %183, %184 : vector<34x32xf32>
    %c1_75 = arith.constant 1 : index
    %c0_76 = arith.constant 0 : index
    %c0_77 = arith.constant 0 : index
    %186 = vector.load %arg6[%c1_75, %c0_76, %c0_77] : memref<2x32x96xf32, #tpu.memory_space<vmem>>, vector<1x32x96xf32>
    %187 = vector.shape_cast %186 : vector<1x32x96xf32> to vector<32x96xf32>
    %cst_78 = arith.constant dense<0.000000e+00> : vector<34x96xf32>
    %188 = tpu.matmul %185, %187, %cst_78 {dimension_numbers = #tpu.dot_dimension_numbers<[1], [0], [0], [1], [0, 0, 1, 1], [], []>} : vector<34x32xf32>, vector<32x96xf32>, vector<34x96xf32> -> vector<34x96xf32>
    %189 = vector.extract_strided_slice %188 {offsets = [0, 0], sizes = [34, 32], strides = [1, 1]} : vector<34x96xf32> to vector<34x32xf32>
    %190 = vector.extract_strided_slice %188 {offsets = [0, 32], sizes = [34, 32], strides = [1, 1]} : vector<34x96xf32> to vector<34x32xf32>
    %191 = vector.extract_strided_slice %188 {offsets = [0, 64], sizes = [34, 32], strides = [1, 1]} : vector<34x96xf32> to vector<34x32xf32>
    %192 = vector.extract_strided_slice %189 {offsets = [0, 0], sizes = [34, 8], strides = [1, 1]} : vector<34x32xf32> to vector<34x8xf32>
    %193 = vector.extract_strided_slice %189 {offsets = [0, 8], sizes = [34, 8], strides = [1, 1]} : vector<34x32xf32> to vector<34x8xf32>
    %194 = vector.extract_strided_slice %189 {offsets = [0, 16], sizes = [34, 8], strides = [1, 1]} : vector<34x32xf32> to vector<34x8xf32>
    %195 = vector.extract_strided_slice %189 {offsets = [0, 24], sizes = [34, 8], strides = [1, 1]} : vector<34x32xf32> to vector<34x8xf32>
    %196 = vector.shape_cast %192 : vector<34x8xf32> to vector<1x34x8xf32>
    %197 = vector.shape_cast %193 : vector<34x8xf32> to vector<1x34x8xf32>
    %198 = vector.shape_cast %194 : vector<34x8xf32> to vector<1x34x8xf32>
    %199 = vector.shape_cast %195 : vector<34x8xf32> to vector<1x34x8xf32>
    %200 = tpu.concatenate %196, %197, %198, %199 in 0 : vector<1x34x8xf32>, vector<1x34x8xf32>, vector<1x34x8xf32>, vector<1x34x8xf32> -> vector<4x34x8xf32>
    %201 = vector.extract_strided_slice %190 {offsets = [0, 0], sizes = [34, 8], strides = [1, 1]} : vector<34x32xf32> to vector<34x8xf32>
    %202 = vector.extract_strided_slice %190 {offsets = [0, 8], sizes = [34, 8], strides = [1, 1]} : vector<34x32xf32> to vector<34x8xf32>
    %203 = vector.extract_strided_slice %190 {offsets = [0, 16], sizes = [34, 8], strides = [1, 1]} : vector<34x32xf32> to vector<34x8xf32>
    %204 = vector.extract_strided_slice %190 {offsets = [0, 24], sizes = [34, 8], strides = [1, 1]} : vector<34x32xf32> to vector<34x8xf32>
    %205 = vector.shape_cast %201 : vector<34x8xf32> to vector<1x34x8xf32>
    %206 = vector.shape_cast %202 : vector<34x8xf32> to vector<1x34x8xf32>
    %207 = vector.shape_cast %203 : vector<34x8xf32> to vector<1x34x8xf32>
    %208 = vector.shape_cast %204 : vector<34x8xf32> to vector<1x34x8xf32>
    %209 = tpu.concatenate %205, %206, %207, %208 in 0 : vector<1x34x8xf32>, vector<1x34x8xf32>, vector<1x34x8xf32>, vector<1x34x8xf32> -> vector<4x34x8xf32>
    %210 = vector.extract_strided_slice %191 {offsets = [0, 0], sizes = [34, 8], strides = [1, 1]} : vector<34x32xf32> to vector<34x8xf32>
    %211 = vector.extract_strided_slice %191 {offsets = [0, 8], sizes = [34, 8], strides = [1, 1]} : vector<34x32xf32> to vector<34x8xf32>
    %212 = vector.extract_strided_slice %191 {offsets = [0, 16], sizes = [34, 8], strides = [1, 1]} : vector<34x32xf32> to vector<34x8xf32>
    %213 = vector.extract_strided_slice %191 {offsets = [0, 24], sizes = [34, 8], strides = [1, 1]} : vector<34x32xf32> to vector<34x8xf32>
    %214 = vector.shape_cast %210 : vector<34x8xf32> to vector<1x34x8xf32>
    %215 = vector.shape_cast %211 : vector<34x8xf32> to vector<1x34x8xf32>
    %216 = vector.shape_cast %212 : vector<34x8xf32> to vector<1x34x8xf32>
    %217 = vector.shape_cast %213 : vector<34x8xf32> to vector<1x34x8xf32>
    %218 = tpu.concatenate %214, %215, %216, %217 in 0 : vector<1x34x8xf32>, vector<1x34x8xf32>, vector<1x34x8xf32>, vector<1x34x8xf32> -> vector<4x34x8xf32>
    "tpu.trace_start"() <{level = 10 : i32, message = "hnd,hmd->hnm"}> : () -> ()
    %cst_79 = arith.constant dense<0.000000e+00> : vector<4x34x34xf32>
    %219 = tpu.matmul %200, %209, %cst_79 {dimension_numbers = #tpu.dot_dimension_numbers<[2], [2], [1], [1], [0, 0, 0, 1, 1, 1], [0], [0]>} : vector<4x34x8xf32>, vector<4x34x8xf32>, vector<4x34x34xf32> -> vector<4x34x34xf32>
    "tpu.trace_stop"() : () -> ()
    %220 = vector.shape_cast %5 : vector<34x34xf32> to vector<1x34x34xf32>
    %221 = vector.broadcast %220 : vector<1x34x34xf32> to vector<4x34x34xf32>
    %222 = arith.addf %219, %221 : vector<4x34x34xf32>
    %cst_80 = arith.constant dense<0xFF800000> : vector<4x34xf32>
    %223 = vector.multi_reduction <maximumf>, %222, %cst_80 [2] : vector<4x34x34xf32> to vector<4x34xf32>
    %224 = vector.shape_cast %223 : vector<4x34xf32> to vector<4x34x1xf32>
    %225 = vector.broadcast %224 : vector<4x34x1xf32> to vector<4x34x34xf32>
    %226 = arith.subf %222, %225 : vector<4x34x34xf32>
    %227 = math.exp %226 : vector<4x34x34xf32>
    %cst_81 = arith.constant dense<0.000000e+00> : vector<4x34xf32>
    %228 = vector.multi_reduction <add>, %227, %cst_81 [2] : vector<4x34x34xf32> to vector<4x34xf32>
    %229 = vector.shape_cast %228 : vector<4x34xf32> to vector<4x34x1xf32>
    %230 = tpu.reciprocal %229 {approx = true} : vector<4x34x1xf32> -> vector<4x34x1xf32>
    %231 = vector.broadcast %230 : vector<4x34x1xf32> to vector<4x34x34xf32>
    %232 = arith.mulf %227, %231 : vector<4x34x34xf32>
    "tpu.trace_start"() <{level = 10 : i32, message = "hnm,hmd->hnd"}> : () -> ()
    %cst_82 = arith.constant dense<0.000000e+00> : vector<4x34x8xf32>
    %233 = tpu.matmul %232, %218, %cst_82 {dimension_numbers = #tpu.dot_dimension_numbers<[2], [1], [1], [2], [0, 0, 0, 1, 1, 2], [0], [0]>} : vector<4x34x34xf32>, vector<4x34x8xf32>, vector<4x34x8xf32> -> vector<4x34x8xf32>
    "tpu.trace_stop"() : () -> ()
    %c1_83 = arith.constant 1 : index
    %c0_84 = arith.constant 0 : index
    %c0_85 = arith.constant 0 : index
    %234 = vector.load %arg7[%c1_83, %c0_84, %c0_85] : memref<2x32x32xf32, #tpu.memory_space<vmem>>, vector<1x32x32xf32>
    %235 = vector.shape_cast %234 : vector<1x32x32xf32> to vector<32x32xf32>
    %236 = vector.extract_strided_slice %233 {offsets = [0, 0, 0], sizes = [1, 34, 8], strides = [1, 1, 1]} : vector<4x34x8xf32> to vector<1x34x8xf32>
    %237 = vector.shape_cast %236 : vector<1x34x8xf32> to vector<34x8xf32>
    %238 = vector.extract_strided_slice %235 {offsets = [0, 0], sizes = [8, 32], strides = [1, 1]} : vector<32x32xf32> to vector<8x32xf32>
    %cst_86 = arith.constant dense<0.000000e+00> : vector<34x32xf32>
    %239 = tpu.matmul %237, %238, %cst_86 {dimension_numbers = #tpu.dot_dimension_numbers<[1], [0], [0], [1], [0, 0, 1, 1], [], []>} : vector<34x8xf32>, vector<8x32xf32>, vector<34x32xf32> -> vector<34x32xf32>
    %240 = vector.extract_strided_slice %233 {offsets = [1, 0, 0], sizes = [1, 34, 8], strides = [1, 1, 1]} : vector<4x34x8xf32> to vector<1x34x8xf32>
    %241 = vector.shape_cast %240 : vector<1x34x8xf32> to vector<34x8xf32>
    %242 = vector.extract_strided_slice %235 {offsets = [8, 0], sizes = [8, 32], strides = [1, 1]} : vector<32x32xf32> to vector<8x32xf32>
    %cst_87 = arith.constant dense<0.000000e+00> : vector<34x32xf32>
    %243 = tpu.matmul %241, %242, %cst_87 {dimension_numbers = #tpu.dot_dimension_numbers<[1], [0], [0], [1], [0, 0, 1, 1], [], []>} : vector<34x8xf32>, vector<8x32xf32>, vector<34x32xf32> -> vector<34x32xf32>
    %244 = arith.addf %239, %243 : vector<34x32xf32>
    %245 = vector.extract_strided_slice %233 {offsets = [2, 0, 0], sizes = [1, 34, 8], strides = [1, 1, 1]} : vector<4x34x8xf32> to vector<1x34x8xf32>
    %246 = vector.shape_cast %245 : vector<1x34x8xf32> to vector<34x8xf32>
    %247 = vector.extract_strided_slice %235 {offsets = [16, 0], sizes = [8, 32], strides = [1, 1]} : vector<32x32xf32> to vector<8x32xf32>
    %cst_88 = arith.constant dense<0.000000e+00> : vector<34x32xf32>
    %248 = tpu.matmul %246, %247, %cst_88 {dimension_numbers = #tpu.dot_dimension_numbers<[1], [0], [0], [1], [0, 0, 1, 1], [], []>} : vector<34x8xf32>, vector<8x32xf32>, vector<34x32xf32> -> vector<34x32xf32>
    %249 = arith.addf %244, %248 : vector<34x32xf32>
    %250 = vector.extract_strided_slice %233 {offsets = [3, 0, 0], sizes = [1, 34, 8], strides = [1, 1, 1]} : vector<4x34x8xf32> to vector<1x34x8xf32>
    %251 = vector.shape_cast %250 : vector<1x34x8xf32> to vector<34x8xf32>
    %252 = vector.extract_strided_slice %235 {offsets = [24, 0], sizes = [8, 32], strides = [1, 1]} : vector<32x32xf32> to vector<8x32xf32>
    %cst_89 = arith.constant dense<0.000000e+00> : vector<34x32xf32>
    %253 = tpu.matmul %251, %252, %cst_89 {dimension_numbers = #tpu.dot_dimension_numbers<[1], [0], [0], [1], [0, 0, 1, 1], [], []>} : vector<34x8xf32>, vector<8x32xf32>, vector<34x32xf32> -> vector<34x32xf32>
    %254 = arith.addf %249, %253 : vector<34x32xf32>
    %255 = arith.addf %159, %254 : vector<34x32xf32>
    %c1_90 = arith.constant 1 : index
    %c0_91 = arith.constant 0 : index
    %c0_92 = arith.constant 0 : index
    %256 = vector.load %arg8[%c1_90, %c0_91, %c0_92] : memref<2x1x32xf32, #tpu.memory_space<vmem>>, vector<1x1x32xf32>
    %257 = vector.shape_cast %256 : vector<1x1x32xf32> to vector<1x32xf32>
    %258 = vector.broadcast %257 : vector<1x32xf32> to vector<34x32xf32>
    %259 = arith.addf %255, %258 : vector<34x32xf32>
    %c1_93 = arith.constant 1 : index
    %c0_94 = arith.constant 0 : index
    %c0_95 = arith.constant 0 : index
    %260 = vector.load %arg9[%c1_93, %c0_94, %c0_95] : memref<2x1x32xf32, #tpu.memory_space<vmem>>, vector<1x1x32xf32>
    %261 = vector.shape_cast %260 : vector<1x1x32xf32> to vector<1x32xf32>
    %c1_96 = arith.constant 1 : index
    %c0_97 = arith.constant 0 : index
    %c0_98 = arith.constant 0 : index
    %262 = vector.load %arg10[%c1_96, %c0_97, %c0_98] : memref<2x1x32xf32, #tpu.memory_space<vmem>>, vector<1x1x32xf32>
    %263 = vector.shape_cast %262 : vector<1x1x32xf32> to vector<1x32xf32>
    %cst_99 = arith.constant dense<0.000000e+00> : vector<34xf32>
    %264 = vector.multi_reduction <add>, %259, %cst_99 [1] : vector<34x32xf32> to vector<34xf32>
    %265 = vector.shape_cast %264 : vector<34xf32> to vector<34x1xf32>
    %cst_100 = arith.constant 3.200000e+01 : f32
    %266 = vector.broadcast %cst_100 : f32 to vector<34x1xf32>
    %267 = arith.divf %265, %266 : vector<34x1xf32>
    %268 = vector.broadcast %267 : vector<34x1xf32> to vector<34x32xf32>
    %269 = arith.subf %259, %268 : vector<34x32xf32>
    %270 = arith.mulf %269, %269 : vector<34x32xf32>
    %cst_101 = arith.constant dense<0.000000e+00> : vector<34xf32>
    %271 = vector.multi_reduction <add>, %270, %cst_101 [1] : vector<34x32xf32> to vector<34xf32>
    %272 = vector.shape_cast %271 : vector<34xf32> to vector<34x1xf32>
    %cst_102 = arith.constant 3.200000e+01 : f32
    %273 = vector.broadcast %cst_102 : f32 to vector<34x1xf32>
    %274 = arith.divf %272, %273 : vector<34x1xf32>
    %275 = vector.broadcast %267 : vector<34x1xf32> to vector<34x32xf32>
    %276 = arith.subf %259, %275 : vector<34x32xf32>
    %cst_103 = arith.constant 9.99999974E-6 : f32
    %277 = vector.broadcast %cst_103 : f32 to vector<34x1xf32>
    %278 = arith.addf %274, %277 : vector<34x1xf32>
    %279 = math.rsqrt %278 : vector<34x1xf32>
    %280 = vector.broadcast %279 : vector<34x1xf32> to vector<34x32xf32>
    %281 = arith.mulf %276, %280 : vector<34x32xf32>
    %282 = vector.broadcast %261 : vector<1x32xf32> to vector<34x32xf32>
    %283 = arith.mulf %281, %282 : vector<34x32xf32>
    %284 = vector.broadcast %263 : vector<1x32xf32> to vector<34x32xf32>
    %285 = arith.addf %283, %284 : vector<34x32xf32>
    %c1_104 = arith.constant 1 : index
    %c0_105 = arith.constant 0 : index
    %c0_106 = arith.constant 0 : index
    %286 = vector.load %arg11[%c1_104, %c0_105, %c0_106] : memref<2x32x64xf32, #tpu.memory_space<vmem>>, vector<1x32x64xf32>
    %287 = vector.shape_cast %286 : vector<1x32x64xf32> to vector<32x64xf32>
    %cst_107 = arith.constant dense<0.000000e+00> : vector<34x64xf32>
    %288 = tpu.matmul %285, %287, %cst_107 {dimension_numbers = #tpu.dot_dimension_numbers<[1], [0], [0], [1], [0, 0, 1, 1], [], []>} : vector<34x32xf32>, vector<32x64xf32>, vector<34x64xf32> -> vector<34x64xf32>
    %c1_108 = arith.constant 1 : index
    %c0_109 = arith.constant 0 : index
    %c0_110 = arith.constant 0 : index
    %289 = vector.load %arg12[%c1_108, %c0_109, %c0_110] : memref<2x1x64xf32, #tpu.memory_space<vmem>>, vector<1x1x64xf32>
    %290 = vector.shape_cast %289 : vector<1x1x64xf32> to vector<1x64xf32>
    %291 = vector.broadcast %290 : vector<1x64xf32> to vector<34x64xf32>
    %292 = arith.addf %288, %291 : vector<34x64xf32>
    %cst_111 = arith.constant 5.000000e-01 : f32
    %293 = vector.broadcast %cst_111 : f32 to vector<34x64xf32>
    %294 = arith.mulf %293, %292 : vector<34x64xf32>
    %cst_112 = arith.constant 4.471500e-02 : f32
    %295 = vector.broadcast %cst_112 : f32 to vector<34x64xf32>
    %296 = arith.mulf %295, %292 : vector<34x64xf32>
    %297 = arith.mulf %296, %292 : vector<34x64xf32>
    %298 = arith.mulf %297, %292 : vector<34x64xf32>
    %299 = arith.addf %292, %298 : vector<34x64xf32>
    %cst_113 = arith.constant 0.797884583 : f32
    %300 = vector.broadcast %cst_113 : f32 to vector<34x64xf32>
    %301 = arith.mulf %300, %299 : vector<34x64xf32>
    %302 = math.tanh %301 : vector<34x64xf32>
    %cst_114 = arith.constant 1.000000e+00 : f32
    %303 = vector.broadcast %cst_114 : f32 to vector<34x64xf32>
    %304 = arith.addf %303, %302 : vector<34x64xf32>
    %305 = arith.mulf %294, %304 : vector<34x64xf32>
    %c1_115 = arith.constant 1 : index
    %c0_116 = arith.constant 0 : index
    %c0_117 = arith.constant 0 : index
    %306 = vector.load %arg13[%c1_115, %c0_116, %c0_117] : memref<2x64x32xf32, #tpu.memory_space<vmem>>, vector<1x64x32xf32>
    %307 = vector.shape_cast %306 : vector<1x64x32xf32> to vector<64x32xf32>
    %cst_118 = arith.constant dense<0.000000e+00> : vector<34x32xf32>
    %308 = tpu.matmul %305, %307, %cst_118 {dimension_numbers = #tpu.dot_dimension_numbers<[1], [0], [0], [1], [0, 0, 1, 1], [], []>} : vector<34x64xf32>, vector<64x32xf32>, vector<34x32xf32> -> vector<34x32xf32>
    %c1_119 = arith.constant 1 : index
    %c0_120 = arith.constant 0 : index
    %c0_121 = arith.constant 0 : index
    %309 = vector.load %arg14[%c1_119, %c0_120, %c0_121] : memref<2x1x32xf32, #tpu.memory_space<vmem>>, vector<1x1x32xf32>
    %310 = vector.shape_cast %309 : vector<1x1x32xf32> to vector<1x32xf32>
    %311 = vector.broadcast %310 : vector<1x32xf32> to vector<34x32xf32>
    %312 = arith.addf %308, %311 : vector<34x32xf32>
    %313 = arith.addf %259, %312 : vector<34x32xf32>
    %314 = vector.extract_strided_slice %313 {offsets = [0, 0], sizes = [1, 32], strides = [1, 1]} : vector<34x32xf32> to vector<1x32xf32>
    %315 = vector.extract_strided_slice %313 {offsets = [17, 0], sizes = [1, 32], strides = [1, 1]} : vector<34x32xf32> to vector<1x32xf32>
    %316 = tpu.concatenate %314, %315 in 0 : vector<1x32xf32>, vector<1x32xf32> -> vector<2x32xf32>
    %c0_122 = arith.constant 0 : index
    %c0_123 = arith.constant 0 : index
    %317 = vector.load %arg15[%c0_122, %c0_123] : memref<1x32xf32, #tpu.memory_space<vmem>>, vector<1x32xf32>
    %c0_124 = arith.constant 0 : index
    %c0_125 = arith.constant 0 : index
    %318 = vector.load %arg16[%c0_124, %c0_125] : memref<1x32xf32, #tpu.memory_space<vmem>>, vector<1x32xf32>
    %cst_126 = arith.constant dense<0.000000e+00> : vector<2xf32>
    %319 = vector.multi_reduction <add>, %316, %cst_126 [1] : vector<2x32xf32> to vector<2xf32>
    %320 = vector.shape_cast %319 : vector<2xf32> to vector<2x1xf32>
    %cst_127 = arith.constant 3.200000e+01 : f32
    %321 = vector.broadcast %cst_127 : f32 to vector<2x1xf32>
    %322 = arith.divf %320, %321 : vector<2x1xf32>
    %323 = vector.broadcast %322 : vector<2x1xf32> to vector<2x32xf32>
    %324 = arith.subf %316, %323 : vector<2x32xf32>
    %325 = arith.mulf %324, %324 : vector<2x32xf32>
    %cst_128 = arith.constant dense<0.000000e+00> : vector<2xf32>
    %326 = vector.multi_reduction <add>, %325, %cst_128 [1] : vector<2x32xf32> to vector<2xf32>
    %327 = vector.shape_cast %326 : vector<2xf32> to vector<2x1xf32>
    %cst_129 = arith.constant 3.200000e+01 : f32
    %328 = vector.broadcast %cst_129 : f32 to vector<2x1xf32>
    %329 = arith.divf %327, %328 : vector<2x1xf32>
    %330 = vector.broadcast %322 : vector<2x1xf32> to vector<2x32xf32>
    %331 = arith.subf %316, %330 : vector<2x32xf32>
    %cst_130 = arith.constant 9.99999974E-6 : f32
    %332 = vector.broadcast %cst_130 : f32 to vector<2x1xf32>
    %333 = arith.addf %329, %332 : vector<2x1xf32>
    %334 = math.rsqrt %333 : vector<2x1xf32>
    %335 = vector.broadcast %334 : vector<2x1xf32> to vector<2x32xf32>
    %336 = arith.mulf %331, %335 : vector<2x32xf32>
    %337 = vector.broadcast %317 : vector<1x32xf32> to vector<2x32xf32>
    %338 = arith.mulf %336, %337 : vector<2x32xf32>
    %339 = vector.broadcast %318 : vector<1x32xf32> to vector<2x32xf32>
    %340 = arith.addf %338, %339 : vector<2x32xf32>
    %c0_131 = arith.constant 0 : index
    %c0_132 = arith.constant 0 : index
    %341 = vector.load %arg17[%c0_131, %c0_132] : memref<32x10xf32, #tpu.memory_space<vmem>>, vector<32x10xf32>
    %cst_133 = arith.constant dense<0.000000e+00> : vector<2x10xf32>
    %342 = tpu.matmul %340, %341, %cst_133 {dimension_numbers = #tpu.dot_dimension_numbers<[1], [0], [0], [1], [0, 0, 1, 1], [], []>} : vector<2x32xf32>, vector<32x10xf32>, vector<2x10xf32> -> vector<2x10xf32>
    %c0_134 = arith.constant 0 : index
    %c0_135 = arith.constant 0 : index
    %343 = vector.load %arg18[%c0_134, %c0_135] : memref<1x10xf32, #tpu.memory_space<vmem>>, vector<1x10xf32>
    %344 = vector.broadcast %343 : vector<1x10xf32> to vector<2x10xf32>
    %345 = arith.addf %342, %344 : vector<2x10xf32>
    %c0_136 = arith.constant 0 : index
    %c0_137 = arith.constant 0 : index
    %346 = vector.load %arg19[%c0_136, %c0_137] : memref<2x10xf32, #tpu.memory_space<vmem>>, vector<2x10xf32>
    tpu.vector_store %arg19[%c0_136, %c0_137], %345 {strides = array<i32>} : memref<2x10xf32, #tpu.memory_space<vmem>>, vector<2x10xf32>,
    return
  }
}

</mosaic_0001>

<llo_original>
// kernel: tile.9
$region0: #{tile.9}
  %s0 = inlined_call_operand.vmem [shape: f32[2,17,32], index: 0, kind: input, shape index: {}]
  %s1 = inlined_call_operand.vmem [shape: f32[34,32], index: 1, kind: output, shape index: {}]
  %v2 = vld [vmem:[%s0] sm:$0xff]
  %vm3 = vcmask 261120
  %4 = vst.msk [vmem:[%s1] sm:$0xff] %vm3, %v2
  %s5 = scalar_lea.vmem %s0, 8
  %v6 = vld [vmem:[%s5] sm:$0xff]
  %vm7 = vcmask 261120
  %s8 = scalar_lea.vmem %s1, 8
  %9 = vst.msk [vmem:[%s8] sm:$0xff] %vm7, %v6
  %s10 = scalar_lea.vmem %s0, 16
  %s11 = smov 3
  %v12 = vld [vmem:[%s10] ss:$8 sm:%s11]
  %vm13 = vcmask 261120
  %s14 = scalar_lea.vmem %s1, 16
  %15 = vst.msk [vmem:[%s14] sm:$0x3] %vm13, %v12
  %s16 = scalar_lea.vmem %s0, 25
  %v17 = vld [vmem:[%s16] sm:$0xff]
  %vm18 = vcmask 261120
  %s19 = scalar_lea.vmem %s1, 18
  %20 = vst.msk [vmem:[%s19] sm:$0xff] %vm18, %v17
  %s21 = scalar_lea.vmem %s0, 33
  %v22 = vld [vmem:[%s21] sm:$0xff]
  %vm23 = vcmask 261120
  %s24 = scalar_lea.vmem %s1, 26
  %25 = vst.msk [vmem:[%s24] sm:$0xff] %vm23, %v22

// kernel: vit_forward.1
$region0: #{vit_forward.1}
  #allocation0 [shape = 'u32[]', space=smem, size = 0x4, offset = 0x4, fixed_abs, tag = 'smem constant byte address 0x4 - core index']
  #allocation1 [shape = 'u32[144,128]{1,0:T(1,128)}', space=vmem, size = 0x12000, scoped, tag = 'internal scratch']
  %s0 = inlined_call_operand.vmem [shape: f32[34,64], index: 0, kind: input, shape index: {}]
  %s1 = inlined_call_operand.vmem [shape: f32[64,32], index: 1, kind: input, shape index: {}]
  %s2 = inlined_call_operand.vmem [shape: f32[34,32], index: 2, kind: input, shape index: {}]
  %s3 = inlined_call_operand.vmem [shape: f32[34,34], index: 3, kind: input, shape index: {}]
  %s4 = inlined_call_operand.vmem [shape: f32[2,1,32], index: 4, kind: input, shape index: {}]
  %s5 = inlined_call_operand.vmem [shape: f32[2,1,32], index: 5, kind: input, shape index: {}]
  %s6 = inlined_call_operand.vmem [shape: f32[2,32,96], index: 6, kind: input, shape index: {}]
  %s7 = inlined_call_operand.vmem [shape: f32[2,32,32], index: 7, kind: input, shape index: {}]
  %s8 = inlined_call_operand.vmem [shape: f32[2,1,32], index: 8, kind: input, shape index: {}]
  %s9 = inlined_call_operand.vmem [shape: f32[2,1,32], index: 9, kind: input, shape index: {}]
  %s10 = inlined_call_operand.vmem [shape: f32[2,1,32], index: 10, kind: input, shape index: {}]
  %s11 = inlined_call_operand.vmem [shape: f32[2,32,64], index: 11, kind: input, shape index: {}]
  %s12 = inlined_call_operand.vmem [shape: f32[2,1,64], index: 12, kind: input, shape index: {}]
  %s13 = inlined_call_operand.vmem [shape: f32[2,64,32], index: 13, kind: input, shape index: {}]
  %s14 = inlined_call_operand.vmem [shape: f32[2,1,32], index: 14, kind: input, shape index: {}]
  %s15 = inlined_call_operand.vmem [shape: f32[1,32], index: 15, kind: input, shape index: {}]
  %s16 = inlined_call_operand.vmem [shape: f32[1,32], index: 16, kind: input, shape index: {}]
  %s17 = inlined_call_operand.vmem [shape: f32[32,10], index: 17, kind: input, shape index: {}]
  %s18 = inlined_call_operand.vmem [shape: f32[1,10], index: 18, kind: input, shape index: {}]
  %s19 = inlined_call_operand.hbm [shape: f32[2,10], index: 19, kind: output, shape index: {}]
  %s20 = sld [smem:[#allocation0]]
  $region86: #{vit_forward.1} parent=0
    _
  %s22 = ssub.s32 1, %s20
  %s23 = scalar_select 0, %s22, %s20
  $region1: #{vit_forward.1} parent=0
    #allocation2 [shape = 'u8[1024]{0}', space=vmem, size = 0x400, scoped, tag = 'output window, operand 0, single buffered']
    #allocation3 [shape = 's32[1]{0}', space=sflag, size = 0x4, scoped, tag = 'scoped memory for vit_forward.1']
    %24 = vsyncpa [#allocation3], 0
    // Predicated region
    $region2: #{vit_forward.1} parent=1 // pred_check
      _
    $region3: #{vit_forward.1} parent=1 // pred_check_branch
      %26 = sbr.rel (0) target = $region5
    $region4: #{vit_forward.1} parent=1 // pred_region
      _
    $region5: #{vit_forward.1} parent=1 // pred_fallthru
      _
    // Predicated region
    $region6: #{vit_forward.1} parent=1 // pred_check
      _
    $region7: #{vit_forward.1} parent=1 // pred_check_branch
      %28 = sbr.rel (0) target = $region9
    $region8: #{vit_forward.1} parent=1 // pred_region
      _
    $region9: #{vit_forward.1} parent=1 // pred_fallthru
      _
    // Predicated region
    $region10: #{vit_forward.1} parent=1 // pred_check
      _
    $region11: #{vit_forward.1} parent=1 // pred_check_branch
      %30 = sbr.rel (0) target = $region13
    $region12: #{vit_forward.1} parent=1 // pred_region
      _
    $region13: #{vit_forward.1} parent=1 // pred_fallthru
      _
    // Predicated region
    $region14: #{vit_forward.1} parent=1 // pred_check
      _
    $region15: #{vit_forward.1} parent=1 // pred_check_branch
      %32 = sbr.rel (0) target = $region17
    $region16: #{vit_forward.1} parent=1 // pred_region
      _
    $region17: #{vit_forward.1} parent=1 // pred_fallthru
      _
    // Predicated region
    $region18: #{vit_forward.1} parent=1 // pred_check
      _
    $region19: #{vit_forward.1} parent=1 // pred_check_branch
      %34 = sbr.rel (0) target = $region21
    $region20: #{vit_forward.1} parent=1 // pred_region
      _
    $region21: #{vit_forward.1} parent=1 // pred_fallthru
      _
    // Predicated region
    $region22: #{vit_forward.1} parent=1 // pred_check
      _
    $region23: #{vit_forward.1} parent=1 // pred_check_branch
      %36 = sbr.rel (0) target = $region25
    $region24: #{vit_forward.1} parent=1 // pred_region
      _
    $region25: #{vit_forward.1} parent=1 // pred_fallthru
      _
    // Predicated region
    $region26: #{vit_forward.1} parent=1 // pred_check
      _
    $region27: #{vit_forward.1} parent=1 // pred_check_branch
      %38 = sbr.rel (0) target = $region29
    $region28: #{vit_forward.1} parent=1 // pred_region
      _
    $region29: #{vit_forward.1} parent=1 // pred_fallthru
      _
    // Predicated region
    $region30: #{vit_forward.1} parent=1 // pred_check
      _
    $region31: #{vit_forward.1} parent=1 // pred_check_branch
      %40 = sbr.rel (0) target = $region33
    $region32: #{vit_forward.1} parent=1 // pred_region
      _
    $region33: #{vit_forward.1} parent=1 // pred_fallthru
      _
    // Predicated region
    $region34: #{vit_forward.1} parent=1 // pred_check
      _
    $region35: #{vit_forward.1} parent=1 // pred_check_branch
      %42 = sbr.rel (0) target = $region37
    $region36: #{vit_forward.1} parent=1 // pred_region
      _
    $region37: #{vit_forward.1} parent=1 // pred_fallthru
      _
    // Predicated region
    $region38: #{vit_forward.1} parent=1 // pred_check
      _
    $region39: #{vit_forward.1} parent=1 // pred_check_branch
      %44 = sbr.rel (0) target = $region41
    $region40: #{vit_forward.1} parent=1 // pred_region
      _
    $region41: #{vit_forward.1} parent=1 // pred_fallthru
      _
    // Predicated region
    $region42: #{vit_forward.1} parent=1 // pred_check
      _
    $region43: #{vit_forward.1} parent=1 // pred_check_branch
      %46 = sbr.rel (0) target = $region45
    $region44: #{vit_forward.1} parent=1 // pred_region
      _
    $region45: #{vit_forward.1} parent=1 // pred_fallthru
      _
    // Predicated region
    $region46: #{vit_forward.1} parent=1 // pred_check
      _
    $region47: #{vit_forward.1} parent=1 // pred_check_branch
      %48 = sbr.rel (0) target = $region49
    $region48: #{vit_forward.1} parent=1 // pred_region
      _
    $region49: #{vit_forward.1} parent=1 // pred_fallthru
      _
    // Predicated region
    $region50: #{vit_forward.1} parent=1 // pred_check
      _
    $region51: #{vit_forward.1} parent=1 // pred_check_branch
      %50 = sbr.rel (0) target = $region53
    $region52: #{vit_forward.1} parent=1 // pred_region
      _
    $region53: #{vit_forward.1} parent=1 // pred_fallthru
      _
    // Predicated region
    $region54: #{vit_forward.1} parent=1 // pred_check
      _
    $region55: #{vit_forward.1} parent=1 // pred_check_branch
      %52 = sbr.rel (0) target = $region57
    $region56: #{vit_forward.1} parent=1 // pred_region
      _
    $region57: #{vit_forward.1} parent=1 // pred_fallthru
      _
    // Predicated region
    $region58: #{vit_forward.1} parent=1 // pred_check
      _
    $region59: #{vit_forward.1} parent=1 // pred_check_branch
      %54 = sbr.rel (0) target = $region61
    $region60: #{vit_forward.1} parent=1 // pred_region
      _
    $region61: #{vit_forward.1} parent=1 // pred_fallthru
      _
    // Predicated region
    $region62: #{vit_forward.1} parent=1 // pred_check
      _
    $region63: #{vit_forward.1} parent=1 // pred_check_branch
      %56 = sbr.rel (0) target = $region65
    $region64: #{vit_forward.1} parent=1 // pred_region
      _
    $region65: #{vit_forward.1} parent=1 // pred_fallthru
      _
    // Predicated region
    $region66: #{vit_forward.1} parent=1 // pred_check
      _
    $region67: #{vit_forward.1} parent=1 // pred_check_branch
      %58 = sbr.rel (0) target = $region69
    $region68: #{vit_forward.1} parent=1 // pred_region
      _
    $region69: #{vit_forward.1} parent=1 // pred_fallthru
      _
    // Predicated region
    $region70: #{vit_forward.1} parent=1 // pred_check
      _
    $region71: #{vit_forward.1} parent=1 // pred_check_branch
      %60 = sbr.rel (0) target = $region73
    $region72: #{vit_forward.1} parent=1 // pred_region
      _
    $region73: #{vit_forward.1} parent=1 // pred_fallthru
      _
    // Predicated region
    $region74: #{vit_forward.1} parent=1 // pred_check
      _
    $region75: #{vit_forward.1} parent=1 // pred_check_branch
      %62 = sbr.rel (0) target = $region77
    $region76: #{vit_forward.1} parent=1 // pred_region
      _
    $region77: #{vit_forward.1} parent=1 // pred_fallthru
      _
    %v63 = vld [vmem:[%s0] sm:$0xff]
    %v64 = vld [vmem:[%s0 + $0x8] sm:$0xff]
    %v65 = vld [vmem:[%s0 + $0x10] sm:$0xff]
    %v66 = vld [vmem:[%s0 + $0x18] sm:$0xff]
    %v67 = vld [vmem:[%s0 + $0x20] sm:$0x3]
    %v68 = vld [vmem:[%s1] sm:$0xff]
    %v69 = vld [vmem:[%s1 + $0x8] sm:$0xff]
    %v70 = vld [vmem:[%s1 + $0x10] sm:$0xff]
    %v71 = vld [vmem:[%s1 + $0x18] sm:$0xff]
    %v72 = vld [vmem:[%s1 + $0x20] sm:$0xff]
    %v73 = vld [vmem:[%s1 + $0x28] sm:$0xff]
    %v74 = vld [vmem:[%s1 + $0x30] sm:$0xff]
    %v75 = vld [vmem:[%s1 + $0x38] sm:$0xff]
    %v76 = vld [vmem:[%s2] sm:$0xff]
    %v77 = vld [vmem:[%s2 + $0x8] sm:$0xff]
    %v78 = vld [vmem:[%s2 + $0x10] sm:$0xff]
    %v79 = vld [vmem:[%s2 + $0x18] sm:$0xff]
    %v80 = vld [vmem:[%s2 + $0x20] sm:$0x3]
    %vm81 = vcmask 523264
    %v83 = vsel %vm81, %v63, 0
    %v86 = vsel %vm81, %v64, 0
    %v89 = vsel %vm81, %v65, 0
    %v92 = vsel %vm81, %v66, 0
    %v95 = vsel %vm81, %v67, 0
    %97 = vmatprep.subr.mxu0 0.0
    %98 = vmatpush1.msra.mxu0 0.0
    %99 = vmatprep.subr.mxu0 0.0
    %100 = vmatpush1.msra.mxu0 0.0
    %101 = vmatprep.subr.mxu0 0.0
    %102 = vmatpush1.msra.mxu0 0.0
    %103 = vmatprep.subr.mxu0 0.0
    %104 = vmatpush1.msra.mxu0 0.0
    %105 = vmatprep.subr.mxu0 0.0
    %106 = vmatpush1.msra.mxu0 0.0
    %107 = vmatprep.subr.mxu0 0.0
    %108 = vmatpush1.msra.mxu0 0.0
    %109 = vmatprep.subr.mxu0 0.0
    %110 = vmatpush1.msra.mxu0 0.0
    %111 = vmatprep.subr.mxu0 0.0
    %112 = vmatpush1.msra.mxu0 0.0
    %113 = vmatprep.subr.mxu0 0.0
    %114 = vmatpush1.msra.mxu0 %v75
    %115 = vmatprep.subr.mxu0 0.0
    %116 = vmatpush1.msra.mxu0 %v74
    %117 = vmatprep.subr.mxu0 0.0
    %118 = vmatpush1.msra.mxu0 %v73
    %119 = vmatprep.subr.mxu0 0.0
    %120 = vmatpush1.msra.mxu0 %v72
    %121 = vmatprep.subr.mxu0 0.0
    %122 = vmatpush1.msra.mxu0 %v71
    %123 = vmatprep.subr.mxu0 0.0
    %124 = vmatpush1.msra.mxu0 %v70
    %125 = vmatprep.subr.mxu0 0.0
    %126 = vmatpush1.msra.mxu0 %v69
    %127 = vmatprep.subr.mxu0 0.0
    %128 = vmatpush1.msra.mxu0 %v68
    %129 = vmatprep.subr.mxu0 0.0
    %130 = vmatpush2.msra.mxu0 0.0
    %131 = vmatprep.subr.mxu0 0.0
    %132 = vmatpush2.msra.mxu0 0.0
    %133 = vmatprep.subr.mxu0 0.0
    %134 = vmatpush2.msra.mxu0 0.0
    %135 = vmatprep.subr.mxu0 0.0
    %136 = vmatpush2.msra.mxu0 0.0
    %137 = vmatprep.subr.mxu0 0.0
    %138 = vmatpush2.msra.mxu0 0.0
    %139 = vmatprep.subr.mxu0 0.0
    %140 = vmatpush2.msra.mxu0 0.0
    %141 = vmatprep.subr.mxu0 0.0
    %142 = vmatpush2.msra.mxu0 0.0
    %143 = vmatprep.subr.mxu0 0.0
    %144 = vmatpush2.msra.mxu0 0.0
    %145 = vmatprep.subr.mxu0 0.0
    %146 = vmatpush2.msra.mxu0 0.0
    %147 = vmatprep.subr.mxu0 0.0
    %148 = vmatpush2.msra.mxu0 0.0
    %149 = vmatprep.subr.mxu0 0.0
    %150 = vmatpush2.msra.mxu0 0.0
    %151 = vmatprep.subr.mxu0 0.0
    %152 = vmatpush2.msra.mxu0 0.0
    %153 = vmatprep.subr.mxu0 0.0
    %154 = vmatpush2.msra.mxu0 0.0
    %155 = vmatprep.subr.mxu0 0.0
    %156 = vmatpush2.msra.mxu0 0.0
    %157 = vmatprep.subr.mxu0 0.0
    %158 = vmatpush2.msra.mxu0 0.0
    %159 = vmatprep.subr.mxu0 0.0
    %160 = vmatpush2.msra.mxu0 0.0
    %161 = vmatprep.mubr.f32.mxu0 0.0
    %162 = vmatmul.mubr.f32.gmra.mxu0 %v83
    %v163 = vpop.f32.mrf.mxu0
    %v164 = vadd.f32 %v76, %v163
    %v165 = vpop.f32.mrf.mxu0
    %166 = vmatprep.mubr.f32.mxu0 0.0
    %167 = vmatmul.mubr.f32.gmra.mxu0 %v86
    %v168 = vpop.f32.mrf.mxu0
    %v169 = vadd.f32 %v77, %v168
    %v170 = vpop.f32.mrf.mxu0
    %171 = vmatprep.mubr.f32.mxu0 0.0
    %172 = vmatmul.mubr.f32.gmra.mxu0 %v89
    %v173 = vpop.f32.mrf.mxu0
    %v174 = vadd.f32 %v78, %v173
    %v175 = vpop.f32.mrf.mxu0
    %176 = vmatprep.mubr.f32.mxu0 0.0
    %177 = vmatmul.mubr.f32.gmra.mxu0 %v92
    %v178 = vpop.f32.mrf.mxu0
    %v179 = vadd.f32 %v79, %v178
    %v180 = vpop.f32.mrf.mxu0
    %181 = vmatprep.mubr.f32.mxu0 0.0
    %182 = vmatmul.mubr.f32.gmra.mxu0 %v95
    %v183 = vpop.f32.mrf.mxu0
    %v184 = vadd.f32 %v80, %v183
    %v185 = vpop.f32.mrf.mxu0
    %186 = vdwg.mxu0
    %v187 = vld [vmem:[%s3] sm:$0xff]
    %v188 = vld [vmem:[%s3 + $0x8] sm:$0xff]
    %v189 = vld [vmem:[%s3 + $0x10] sm:$0xff]
    %v190 = vld [vmem:[%s3 + $0x18] sm:$0xff]
    %v191 = vld [vmem:[%s3 + $0x20] sm:$0x3]
    %v192 = vld [vmem:[%s4] sm:$0x1]
    %v193 = vld [vmem:[%s5] sm:$0x1]
    %vm194 = vcmask 261120
    %v195 = vsel %vm194, %v164, 0.0
    %196 = vadd.xlane.f32.xlu0 %v195
    %v197 = vpop.xlane.xlu0 %196
    %v198 = vsel %vm194, %v169, 0.0
    %199 = vadd.xlane.f32.xlu0 %v198
    %v200 = vpop.xlane.xlu0 %199
    %v201 = vsel %vm194, %v174, 0.0
    %202 = vadd.xlane.f32.xlu0 %v201
    %v203 = vpop.xlane.xlu0 %202
    %v204 = vsel %vm194, %v179, 0.0
    %205 = vadd.xlane.f32.xlu0 %v204
    %v206 = vpop.xlane.xlu0 %205
    %vm207 = vcmask 254976
    %v208 = vsel %vm207, %v184, 0.0
    %209 = vadd.xlane.f32.xlu0 %v208
    %v210 = vpop.xlane.xlu0 %209
    %v211 = vrcp.pop 32.0
    %v212 = vmul.f32 %v197, %v211
    %v213 = vmul.f32 %v200, %v211
    %v214 = vmul.f32 %v203, %v211
    %v215 = vmul.f32 %v206, %v211
    %v216 = vmul.f32 %v210, %v211
    %v217 = vsub.f32 %v164, %v212
    %v218 = vsub.f32 %v169, %v213
    %v219 = vsub.f32 %v174, %v214
    %v220 = vsub.f32 %v179, %v215
    %v221 = vsub.f32 %v184, %v216
    %v222 = vmul.f32 %v217, %v217
    %v223 = vmul.f32 %v218, %v218
    %v224 = vmul.f32 %v219, %v219
    %v225 = vmul.f32 %v220, %v220
    %v226 = vmul.f32 %v221, %v221
    %v227 = vsel %vm194, %v222, 0.0
    %228 = vadd.xlane.f32.xlu0 %v227
    %v229 = vpop.xlane.xlu0 %228
    %v230 = vsel %vm194, %v223, 0.0
    %231 = vadd.xlane.f32.xlu0 %v230
    %v232 = vpop.xlane.xlu0 %231
    %v233 = vsel %vm194, %v224, 0.0
    %234 = vadd.xlane.f32.xlu0 %v233
    %v235 = vpop.xlane.xlu0 %234
    %v236 = vsel %vm194, %v225, 0.0
    %237 = vadd.xlane.f32.xlu0 %v236
    %v238 = vpop.xlane.xlu0 %237
    %v239 = vsel %vm207, %v226, 0.0
    %240 = vadd.xlane.f32.xlu0 %v239
    %v241 = vpop.xlane.xlu0 %240
    %v242 = vmul.f32 %v229, %v211
    %v243 = vmul.f32 %v232, %v211
    %v244 = vmul.f32 %v235, %v211
    %v245 = vmul.f32 %v238, %v211
    %v246 = vmul.f32 %v241, %v211
    %v247 = vadd.f32 %v242, 1e-05
    %v248 = vadd.f32 %v243, 1e-05
    %v249 = vadd.f32 %v244, 1e-05
    %v250 = vadd.f32 %v245, 1e-05
    %v251 = vadd.f32 %v246, 1e-05
    %v252 = vrsqrt.pop %v247
    %v253 = vrsqrt.pop %v248
    %v254 = vrsqrt.pop %v249
    %v255 = vrsqrt.pop %v250
    %v256 = vrsqrt.pop %v251
    %v257 = vmul.f32 %v217, %v252
    %v258 = vmul.f32 %v218, %v253
    %v259 = vmul.f32 %v219, %v254
    %v260 = vmul.f32 %v220, %v255
    %v261 = vmul.f32 %v221, %v256
    %v263 = vlaneseq
    %v264 = vshrl.u32 %v263, 7
    %v265 = vsub.s32 0, %v264
    %v266 = vrot.slane %v192, %v265
    %v268 = vmul.f32 %v257, %v266
    %v269 = vmul.f32 %v258, %v266
    %v270 = vmul.f32 %v259, %v266
    %v271 = vmul.f32 %v260, %v266
    %v272 = vmul.f32 %v261, %v266
    %v274 = vlaneseq
    %v275 = vshrl.u32 %v274, 7
    %v276 = vsub.s32 0, %v275
    %v277 = vrot.slane %v193, %v276
    %v279 = vadd.f32 %v268, %v277
    %v280 = vadd.f32 %v269, %v277
    %v281 = vadd.f32 %v270, %v277
    %v282 = vadd.f32 %v271, %v277
    %v283 = vadd.f32 %v272, %v277
    %v284 = vld [vmem:[%s6] sm:$0xff]
    %v285 = vld [vmem:[%s6 + $0x8] sm:$0xff]
    %v286 = vld [vmem:[%s6 + $0x10] sm:$0xff]
    %v287 = vld [vmem:[%s6 + $0x18] sm:$0xff]
    %v289 = vsel %vm194, %v279, 0
    %v292 = vsel %vm194, %v280, 0
    %v295 = vsel %vm194, %v281, 0
    %v298 = vsel %vm194, %v282, 0
    %v301 = vsel %vm194, %v283, 0
    %303 = vmatprep.subr.mxu0 0.0
    %304 = vmatpush1.msra.mxu0 0.0
    %305 = vmatprep.subr.mxu0 0.0
    %306 = vmatpush1.msra.mxu0 0.0
    %307 = vmatprep.subr.mxu0 0.0
    %308 = vmatpush1.msra.mxu0 0.0
    %309 = vmatprep.subr.mxu0 0.0
    %310 = vmatpush1.msra.mxu0 0.0
    %311 = vmatprep.subr.mxu0 0.0
    %312 = vmatpush1.msra.mxu0 0.0
    %313 = vmatprep.subr.mxu0 0.0
    %314 = vmatpush1.msra.mxu0 0.0
    %315 = vmatprep.subr.mxu0 0.0
    %316 = vmatpush1.msra.mxu0 0.0
    %317 = vmatprep.subr.mxu0 0.0
    %318 = vmatpush1.msra.mxu0 0.0
    %319 = vmatprep.subr.mxu0 0.0
    %320 = vmatpush1.msra.mxu0 0.0
    %321 = vmatprep.subr.mxu0 0.0
    %322 = vmatpush1.msra.mxu0 0.0
    %323 = vmatprep.subr.mxu0 0.0
    %324 = vmatpush1.msra.mxu0 0.0
    %325 = vmatprep.subr.mxu0 0.0
    %326 = vmatpush1.msra.mxu0 0.0
    %327 = vmatprep.subr.mxu0 0.0
    %328 = vmatpush1.msra.mxu0 %v287
    %329 = vmatprep.subr.mxu0 0.0
    %330 = vmatpush1.msra.mxu0 %v286
    %331 = vmatprep.subr.mxu0 0.0
    %332 = vmatpush1.msra.mxu0 %v285
    %333 = vmatprep.subr.mxu0 0.0
    %334 = vmatpush1.msra.mxu0 %v284
    %335 = vmatprep.subr.mxu0 0.0
    %336 = vmatpush2.msra.mxu0 0.0
    %337 = vmatprep.subr.mxu0 0.0
    %338 = vmatpush2.msra.mxu0 0.0
    %339 = vmatprep.subr.mxu0 0.0
    %340 = vmatpush2.msra.mxu0 0.0
    %341 = vmatprep.subr.mxu0 0.0
    %342 = vmatpush2.msra.mxu0 0.0
    %343 = vmatprep.subr.mxu0 0.0
    %344 = vmatpush2.msra.mxu0 0.0
    %345 = vmatprep.subr.mxu0 0.0
    %346 = vmatpush2.msra.mxu0 0.0
    %347 = vmatprep.subr.mxu0 0.0
    %348 = vmatpush2.msra.mxu0 0.0
    %349 = vmatprep.subr.mxu0 0.0
    %350 = vmatpush2.msra.mxu0 0.0
    %351 = vmatprep.subr.mxu0 0.0
    %352 = vmatpush2.msra.mxu0 0.0
    %353 = vmatprep.subr.mxu0 0.0
    %354 = vmatpush2.msra.mxu0 0.0
    %355 = vmatprep.subr.mxu0 0.0
    %356 = vmatpush2.msra.mxu0 0.0
    %357 = vmatprep.subr.mxu0 0.0
    %358 = vmatpush2.msra.mxu0 0.0
    %359 = vmatprep.subr.mxu0 0.0
    %360 = vmatpush2.msra.mxu0 0.0
    %361 = vmatprep.subr.mxu0 0.0
    %362 = vmatpush2.msra.mxu0 0.0
    %363 = vmatprep.subr.mxu0 0.0
    %364 = vmatpush2.msra.mxu0 0.0
    %365 = vmatprep.subr.mxu0 0.0
    %366 = vmatpush2.msra.mxu0 0.0
    %367 = vmatprep.mubr.f32.mxu0 0.0
    %368 = vmatmul.mubr.f32.gmra.mxu0 %v289
    %v369 = vpop.f32.mrf.mxu0
    %v370 = vadd.f32 0.0, %v369
    %v371 = vpop.f32.mrf.mxu0
    %372 = vmatprep.mubr.f32.mxu0 0.0
    %373 = vmatmul.mubr.f32.gmra.mxu0 %v292
    %v374 = vpop.f32.mrf.mxu0
    %v375 = vadd.f32 0.0, %v374
    %v376 = vpop.f32.mrf.mxu0
    %377 = vmatprep.mubr.f32.mxu0 0.0
    %378 = vmatmul.mubr.f32.gmra.mxu0 %v295
    %v379 = vpop.f32.mrf.mxu0
    %v380 = vadd.f32 0.0, %v379
    %v381 = vpop.f32.mrf.mxu0
    %382 = vmatprep.mubr.f32.mxu0 0.0
    %383 = vmatmul.mubr.f32.gmra.mxu0 %v298
    %v384 = vpop.f32.mrf.mxu0
    %v385 = vadd.f32 0.0, %v384
    %v386 = vpop.f32.mrf.mxu0
    %387 = vmatprep.mubr.f32.mxu0 0.0
    %388 = vmatmul.mubr.f32.gmra.mxu0 %v301
    %v389 = vpop.f32.mrf.mxu0
    %v390 = vadd.f32 0.0, %v389
    %v391 = vpop.f32.mrf.mxu0
    %392 = vdwg.mxu0
    %398 = vrot.lane.b32.xlu0 %v370, 120
    %v399 = vpop.permute.xlu0 %398
    %400 = vrot.lane.b32.xlu0 %v375, 120
    %v401 = vpop.permute.xlu0 %400
    %402 = vrot.lane.b32.xlu0 %v380, 120
    %v403 = vpop.permute.xlu0 %402
    %404 = vrot.lane.b32.xlu0 %v385, 120
    %v405 = vpop.permute.xlu0 %404
    %406 = vrot.lane.b32.xlu0 %v390, 120
    %v407 = vpop.permute.xlu0 %406
    %408 = vrot.lane.b32.xlu0 %v370, 112
    %v409 = vpop.permute.xlu0 %408
    %410 = vrot.lane.b32.xlu0 %v375, 112
    %v411 = vpop.permute.xlu0 %410
    %412 = vrot.lane.b32.xlu0 %v380, 112
    %v413 = vpop.permute.xlu0 %412
    %414 = vrot.lane.b32.xlu0 %v385, 112
    %v415 = vpop.permute.xlu0 %414
    %416 = vrot.lane.b32.xlu0 %v390, 112
    %v417 = vpop.permute.xlu0 %416
    %418 = vrot.lane.b32.xlu0 %v370, 104
    %v419 = vpop.permute.xlu0 %418
    %420 = vrot.lane.b32.xlu0 %v375, 104
    %v421 = vpop.permute.xlu0 %420
    %422 = vrot.lane.b32.xlu0 %v380, 104
    %v423 = vpop.permute.xlu0 %422
    %424 = vrot.lane.b32.xlu0 %v385, 104
    %v425 = vpop.permute.xlu0 %424
    %426 = vrot.lane.b32.xlu0 %v390, 104
    %v427 = vpop.permute.xlu0 %426
    %428 = vrot.lane.b32.xlu0 %v370, 96
    %v429 = vpop.permute.xlu0 %428
    %430 = vrot.lane.b32.xlu0 %v375, 96
    %v431 = vpop.permute.xlu0 %430
    %432 = vrot.lane.b32.xlu0 %v380, 96
    %v433 = vpop.permute.xlu0 %432
    %434 = vrot.lane.b32.xlu0 %v385, 96
    %v435 = vpop.permute.xlu0 %434
    %436 = vrot.lane.b32.xlu0 %v390, 96
    %v437 = vpop.permute.xlu0 %436
    %vm438 = vcmask 64512
    %v439 = vsel %vm438, %v370, 0
    %v441 = vsel %vm438, %v375, 0
    %v443 = vsel %vm438, %v380, 0
    %v445 = vsel %vm438, %v385, 0
    %v447 = vsel %vm438, %v390, 0
    %v449 = vsel %vm438, %v429, 0
    %v451 = vsel %vm438, %v431, 0
    %v453 = vsel %vm438, %v433, 0
    %v455 = vsel %vm438, %v435, 0
    %v457 = vsel %vm438, %v437, 0
    %459 = vmatprep.subr.mxu0 0.0
    %460 = vmatpush1.xpose.msra.mxu0 0.0
    %461 = vmatprep.subr.mxu0 0.0
    %462 = vmatpush1.xpose.msra.mxu0 0.0
    %463 = vmatprep.subr.mxu0 0.0
    %464 = vmatpush1.xpose.msra.mxu0 0.0
    %465 = vmatprep.subr.mxu0 0.0
    %466 = vmatpush1.xpose.msra.mxu0 0.0
    %467 = vmatprep.subr.mxu0 0.0
    %468 = vmatpush1.xpose.msra.mxu0 0.0
    %469 = vmatprep.subr.mxu0 0.0
    %470 = vmatpush1.xpose.msra.mxu0 0.0
    %471 = vmatprep.subr.mxu0 0.0
    %472 = vmatpush1.xpose.msra.mxu0 0.0
    %473 = vmatprep.subr.mxu0 0.0
    %474 = vmatpush1.xpose.msra.mxu0 0.0
    %475 = vmatprep.subr.mxu0 0.0
    %476 = vmatpush1.xpose.msra.mxu0 0.0
    %477 = vmatprep.subr.mxu0 0.0
    %478 = vmatpush1.xpose.msra.mxu0 0.0
    %479 = vmatprep.subr.mxu0 0.0
    %480 = vmatpush1.xpose.msra.mxu0 0.0
    %481 = vmatprep.subr.mxu0 0.0
    %482 = vmatpush1.xpose.msra.mxu0 %v457
    %483 = vmatprep.subr.mxu0 0.0
    %484 = vmatpush1.xpose.msra.mxu0 %v455
    %485 = vmatprep.subr.mxu0 0.0
    %486 = vmatpush1.xpose.msra.mxu0 %v453
    %487 = vmatprep.subr.mxu0 0.0
    %488 = vmatpush1.xpose.msra.mxu0 %v451
    %489 = vmatprep.subr.mxu0 0.0
    %490 = vmatpush1.xpose.msra.mxu0 %v449
    %491 = vmatprep.subr.mxu0 0.0
    %492 = vmatpush2.xpose.msra.mxu0 0.0
    %493 = vmatprep.subr.mxu0 0.0
    %494 = vmatpush2.xpose.msra.mxu0 0.0
    %495 = vmatprep.subr.mxu0 0.0
    %496 = vmatpush2.xpose.msra.mxu0 0.0
    %497 = vmatprep.subr.mxu0 0.0
    %498 = vmatpush2.xpose.msra.mxu0 0.0
    %499 = vmatprep.subr.mxu0 0.0
    %500 = vmatpush2.xpose.msra.mxu0 0.0
    %501 = vmatprep.subr.mxu0 0.0
    %502 = vmatpush2.xpose.msra.mxu0 0.0
    %503 = vmatprep.subr.mxu0 0.0
    %504 = vmatpush2.xpose.msra.mxu0 0.0
    %505 = vmatprep.subr.mxu0 0.0
    %506 = vmatpush2.xpose.msra.mxu0 0.0
    %507 = vmatprep.subr.mxu0 0.0
    %508 = vmatpush2.xpose.msra.mxu0 0.0
    %509 = vmatprep.subr.mxu0 0.0
    %510 = vmatpush2.xpose.msra.mxu0 0.0
    %511 = vmatprep.subr.mxu0 0.0
    %512 = vmatpush2.xpose.msra.mxu0 0.0
    %513 = vmatprep.subr.mxu0 0.0
    %514 = vmatpush2.xpose.msra.mxu0 0.0
    %515 = vmatprep.subr.mxu0 0.0
    %516 = vmatpush2.xpose.msra.mxu0 0.0
    %517 = vmatprep.subr.mxu0 0.0
    %518 = vmatpush2.xpose.msra.mxu0 0.0
    %519 = vmatprep.subr.mxu0 0.0
    %520 = vmatpush2.xpose.msra.mxu0 0.0
    %521 = vmatprep.subr.mxu0 0.0
    %522 = vmatpush2.xpose.msra.mxu0 0.0
    %523 = vmatprep.mubr.f32.mxu0 0.0
    %524 = vmatmul.mubr.f32.gmra.mxu0 %v439
    %v525 = vpop.f32.mrf.mxu0
    %v526 = vadd.f32 %v187, %v525
    %v527 = vpop.f32.mrf.mxu0
    %528 = vmatprep.mubr.f32.mxu0 0.0
    %529 = vmatmul.mubr.f32.gmra.mxu0 %v441
    %v530 = vpop.f32.mrf.mxu0
    %v531 = vadd.f32 %v188, %v530
    %v532 = vpop.f32.mrf.mxu0
    %533 = vmatprep.mubr.f32.mxu0 0.0
    %534 = vmatmul.mubr.f32.gmra.mxu0 %v443
    %v535 = vpop.f32.mrf.mxu0
    %v536 = vadd.f32 %v189, %v535
    %v537 = vpop.f32.mrf.mxu0
    %538 = vmatprep.mubr.f32.mxu0 0.0
    %539 = vmatmul.mubr.f32.gmra.mxu0 %v445
    %v540 = vpop.f32.mrf.mxu0
    %v541 = vadd.f32 %v190, %v540
    %v542 = vpop.f32.mrf.mxu0
    %543 = vmatprep.mubr.f32.mxu0 0.0
    %544 = vmatmul.mubr.f32.gmra.mxu0 %v447
    %v545 = vpop.f32.mrf.mxu0
    %v546 = vadd.f32 %v191, %v545
    %v547 = vpop.f32.mrf.mxu0
    %548 = vdwg.mxu0
    %549 = vrot.lane.b32.xlu0 %v399, 96
    %v550 = vpop.permute.xlu0 %549
    %551 = vrot.lane.b32.xlu0 %v401, 96
    %v552 = vpop.permute.xlu0 %551
    %553 = vrot.lane.b32.xlu0 %v403, 96
    %v554 = vpop.permute.xlu0 %553
    %555 = vrot.lane.b32.xlu0 %v405, 96
    %v556 = vpop.permute.xlu0 %555
    %557 = vrot.lane.b32.xlu0 %v407, 96
    %v558 = vpop.permute.xlu0 %557
    %v559 = vsel %vm438, %v399, 0
    %v561 = vsel %vm438, %v401, 0
    %v563 = vsel %vm438, %v403, 0
    %v565 = vsel %vm438, %v405, 0
    %v567 = vsel %vm438, %v407, 0
    %v569 = vsel %vm438, %v550, 0
    %v571 = vsel %vm438, %v552, 0
    %v573 = vsel %vm438, %v554, 0
    %v575 = vsel %vm438, %v556, 0
    %v577 = vsel %vm438, %v558, 0
    %579 = vmatprep.subr.mxu0 0.0
    %580 = vmatpush1.xpose.msra.mxu0 0.0
    %581 = vmatprep.subr.mxu0 0.0
    %582 = vmatpush1.xpose.msra.mxu0 0.0
    %583 = vmatprep.subr.mxu0 0.0
    %584 = vmatpush1.xpose.msra.mxu0 0.0
    %585 = vmatprep.subr.mxu0 0.0
    %586 = vmatpush1.xpose.msra.mxu0 0.0
    %587 = vmatprep.subr.mxu0 0.0
    %588 = vmatpush1.xpose.msra.mxu0 0.0
    %589 = vmatprep.subr.mxu0 0.0
    %590 = vmatpush1.xpose.msra.mxu0 0.0
    %591 = vmatprep.subr.mxu0 0.0
    %592 = vmatpush1.xpose.msra.mxu0 0.0
    %593 = vmatprep.subr.mxu0 0.0
    %594 = vmatpush1.xpose.msra.mxu0 0.0
    %595 = vmatprep.subr.mxu0 0.0
    %596 = vmatpush1.xpose.msra.mxu0 0.0
    %597 = vmatprep.subr.mxu0 0.0
    %598 = vmatpush1.xpose.msra.mxu0 0.0
    %599 = vmatprep.subr.mxu0 0.0
    %600 = vmatpush1.xpose.msra.mxu0 0.0
    %601 = vmatprep.subr.mxu0 0.0
    %602 = vmatpush1.xpose.msra.mxu0 %v577
    %603 = vmatprep.subr.mxu0 0.0
    %604 = vmatpush1.xpose.msra.mxu0 %v575
    %605 = vmatprep.subr.mxu0 0.0
    %606 = vmatpush1.xpose.msra.mxu0 %v573
    %607 = vmatprep.subr.mxu0 0.0
    %608 = vmatpush1.xpose.msra.mxu0 %v571
    %609 = vmatprep.subr.mxu0 0.0
    %610 = vmatpush1.xpose.msra.mxu0 %v569
    %611 = vmatprep.subr.mxu0 0.0
    %612 = vmatpush2.xpose.msra.mxu0 0.0
    %613 = vmatprep.subr.mxu0 0.0
    %614 = vmatpush2.xpose.msra.mxu0 0.0
    %615 = vmatprep.subr.mxu0 0.0
    %616 = vmatpush2.xpose.msra.mxu0 0.0
    %617 = vmatprep.subr.mxu0 0.0
    %618 = vmatpush2.xpose.msra.mxu0 0.0
    %619 = vmatprep.subr.mxu0 0.0
    %620 = vmatpush2.xpose.msra.mxu0 0.0
    %621 = vmatprep.subr.mxu0 0.0
    %622 = vmatpush2.xpose.msra.mxu0 0.0
    %623 = vmatprep.subr.mxu0 0.0
    %624 = vmatpush2.xpose.msra.mxu0 0.0
    %625 = vmatprep.subr.mxu0 0.0
    %626 = vmatpush2.xpose.msra.mxu0 0.0
    %627 = vmatprep.subr.mxu0 0.0
    %628 = vmatpush2.xpose.msra.mxu0 0.0
    %629 = vmatprep.subr.mxu0 0.0
    %630 = vmatpush2.xpose.msra.mxu0 0.0
    %631 = vmatprep.subr.mxu0 0.0
    %632 = vmatpush2.xpose.msra.mxu0 0.0
    %633 = vmatprep.subr.mxu0 0.0
    %634 = vmatpush2.xpose.msra.mxu0 0.0
    %635 = vmatprep.subr.mxu0 0.0
    %636 = vmatpush2.xpose.msra.mxu0 0.0
    %637 = vmatprep.subr.mxu0 0.0
    %638 = vmatpush2.xpose.msra.mxu0 0.0
    %639 = vmatprep.subr.mxu0 0.0
    %640 = vmatpush2.xpose.msra.mxu0 0.0
    %641 = vmatprep.subr.mxu0 0.0
    %642 = vmatpush2.xpose.msra.mxu0 0.0
    %643 = vmatprep.mubr.f32.mxu0 0.0
    %644 = vmatmul.mubr.f32.gmra.mxu0 %v559
    %v645 = vpop.f32.mrf.mxu0
    %v646 = vadd.f32 %v187, %v645
    %v647 = vpop.f32.mrf.mxu0
    %648 = vmatprep.mubr.f32.mxu0 0.0
    %649 = vmatmul.mubr.f32.gmra.mxu0 %v561
    %v650 = vpop.f32.mrf.mxu0
    %v651 = vadd.f32 %v188, %v650
    %v652 = vpop.f32.mrf.mxu0
    %653 = vmatprep.mubr.f32.mxu0 0.0
    %654 = vmatmul.mubr.f32.gmra.mxu0 %v563
    %v655 = vpop.f32.mrf.mxu0
    %v656 = vadd.f32 %v189, %v655
    %v657 = vpop.f32.mrf.mxu0
    %658 = vmatprep.mubr.f32.mxu0 0.0
    %659 = vmatmul.mubr.f32.gmra.mxu0 %v565
    %v660 = vpop.f32.mrf.mxu0
    %v661 = vadd.f32 %v190, %v660
    %v662 = vpop.f32.mrf.mxu0
    %663 = vmatprep.mubr.f32.mxu0 0.0
    %664 = vmatmul.mubr.f32.gmra.mxu0 %v567
    %v665 = vpop.f32.mrf.mxu0
    %v666 = vadd.f32 %v191, %v665
    %v667 = vpop.f32.mrf.mxu0
    %668 = vdwg.mxu0
    %669 = vrot.lane.b32.xlu0 %v409, 96
    %v670 = vpop.permute.xlu0 %669
    %671 = vrot.lane.b32.xlu0 %v411, 96
    %v672 = vpop.permute.xlu0 %671
    %673 = vrot.lane.b32.xlu0 %v413, 96
    %v674 = vpop.permute.xlu0 %673
    %675 = vrot.lane.b32.xlu0 %v415, 96
    %v676 = vpop.permute.xlu0 %675
    %677 = vrot.lane.b32.xlu0 %v417, 96
    %v678 = vpop.permute.xlu0 %677
    %v679 = vsel %vm438, %v409, 0
    %v681 = vsel %vm438, %v411, 0
    %v683 = vsel %vm438, %v413, 0
    %v685 = vsel %vm438, %v415, 0
    %v687 = vsel %vm438, %v417, 0
    %v689 = vsel %vm438, %v670, 0
    %v691 = vsel %vm438, %v672, 0
    %v693 = vsel %vm438, %v674, 0
    %v695 = vsel %vm438, %v676, 0
    %v697 = vsel %vm438, %v678, 0
    %699 = vmatprep.subr.mxu0 0.0
    %700 = vmatpush1.xpose.msra.mxu0 0.0
    %701 = vmatprep.subr.mxu0 0.0
    %702 = vmatpush1.xpose.msra.mxu0 0.0
    %703 = vmatprep.subr.mxu0 0.0
    %704 = vmatpush1.xpose.msra.mxu0 0.0
    %705 = vmatprep.subr.mxu0 0.0
    %706 = vmatpush1.xpose.msra.mxu0 0.0
    %707 = vmatprep.subr.mxu0 0.0
    %708 = vmatpush1.xpose.msra.mxu0 0.0
    %709 = vmatprep.subr.mxu0 0.0
    %710 = vmatpush1.xpose.msra.mxu0 0.0
    %711 = vmatprep.subr.mxu0 0.0
    %712 = vmatpush1.xpose.msra.mxu0 0.0
    %713 = vmatprep.subr.mxu0 0.0
    %714 = vmatpush1.xpose.msra.mxu0 0.0
    %715 = vmatprep.subr.mxu0 0.0
    %716 = vmatpush1.xpose.msra.mxu0 0.0
    %717 = vmatprep.subr.mxu0 0.0
    %718 = vmatpush1.xpose.msra.mxu0 0.0
    %719 = vmatprep.subr.mxu0 0.0
    %720 = vmatpush1.xpose.msra.mxu0 0.0
    %721 = vmatprep.subr.mxu0 0.0
    %722 = vmatpush1.xpose.msra.mxu0 %v697
    %723 = vmatprep.subr.mxu0 0.0
    %724 = vmatpush1.xpose.msra.mxu0 %v695
    %725 = vmatprep.subr.mxu0 0.0
    %726 = vmatpush1.xpose.msra.mxu0 %v693
    %727 = vmatprep.subr.mxu0 0.0
    %728 = vmatpush1.xpose.msra.mxu0 %v691
    %729 = vmatprep.subr.mxu0 0.0
    %730 = vmatpush1.xpose.msra.mxu0 %v689
    %731 = vmatprep.subr.mxu0 0.0
    %732 = vmatpush2.xpose.msra.mxu0 0.0
    %733 = vmatprep.subr.mxu0 0.0
    %734 = vmatpush2.xpose.msra.mxu0 0.0
    %735 = vmatprep.subr.mxu0 0.0
    %736 = vmatpush2.xpose.msra.mxu0 0.0
    %737 = vmatprep.subr.mxu0 0.0
    %738 = vmatpush2.xpose.msra.mxu0 0.0
    %739 = vmatprep.subr.mxu0 0.0
    %740 = vmatpush2.xpose.msra.mxu0 0.0
    %741 = vmatprep.subr.mxu0 0.0
    %742 = vmatpush2.xpose.msra.mxu0 0.0
    %743 = vmatprep.subr.mxu0 0.0
    %744 = vmatpush2.xpose.msra.mxu0 0.0
    %745 = vmatprep.subr.mxu0 0.0
    %746 = vmatpush2.xpose.msra.mxu0 0.0
    %747 = vmatprep.subr.mxu0 0.0
    %748 = vmatpush2.xpose.msra.mxu0 0.0
    %749 = vmatprep.subr.mxu0 0.0
    %750 = vmatpush2.xpose.msra.mxu0 0.0
    %751 = vmatprep.subr.mxu0 0.0
    %752 = vmatpush2.xpose.msra.mxu0 0.0
    %753 = vmatprep.subr.mxu0 0.0
    %754 = vmatpush2.xpose.msra.mxu0 0.0
    %755 = vmatprep.subr.mxu0 0.0
    %756 = vmatpush2.xpose.msra.mxu0 0.0
    %757 = vmatprep.subr.mxu0 0.0
    %758 = vmatpush2.xpose.msra.mxu0 0.0
    %759 = vmatprep.subr.mxu0 0.0
    %760 = vmatpush2.xpose.msra.mxu0 0.0
    %761 = vmatprep.subr.mxu0 0.0
    %762 = vmatpush2.xpose.msra.mxu0 0.0
    %763 = vmatprep.mubr.f32.mxu0 0.0
    %764 = vmatmul.mubr.f32.gmra.mxu0 %v679
    %v765 = vpop.f32.mrf.mxu0
    %v766 = vadd.f32 %v187, %v765
    %v767 = vpop.f32.mrf.mxu0
    %768 = vmatprep.mubr.f32.mxu0 0.0
    %769 = vmatmul.mubr.f32.gmra.mxu0 %v681
    %v770 = vpop.f32.mrf.mxu0
    %v771 = vadd.f32 %v188, %v770
    %v772 = vpop.f32.mrf.mxu0
    %773 = vmatprep.mubr.f32.mxu0 0.0
    %774 = vmatmul.mubr.f32.gmra.mxu0 %v683
    %v775 = vpop.f32.mrf.mxu0
    %v776 = vadd.f32 %v189, %v775
    %v777 = vpop.f32.mrf.mxu0
    %778 = vmatprep.mubr.f32.mxu0 0.0
    %779 = vmatmul.mubr.f32.gmra.mxu0 %v685
    %v780 = vpop.f32.mrf.mxu0
    %v781 = vadd.f32 %v190, %v780
    %v782 = vpop.f32.mrf.mxu0
    %783 = vmatprep.mubr.f32.mxu0 0.0
    %784 = vmatmul.mubr.f32.gmra.mxu0 %v687
    %v785 = vpop.f32.mrf.mxu0
    %v786 = vadd.f32 %v191, %v785
    %v787 = vpop.f32.mrf.mxu0
    %788 = vdwg.mxu0
    %789 = vrot.lane.b32.xlu0 %v419, 96
    %v790 = vpop.permute.xlu0 %789
    %791 = vrot.lane.b32.xlu0 %v421, 96
    %v792 = vpop.permute.xlu0 %791
    %793 = vrot.lane.b32.xlu0 %v423, 96
    %v794 = vpop.permute.xlu0 %793
    %795 = vrot.lane.b32.xlu0 %v425, 96
    %v796 = vpop.permute.xlu0 %795
    %797 = vrot.lane.b32.xlu0 %v427, 96
    %v798 = vpop.permute.xlu0 %797
    %v799 = vsel %vm438, %v419, 0
    %v801 = vsel %vm438, %v421, 0
    %v803 = vsel %vm438, %v423, 0
    %v805 = vsel %vm438, %v425, 0
    %v807 = vsel %vm438, %v427, 0
    %v809 = vsel %vm438, %v790, 0
    %v811 = vsel %vm438, %v792, 0
    %v813 = vsel %vm438, %v794, 0
    %v815 = vsel %vm438, %v796, 0
    %v817 = vsel %vm438, %v798, 0
    %819 = vmatprep.subr.mxu0 0.0
    %820 = vmatpush1.xpose.msra.mxu0 0.0
    %821 = vmatprep.subr.mxu0 0.0
    %822 = vmatpush1.xpose.msra.mxu0 0.0
    %823 = vmatprep.subr.mxu0 0.0
    %824 = vmatpush1.xpose.msra.mxu0 0.0
    %825 = vmatprep.subr.mxu0 0.0
    %826 = vmatpush1.xpose.msra.mxu0 0.0
    %827 = vmatprep.subr.mxu0 0.0
    %828 = vmatpush1.xpose.msra.mxu0 0.0
    %829 = vmatprep.subr.mxu0 0.0
    %830 = vmatpush1.xpose.msra.mxu0 0.0
    %831 = vmatprep.subr.mxu0 0.0
    %832 = vmatpush1.xpose.msra.mxu0 0.0
    %833 = vmatprep.subr.mxu0 0.0
    %834 = vmatpush1.xpose.msra.mxu0 0.0
    %835 = vmatprep.subr.mxu0 0.0
    %836 = vmatpush1.xpose.msra.mxu0 0.0
    %837 = vmatprep.subr.mxu0 0.0
    %838 = vmatpush1.xpose.msra.mxu0 0.0
    %839 = vmatprep.subr.mxu0 0.0
    %840 = vmatpush1.xpose.msra.mxu0 0.0
    %841 = vmatprep.subr.mxu0 0.0
    %842 = vmatpush1.xpose.msra.mxu0 %v817
    %843 = vmatprep.subr.mxu0 0.0
    %844 = vmatpush1.xpose.msra.mxu0 %v815
    %845 = vmatprep.subr.mxu0 0.0
    %846 = vmatpush1.xpose.msra.mxu0 %v813
    %847 = vmatprep.subr.mxu0 0.0
    %848 = vmatpush1.xpose.msra.mxu0 %v811
    %849 = vmatprep.subr.mxu0 0.0
    %850 = vmatpush1.xpose.msra.mxu0 %v809
    %851 = vmatprep.subr.mxu0 0.0
    %852 = vmatpush2.xpose.msra.mxu0 0.0
    %853 = vmatprep.subr.mxu0 0.0
    %854 = vmatpush2.xpose.msra.mxu0 0.0
    %855 = vmatprep.subr.mxu0 0.0
    %856 = vmatpush2.xpose.msra.mxu0 0.0
    %857 = vmatprep.subr.mxu0 0.0
    %858 = vmatpush2.xpose.msra.mxu0 0.0
    %859 = vmatprep.subr.mxu0 0.0
    %860 = vmatpush2.xpose.msra.mxu0 0.0
    %861 = vmatprep.subr.mxu0 0.0
    %862 = vmatpush2.xpose.msra.mxu0 0.0
    %863 = vmatprep.subr.mxu0 0.0
    %864 = vmatpush2.xpose.msra.mxu0 0.0
    %865 = vmatprep.subr.mxu0 0.0
    %866 = vmatpush2.xpose.msra.mxu0 0.0
    %867 = vmatprep.subr.mxu0 0.0
    %868 = vmatpush2.xpose.msra.mxu0 0.0
    %869 = vmatprep.subr.mxu0 0.0
    %870 = vmatpush2.xpose.msra.mxu0 0.0
    %871 = vmatprep.subr.mxu0 0.0
    %872 = vmatpush2.xpose.msra.mxu0 0.0
    %873 = vmatprep.subr.mxu0 0.0
    %874 = vmatpush2.xpose.msra.mxu0 0.0
    %875 = vmatprep.subr.mxu0 0.0
    %876 = vmatpush2.xpose.msra.mxu0 0.0
    %877 = vmatprep.subr.mxu0 0.0
    %878 = vmatpush2.xpose.msra.mxu0 0.0
    %879 = vmatprep.subr.mxu0 0.0
    %880 = vmatpush2.xpose.msra.mxu0 0.0
    %881 = vmatprep.subr.mxu0 0.0
    %882 = vmatpush2.xpose.msra.mxu0 0.0
    %883 = vmatprep.mubr.f32.mxu0 0.0
    %884 = vmatmul.mubr.f32.gmra.mxu0 %v799
    %v885 = vpop.f32.mrf.mxu0
    %v886 = vadd.f32 %v187, %v885
    %v887 = vpop.f32.mrf.mxu0
    %888 = vmatprep.mubr.f32.mxu0 0.0
    %889 = vmatmul.mubr.f32.gmra.mxu0 %v801
    %v890 = vpop.f32.mrf.mxu0
    %v891 = vadd.f32 %v188, %v890
    %v892 = vpop.f32.mrf.mxu0
    %893 = vmatprep.mubr.f32.mxu0 0.0
    %894 = vmatmul.mubr.f32.gmra.mxu0 %v803
    %v895 = vpop.f32.mrf.mxu0
    %v896 = vadd.f32 %v189, %v895
    %v897 = vpop.f32.mrf.mxu0
    %898 = vmatprep.mubr.f32.mxu0 0.0
    %899 = vmatmul.mubr.f32.gmra.mxu0 %v805
    %v900 = vpop.f32.mrf.mxu0
    %v901 = vadd.f32 %v190, %v900
    %v902 = vpop.f32.mrf.mxu0
    %903 = vmatprep.mubr.f32.mxu0 0.0
    %904 = vmatmul.mubr.f32.gmra.mxu0 %v807
    %v905 = vpop.f32.mrf.mxu0
    %v906 = vadd.f32 %v191, %v905
    %v907 = vpop.f32.mrf.mxu0
    %908 = vdwg.mxu0
    %vm909 = vcmask 277504
    %v910 = vsel %vm909, %v526, -inf
    %911 = vmax.xlane.f32.xlu0 %v910
    %v912 = vpop.xlane.xlu0 %911
    %v913 = vsel %vm909, %v531, -inf
    %914 = vmax.xlane.f32.xlu0 %v913
    %v915 = vpop.xlane.xlu0 %914
    %v916 = vsel %vm909, %v536, -inf
    %917 = vmax.xlane.f32.xlu0 %v916
    %v918 = vpop.xlane.xlu0 %917
    %v919 = vsel %vm909, %v541, -inf
    %920 = vmax.xlane.f32.xlu0 %v919
    %v921 = vpop.xlane.xlu0 %920
    %vm922 = vcmask 271360
    %v923 = vsel %vm922, %v546, -inf
    %924 = vmax.xlane.f32.xlu0 %v923
    %v925 = vpop.xlane.xlu0 %924
    %v926 = vsel %vm909, %v646, -inf
    %927 = vmax.xlane.f32.xlu0 %v926
    %v928 = vpop.xlane.xlu0 %927
    %v929 = vsel %vm909, %v651, -inf
    %930 = vmax.xlane.f32.xlu0 %v929
    %v931 = vpop.xlane.xlu0 %930
    %v932 = vsel %vm909, %v656, -inf
    %933 = vmax.xlane.f32.xlu0 %v932
    %v934 = vpop.xlane.xlu0 %933
    %v935 = vsel %vm909, %v661, -inf
    %936 = vmax.xlane.f32.xlu0 %v935
    %v937 = vpop.xlane.xlu0 %936
    %v938 = vsel %vm922, %v666, -inf
    %939 = vmax.xlane.f32.xlu0 %v938
    %v940 = vpop.xlane.xlu0 %939
    %v941 = vsel %vm909, %v766, -inf
    %942 = vmax.xlane.f32.xlu0 %v941
    %v943 = vpop.xlane.xlu0 %942
    %v944 = vsel %vm909, %v771, -inf
    %945 = vmax.xlane.f32.xlu0 %v944
    %v946 = vpop.xlane.xlu0 %945
    %v947 = vsel %vm909, %v776, -inf
    %948 = vmax.xlane.f32.xlu0 %v947
    %v949 = vpop.xlane.xlu0 %948
    %v950 = vsel %vm909, %v781, -inf
    %951 = vmax.xlane.f32.xlu0 %v950
    %v952 = vpop.xlane.xlu0 %951
    %v953 = vsel %vm922, %v786, -inf
    %954 = vmax.xlane.f32.xlu0 %v953
    %v955 = vpop.xlane.xlu0 %954
    %v956 = vsel %vm909, %v886, -inf
    %957 = vmax.xlane.f32.xlu0 %v956
    %v958 = vpop.xlane.xlu0 %957
    %v959 = vsel %vm909, %v891, -inf
    %960 = vmax.xlane.f32.xlu0 %v959
    %v961 = vpop.xlane.xlu0 %960
    %v962 = vsel %vm909, %v896, -inf
    %963 = vmax.xlane.f32.xlu0 %v962
    %v964 = vpop.xlane.xlu0 %963
    %v965 = vsel %vm909, %v901, -inf
    %966 = vmax.xlane.f32.xlu0 %v965
    %v967 = vpop.xlane.xlu0 %966
    %v968 = vsel %vm922, %v906, -inf
    %969 = vmax.xlane.f32.xlu0 %v968
    %v970 = vpop.xlane.xlu0 %969
    %v971 = vsub.f32 %v526, %v912
    %v972 = vsub.f32 %v531, %v915
    %v973 = vsub.f32 %v536, %v918
    %v974 = vsub.f32 %v541, %v921
    %v975 = vsub.f32 %v546, %v925
    %v976 = vsub.f32 %v646, %v928
    %v977 = vsub.f32 %v651, %v931
    %v978 = vsub.f32 %v656, %v934
    %v979 = vsub.f32 %v661, %v937
    %v980 = vsub.f32 %v666, %v940
    %v981 = vsub.f32 %v766, %v943
    %v982 = vsub.f32 %v771, %v946
    %v983 = vsub.f32 %v776, %v949
    %v984 = vsub.f32 %v781, %v952
    %v985 = vsub.f32 %v786, %v955
    %v986 = vsub.f32 %v886, %v958
    %v987 = vsub.f32 %v891, %v961
    %v988 = vsub.f32 %v896, %v964
    %v989 = vsub.f32 %v901, %v967
    %v990 = vsub.f32 %v906, %v970
    %v991 = vmul.f32 %v971, 1.442695
    %v992 = vpow.pop %v991
    %v993 = vmul.f32 %v972, 1.442695
    %v994 = vpow.pop %v993
    %v995 = vmul.f32 %v973, 1.442695
    %v996 = vpow.pop %v995
    %v997 = vmul.f32 %v974, 1.442695
    %v998 = vpow.pop %v997
    %v999 = vmul.f32 %v975, 1.442695
    %v1000 = vpow.pop %v999
    %v1001 = vmul.f32 %v976, 1.442695
    %v1002 = vpow.pop %v1001
    %v1003 = vmul.f32 %v977, 1.442695
    %v1004 = vpow.pop %v1003
    %v1005 = vmul.f32 %v978, 1.442695
    %v1006 = vpow.pop %v1005
    %v1007 = vmul.f32 %v979, 1.442695
    %v1008 = vpow.pop %v1007
    %v1009 = vmul.f32 %v980, 1.442695
    %v1010 = vpow.pop %v1009
    %v1011 = vmul.f32 %v981, 1.442695
    %v1012 = vpow.pop %v1011
    %v1013 = vmul.f32 %v982, 1.442695
    %v1014 = vpow.pop %v1013
    %v1015 = vmul.f32 %v983, 1.442695
    %v1016 = vpow.pop %v1015
    %v1017 = vmul.f32 %v984, 1.442695
    %v1018 = vpow.pop %v1017
    %v1019 = vmul.f32 %v985, 1.442695
    %v1020 = vpow.pop %v1019
    %v1021 = vmul.f32 %v986, 1.442695
    %v1022 = vpow.pop %v1021
    %v1023 = vmul.f32 %v987, 1.442695
    %v1024 = vpow.pop %v1023
    %v1025 = vmul.f32 %v988, 1.442695
    %v1026 = vpow.pop %v1025
    %v1027 = vmul.f32 %v989, 1.442695
    %v1028 = vpow.pop %v1027
    %v1029 = vmul.f32 %v990, 1.442695
    %v1030 = vpow.pop %v1029
    %v1031 = vsel %vm909, %v992, 0.0
    %1032 = vadd.xlane.f32.xlu0 %v1031
    %v1033 = vpop.xlane.xlu0 %1032
    %v1034 = vsel %vm909, %v994, 0.0
    %1035 = vadd.xlane.f32.xlu0 %v1034
    %v1036 = vpop.xlane.xlu0 %1035
    %v1037 = vsel %vm909, %v996, 0.0
    %1038 = vadd.xlane.f32.xlu0 %v1037
    %v1039 = vpop.xlane.xlu0 %1038
    %v1040 = vsel %vm909, %v998, 0.0
    %1041 = vadd.xlane.f32.xlu0 %v1040
    %v1042 = vpop.xlane.xlu0 %1041
    %v1043 = vsel %vm922, %v1000, 0.0
    %1044 = vadd.xlane.f32.xlu0 %v1043
    %v1045 = vpop.xlane.xlu0 %1044
    %v1046 = vsel %vm909, %v1002, 0.0
    %1047 = vadd.xlane.f32.xlu0 %v1046
    %v1048 = vpop.xlane.xlu0 %1047
    %v1049 = vsel %vm909, %v1004, 0.0
    %1050 = vadd.xlane.f32.xlu0 %v1049
    %v1051 = vpop.xlane.xlu0 %1050
    %v1052 = vsel %vm909, %v1006, 0.0
    %1053 = vadd.xlane.f32.xlu0 %v1052
    %v1054 = vpop.xlane.xlu0 %1053
    %v1055 = vsel %vm909, %v1008, 0.0
    %1056 = vadd.xlane.f32.xlu0 %v1055
    %v1057 = vpop.xlane.xlu0 %1056
    %v1058 = vsel %vm922, %v1010, 0.0
    %1059 = vadd.xlane.f32.xlu0 %v1058
    %v1060 = vpop.xlane.xlu0 %1059
    %v1061 = vsel %vm909, %v1012, 0.0
    %1062 = vadd.xlane.f32.xlu0 %v1061
    %v1063 = vpop.xlane.xlu0 %1062
    %v1064 = vsel %vm909, %v1014, 0.0
    %1065 = vadd.xlane.f32.xlu0 %v1064
    %v1066 = vpop.xlane.xlu0 %1065
    %v1067 = vsel %vm909, %v1016, 0.0
    %1068 = vadd.xlane.f32.xlu0 %v1067
    %v1069 = vpop.xlane.xlu0 %1068
    %v1070 = vsel %vm909, %v1018, 0.0
    %1071 = vadd.xlane.f32.xlu0 %v1070
    %v1072 = vpop.xlane.xlu0 %1071
    %v1073 = vsel %vm922, %v1020, 0.0
    %1074 = vadd.xlane.f32.xlu0 %v1073
    %v1075 = vpop.xlane.xlu0 %1074
    %v1076 = vsel %vm909, %v1022, 0.0
    %1077 = vadd.xlane.f32.xlu0 %v1076
    %v1078 = vpop.xlane.xlu0 %1077
    %v1079 = vsel %vm909, %v1024, 0.0
    %1080 = vadd.xlane.f32.xlu0 %v1079
    %v1081 = vpop.xlane.xlu0 %1080
    %v1082 = vsel %vm909, %v1026, 0.0
    %1083 = vadd.xlane.f32.xlu0 %v1082
    %v1084 = vpop.xlane.xlu0 %1083
    %v1085 = vsel %vm909, %v1028, 0.0
    %1086 = vadd.xlane.f32.xlu0 %v1085
    %v1087 = vpop.xlane.xlu0 %1086
    %v1088 = vsel %vm922, %v1030, 0.0
    %1089 = vadd.xlane.f32.xlu0 %v1088
    %v1090 = vpop.xlane.xlu0 %1089
    %v1091 = vrcp.pop %v1033
    %v1092 = vrcp.pop %v1036
    %v1093 = vrcp.pop %v1039
    %v1094 = vrcp.pop %v1042
    %v1095 = vrcp.pop %v1045
    %v1096 = vrcp.pop %v1048
    %v1097 = vrcp.pop %v1051
    %v1098 = vrcp.pop %v1054
    %v1099 = vrcp.pop %v1057
    %v1100 = vrcp.pop %v1060
    %v1101 = vrcp.pop %v1063
    %v1102 = vrcp.pop %v1066
    %v1103 = vrcp.pop %v1069
    %v1104 = vrcp.pop %v1072
    %v1105 = vrcp.pop %v1075
    %v1106 = vrcp.pop %v1078
    %v1107 = vrcp.pop %v1081
    %v1108 = vrcp.pop %v1084
    %v1109 = vrcp.pop %v1087
    %v1110 = vrcp.pop %v1090
    %v1111 = vmul.f32 %v992, %v1091
    %v1112 = vmul.f32 %v994, %v1092
    %v1113 = vmul.f32 %v996, %v1093
    %v1114 = vmul.f32 %v998, %v1094
    %v1115 = vmul.f32 %v1000, %v1095
    %v1116 = vmul.f32 %v1002, %v1096
    %v1117 = vmul.f32 %v1004, %v1097
    %v1118 = vmul.f32 %v1006, %v1098
    %v1119 = vmul.f32 %v1008, %v1099
    %v1120 = vmul.f32 %v1010, %v1100
    %v1121 = vmul.f32 %v1012, %v1101
    %v1122 = vmul.f32 %v1014, %v1102
    %v1123 = vmul.f32 %v1016, %v1103
    %v1124 = vmul.f32 %v1018, %v1104
    %v1125 = vmul.f32 %v1020, %v1105
    %v1126 = vmul.f32 %v1022, %v1106
    %v1127 = vmul.f32 %v1024, %v1107
    %v1128 = vmul.f32 %v1026, %v1108
    %v1129 = vmul.f32 %v1028, %v1109
    %v1130 = vmul.f32 %v1030, %v1110
    %1131 = vrot.lane.b32.xlu0 %v370, 64
    %v1132 = vpop.permute.xlu0 %1131
    %1133 = vrot.lane.b32.xlu0 %v375, 64
    %v1134 = vpop.permute.xlu0 %1133
    %1135 = vrot.lane.b32.xlu0 %v380, 64
    %v1136 = vpop.permute.xlu0 %1135
    %1137 = vrot.lane.b32.xlu0 %v385, 64
    %v1138 = vpop.permute.xlu0 %1137
    %1139 = vrot.lane.b32.xlu0 %v390, 64
    %v1140 = vpop.permute.xlu0 %1139
    %v1146 = vsel %vm909, %v1111, 0
    %v1149 = vsel %vm909, %v1112, 0
    %v1152 = vsel %vm909, %v1113, 0
    %v1155 = vsel %vm909, %v1114, 0
    %v1158 = vsel %vm909, %v1115, 0
    %vm1160 = vcmask 1041408
    %v1161 = vsel %vm1160, %v1140, 0
    %1163 = vmatprep.subr.mxu0 0.0
    %1164 = vmatpush1.msra.mxu0 0.0
    %1165 = vmatprep.subr.mxu0 0.0
    %1166 = vmatpush1.msra.mxu0 0.0
    %1167 = vmatprep.subr.mxu0 0.0
    %1168 = vmatpush1.msra.mxu0 0.0
    %1169 = vmatprep.subr.mxu0 0.0
    %1170 = vmatpush1.msra.mxu0 0.0
    %1171 = vmatprep.subr.mxu0 0.0
    %1172 = vmatpush1.msra.mxu0 0.0
    %1173 = vmatprep.subr.mxu0 0.0
    %1174 = vmatpush1.msra.mxu0 0.0
    %1175 = vmatprep.subr.mxu0 0.0
    %1176 = vmatpush1.msra.mxu0 0.0
    %1177 = vmatprep.subr.mxu0 0.0
    %1178 = vmatpush1.msra.mxu0 0.0
    %1179 = vmatprep.subr.mxu0 0.0
    %1180 = vmatpush1.msra.mxu0 0.0
    %1181 = vmatprep.subr.mxu0 0.0
    %1182 = vmatpush1.msra.mxu0 0.0
    %1183 = vmatprep.subr.mxu0 0.0
    %1184 = vmatpush1.msra.mxu0 0.0
    %1185 = vmatprep.subr.mxu0 0.0
    %1186 = vmatpush1.msra.mxu0 %v1161
    %1187 = vmatprep.subr.mxu0 0.0
    %1188 = vmatpush1.msra.mxu0 %v1138
    %1189 = vmatprep.subr.mxu0 0.0
    %1190 = vmatpush1.msra.mxu0 %v1136
    %1191 = vmatprep.subr.mxu0 0.0
    %1192 = vmatpush1.msra.mxu0 %v1134
    %1193 = vmatprep.subr.mxu0 0.0
    %1194 = vmatpush1.msra.mxu0 %v1132
    %1195 = vmatprep.subr.mxu0 0.0
    %1196 = vmatpush2.msra.mxu0 0.0
    %1197 = vmatprep.subr.mxu0 0.0
    %1198 = vmatpush2.msra.mxu0 0.0
    %1199 = vmatprep.subr.mxu0 0.0
    %1200 = vmatpush2.msra.mxu0 0.0
    %1201 = vmatprep.subr.mxu0 0.0
    %1202 = vmatpush2.msra.mxu0 0.0
    %1203 = vmatprep.subr.mxu0 0.0
    %1204 = vmatpush2.msra.mxu0 0.0
    %1205 = vmatprep.subr.mxu0 0.0
    %1206 = vmatpush2.msra.mxu0 0.0
    %1207 = vmatprep.subr.mxu0 0.0
    %1208 = vmatpush2.msra.mxu0 0.0
    %1209 = vmatprep.subr.mxu0 0.0
    %1210 = vmatpush2.msra.mxu0 0.0
    %1211 = vmatprep.subr.mxu0 0.0
    %1212 = vmatpush2.msra.mxu0 0.0
    %1213 = vmatprep.subr.mxu0 0.0
    %1214 = vmatpush2.msra.mxu0 0.0
    %1215 = vmatprep.subr.mxu0 0.0
    %1216 = vmatpush2.msra.mxu0 0.0
    %1217 = vmatprep.subr.mxu0 0.0
    %1218 = vmatpush2.msra.mxu0 0.0
    %1219 = vmatprep.subr.mxu0 0.0
    %1220 = vmatpush2.msra.mxu0 0.0
    %1221 = vmatprep.subr.mxu0 0.0
    %1222 = vmatpush2.msra.mxu0 0.0
    %1223 = vmatprep.subr.mxu0 0.0
    %1224 = vmatpush2.msra.mxu0 0.0
    %1225 = vmatprep.subr.mxu0 0.0
    %1226 = vmatpush2.msra.mxu0 0.0
    %1227 = vmatprep.mubr.f32.mxu0 0.0
    %1228 = vmatmul.mubr.f32.gmra.mxu0 %v1146
    %v1229 = vpop.f32.mrf.mxu0
    %v1230 = vadd.f32 0.0, %v1229
    %v1231 = vpop.f32.mrf.mxu0
    %1232 = vmatprep.mubr.f32.mxu0 0.0
    %1233 = vmatmul.mubr.f32.gmra.mxu0 %v1149
    %v1234 = vpop.f32.mrf.mxu0
    %v1235 = vadd.f32 0.0, %v1234
    %v1236 = vpop.f32.mrf.mxu0
    %1237 = vmatprep.mubr.f32.mxu0 0.0
    %1238 = vmatmul.mubr.f32.gmra.mxu0 %v1152
    %v1239 = vpop.f32.mrf.mxu0
    %v1240 = vadd.f32 0.0, %v1239
    %v1241 = vpop.f32.mrf.mxu0
    %1242 = vmatprep.mubr.f32.mxu0 0.0
    %1243 = vmatmul.mubr.f32.gmra.mxu0 %v1155
    %v1244 = vpop.f32.mrf.mxu0
    %v1245 = vadd.f32 0.0, %v1244
    %v1246 = vpop.f32.mrf.mxu0
    %1247 = vmatprep.mubr.f32.mxu0 0.0
    %1248 = vmatmul.mubr.f32.gmra.mxu0 %v1158
    %v1249 = vpop.f32.mrf.mxu0
    %v1250 = vadd.f32 0.0, %v1249
    %v1251 = vpop.f32.mrf.mxu0
    %1252 = vdwg.mxu0
    %1253 = vrot.lane.b32.xlu0 %v399, 64
    %v1254 = vpop.permute.xlu0 %1253
    %1255 = vrot.lane.b32.xlu0 %v401, 64
    %v1256 = vpop.permute.xlu0 %1255
    %1257 = vrot.lane.b32.xlu0 %v403, 64
    %v1258 = vpop.permute.xlu0 %1257
    %1259 = vrot.lane.b32.xlu0 %v405, 64
    %v1260 = vpop.permute.xlu0 %1259
    %1261 = vrot.lane.b32.xlu0 %v407, 64
    %v1262 = vpop.permute.xlu0 %1261
    %v1268 = vsel %vm909, %v1116, 0
    %v1271 = vsel %vm909, %v1117, 0
    %v1274 = vsel %vm909, %v1118, 0
    %v1277 = vsel %vm909, %v1119, 0
    %v1280 = vsel %vm909, %v1120, 0
    %v1282 = vsel %vm1160, %v1262, 0
    %1284 = vmatprep.subr.mxu0 0.0
    %1285 = vmatpush1.msra.mxu0 0.0
    %1286 = vmatprep.subr.mxu0 0.0
    %1287 = vmatpush1.msra.mxu0 0.0
    %1288 = vmatprep.subr.mxu0 0.0
    %1289 = vmatpush1.msra.mxu0 0.0
    %1290 = vmatprep.subr.mxu0 0.0
    %1291 = vmatpush1.msra.mxu0 0.0
    %1292 = vmatprep.subr.mxu0 0.0
    %1293 = vmatpush1.msra.mxu0 0.0
    %1294 = vmatprep.subr.mxu0 0.0
    %1295 = vmatpush1.msra.mxu0 0.0
    %1296 = vmatprep.subr.mxu0 0.0
    %1297 = vmatpush1.msra.mxu0 0.0
    %1298 = vmatprep.subr.mxu0 0.0
    %1299 = vmatpush1.msra.mxu0 0.0
    %1300 = vmatprep.subr.mxu0 0.0
    %1301 = vmatpush1.msra.mxu0 0.0
    %1302 = vmatprep.subr.mxu0 0.0
    %1303 = vmatpush1.msra.mxu0 0.0
    %1304 = vmatprep.subr.mxu0 0.0
    %1305 = vmatpush1.msra.mxu0 0.0
    %1306 = vmatprep.subr.mxu0 0.0
    %1307 = vmatpush1.msra.mxu0 %v1282
    %1308 = vmatprep.subr.mxu0 0.0
    %1309 = vmatpush1.msra.mxu0 %v1260
    %1310 = vmatprep.subr.mxu0 0.0
    %1311 = vmatpush1.msra.mxu0 %v1258
    %1312 = vmatprep.subr.mxu0 0.0
    %1313 = vmatpush1.msra.mxu0 %v1256
    %1314 = vmatprep.subr.mxu0 0.0
    %1315 = vmatpush1.msra.mxu0 %v1254
    %1316 = vmatprep.subr.mxu0 0.0
    %1317 = vmatpush2.msra.mxu0 0.0
    %1318 = vmatprep.subr.mxu0 0.0
    %1319 = vmatpush2.msra.mxu0 0.0
    %1320 = vmatprep.subr.mxu0 0.0
    %1321 = vmatpush2.msra.mxu0 0.0
    %1322 = vmatprep.subr.mxu0 0.0
    %1323 = vmatpush2.msra.mxu0 0.0
    %1324 = vmatprep.subr.mxu0 0.0
    %1325 = vmatpush2.msra.mxu0 0.0
    %1326 = vmatprep.subr.mxu0 0.0
    %1327 = vmatpush2.msra.mxu0 0.0
    %1328 = vmatprep.subr.mxu0 0.0
    %1329 = vmatpush2.msra.mxu0 0.0
    %1330 = vmatprep.subr.mxu0 0.0
    %1331 = vmatpush2.msra.mxu0 0.0
    %1332 = vmatprep.subr.mxu0 0.0
    %1333 = vmatpush2.msra.mxu0 0.0
    %1334 = vmatprep.subr.mxu0 0.0
    %1335 = vmatpush2.msra.mxu0 0.0
    %1336 = vmatprep.subr.mxu0 0.0
    %1337 = vmatpush2.msra.mxu0 0.0
    %1338 = vmatprep.subr.mxu0 0.0
    %1339 = vmatpush2.msra.mxu0 0.0
    %1340 = vmatprep.subr.mxu0 0.0
    %1341 = vmatpush2.msra.mxu0 0.0
    %1342 = vmatprep.subr.mxu0 0.0
    %1343 = vmatpush2.msra.mxu0 0.0
    %1344 = vmatprep.subr.mxu0 0.0
    %1345 = vmatpush2.msra.mxu0 0.0
    %1346 = vmatprep.subr.mxu0 0.0
    %1347 = vmatpush2.msra.mxu0 0.0
    %1348 = vmatprep.mubr.f32.mxu0 0.0
    %1349 = vmatmul.mubr.f32.gmra.mxu0 %v1268
    %v1350 = vpop.f32.mrf.mxu0
    %v1351 = vadd.f32 0.0, %v1350
    %v1352 = vpop.f32.mrf.mxu0
    %1353 = vmatprep.mubr.f32.mxu0 0.0
    %1354 = vmatmul.mubr.f32.gmra.mxu0 %v1271
    %v1355 = vpop.f32.mrf.mxu0
    %v1356 = vadd.f32 0.0, %v1355
    %v1357 = vpop.f32.mrf.mxu0
    %1358 = vmatprep.mubr.f32.mxu0 0.0
    %1359 = vmatmul.mubr.f32.gmra.mxu0 %v1274
    %v1360 = vpop.f32.mrf.mxu0
    %v1361 = vadd.f32 0.0, %v1360
    %v1362 = vpop.f32.mrf.mxu0
    %1363 = vmatprep.mubr.f32.mxu0 0.0
    %1364 = vmatmul.mubr.f32.gmra.mxu0 %v1277
    %v1365 = vpop.f32.mrf.mxu0
    %v1366 = vadd.f32 0.0, %v1365
    %v1367 = vpop.f32.mrf.mxu0
    %1368 = vmatprep.mubr.f32.mxu0 0.0
    %1369 = vmatmul.mubr.f32.gmra.mxu0 %v1280
    %v1370 = vpop.f32.mrf.mxu0
    %v1371 = vadd.f32 0.0, %v1370
    %v1372 = vpop.f32.mrf.mxu0
    %1373 = vdwg.mxu0
    %1374 = vrot.lane.b32.xlu0 %v409, 64
    %v1375 = vpop.permute.xlu0 %1374
    %1376 = vrot.lane.b32.xlu0 %v411, 64
    %v1377 = vpop.permute.xlu0 %1376
    %1378 = vrot.lane.b32.xlu0 %v413, 64
    %v1379 = vpop.permute.xlu0 %1378
    %1380 = vrot.lane.b32.xlu0 %v415, 64
    %v1381 = vpop.permute.xlu0 %1380
    %1382 = vrot.lane.b32.xlu0 %v417, 64
    %v1383 = vpop.permute.xlu0 %1382
    %v1389 = vsel %vm909, %v1121, 0
    %v1392 = vsel %vm909, %v1122, 0
    %v1395 = vsel %vm909, %v1123, 0
    %v1398 = vsel %vm909, %v1124, 0
    %v1401 = vsel %vm909, %v1125, 0
    %v1403 = vsel %vm1160, %v1383, 0
    %1405 = vmatprep.subr.mxu0 0.0
    %1406 = vmatpush1.msra.mxu0 0.0
    %1407 = vmatprep.subr.mxu0 0.0
    %1408 = vmatpush1.msra.mxu0 0.0
    %1409 = vmatprep.subr.mxu0 0.0
    %1410 = vmatpush1.msra.mxu0 0.0
    %1411 = vmatprep.subr.mxu0 0.0
    %1412 = vmatpush1.msra.mxu0 0.0
    %1413 = vmatprep.subr.mxu0 0.0
    %1414 = vmatpush1.msra.mxu0 0.0
    %1415 = vmatprep.subr.mxu0 0.0
    %1416 = vmatpush1.msra.mxu0 0.0
    %1417 = vmatprep.subr.mxu0 0.0
    %1418 = vmatpush1.msra.mxu0 0.0
    %1419 = vmatprep.subr.mxu0 0.0
    %1420 = vmatpush1.msra.mxu0 0.0
    %1421 = vmatprep.subr.mxu0 0.0
    %1422 = vmatpush1.msra.mxu0 0.0
    %1423 = vmatprep.subr.mxu0 0.0
    %1424 = vmatpush1.msra.mxu0 0.0
    %1425 = vmatprep.subr.mxu0 0.0
    %1426 = vmatpush1.msra.mxu0 0.0
    %1427 = vmatprep.subr.mxu0 0.0
    %1428 = vmatpush1.msra.mxu0 %v1403
    %1429 = vmatprep.subr.mxu0 0.0
    %1430 = vmatpush1.msra.mxu0 %v1381
    %1431 = vmatprep.subr.mxu0 0.0
    %1432 = vmatpush1.msra.mxu0 %v1379
    %1433 = vmatprep.subr.mxu0 0.0
    %1434 = vmatpush1.msra.mxu0 %v1377
    %1435 = vmatprep.subr.mxu0 0.0
    %1436 = vmatpush1.msra.mxu0 %v1375
    %1437 = vmatprep.subr.mxu0 0.0
    %1438 = vmatpush2.msra.mxu0 0.0
    %1439 = vmatprep.subr.mxu0 0.0
    %1440 = vmatpush2.msra.mxu0 0.0
    %1441 = vmatprep.subr.mxu0 0.0
    %1442 = vmatpush2.msra.mxu0 0.0
    %1443 = vmatprep.subr.mxu0 0.0
    %1444 = vmatpush2.msra.mxu0 0.0
    %1445 = vmatprep.subr.mxu0 0.0
    %1446 = vmatpush2.msra.mxu0 0.0
    %1447 = vmatprep.subr.mxu0 0.0
    %1448 = vmatpush2.msra.mxu0 0.0
    %1449 = vmatprep.subr.mxu0 0.0
    %1450 = vmatpush2.msra.mxu0 0.0
    %1451 = vmatprep.subr.mxu0 0.0
    %1452 = vmatpush2.msra.mxu0 0.0
    %1453 = vmatprep.subr.mxu0 0.0
    %1454 = vmatpush2.msra.mxu0 0.0
    %1455 = vmatprep.subr.mxu0 0.0
    %1456 = vmatpush2.msra.mxu0 0.0
    %1457 = vmatprep.subr.mxu0 0.0
    %1458 = vmatpush2.msra.mxu0 0.0
    %1459 = vmatprep.subr.mxu0 0.0
    %1460 = vmatpush2.msra.mxu0 0.0
    %1461 = vmatprep.subr.mxu0 0.0
    %1462 = vmatpush2.msra.mxu0 0.0
    %1463 = vmatprep.subr.mxu0 0.0
    %1464 = vmatpush2.msra.mxu0 0.0
    %1465 = vmatprep.subr.mxu0 0.0
    %1466 = vmatpush2.msra.mxu0 0.0
    %1467 = vmatprep.subr.mxu0 0.0
    %1468 = vmatpush2.msra.mxu0 0.0
    %1469 = vmatprep.mubr.f32.mxu0 0.0
    %1470 = vmatmul.mubr.f32.gmra.mxu0 %v1389
    %v1471 = vpop.f32.mrf.mxu0
    %v1472 = vadd.f32 0.0, %v1471
    %v1473 = vpop.f32.mrf.mxu0
    %1474 = vmatprep.mubr.f32.mxu0 0.0
    %1475 = vmatmul.mubr.f32.gmra.mxu0 %v1392
    %v1476 = vpop.f32.mrf.mxu0
    %v1477 = vadd.f32 0.0, %v1476
    %v1478 = vpop.f32.mrf.mxu0
    %1479 = vmatprep.mubr.f32.mxu0 0.0
    %1480 = vmatmul.mubr.f32.gmra.mxu0 %v1395
    %v1481 = vpop.f32.mrf.mxu0
    %v1482 = vadd.f32 0.0, %v1481
    %v1483 = vpop.f32.mrf.mxu0
    %1484 = vmatprep.mubr.f32.mxu0 0.0
    %1485 = vmatmul.mubr.f32.gmra.mxu0 %v1398
    %v1486 = vpop.f32.mrf.mxu0
    %v1487 = vadd.f32 0.0, %v1486
    %v1488 = vpop.f32.mrf.mxu0
    %1489 = vmatprep.mubr.f32.mxu0 0.0
    %1490 = vmatmul.mubr.f32.gmra.mxu0 %v1401
    %v1491 = vpop.f32.mrf.mxu0
    %v1492 = vadd.f32 0.0, %v1491
    %v1493 = vpop.f32.mrf.mxu0
    %1494 = vdwg.mxu0
    %1495 = vrot.lane.b32.xlu0 %v419, 64
    %v1496 = vpop.permute.xlu0 %1495
    %1497 = vrot.lane.b32.xlu0 %v421, 64
    %v1498 = vpop.permute.xlu0 %1497
    %1499 = vrot.lane.b32.xlu0 %v423, 64
    %v1500 = vpop.permute.xlu0 %1499
    %1501 = vrot.lane.b32.xlu0 %v425, 64
    %v1502 = vpop.permute.xlu0 %1501
    %1503 = vrot.lane.b32.xlu0 %v427, 64
    %v1504 = vpop.permute.xlu0 %1503
    %v1510 = vsel %vm909, %v1126, 0
    %v1513 = vsel %vm909, %v1127, 0
    %v1516 = vsel %vm909, %v1128, 0
    %v1519 = vsel %vm909, %v1129, 0
    %v1522 = vsel %vm909, %v1130, 0
    %v1524 = vsel %vm1160, %v1504, 0
    %1526 = vmatprep.subr.mxu0 0.0
    %1527 = vmatpush1.msra.mxu0 0.0
    %1528 = vmatprep.subr.mxu0 0.0
    %1529 = vmatpush1.msra.mxu0 0.0
    %1530 = vmatprep.subr.mxu0 0.0
    %1531 = vmatpush1.msra.mxu0 0.0
    %1532 = vmatprep.subr.mxu0 0.0
    %1533 = vmatpush1.msra.mxu0 0.0
    %1534 = vmatprep.subr.mxu0 0.0
    %1535 = vmatpush1.msra.mxu0 0.0
    %1536 = vmatprep.subr.mxu0 0.0
    %1537 = vmatpush1.msra.mxu0 0.0
    %1538 = vmatprep.subr.mxu0 0.0
    %1539 = vmatpush1.msra.mxu0 0.0
    %1540 = vmatprep.subr.mxu0 0.0
    %1541 = vmatpush1.msra.mxu0 0.0
    %1542 = vmatprep.subr.mxu0 0.0
    %1543 = vmatpush1.msra.mxu0 0.0
    %1544 = vmatprep.subr.mxu0 0.0
    %1545 = vmatpush1.msra.mxu0 0.0
    %1546 = vmatprep.subr.mxu0 0.0
    %1547 = vmatpush1.msra.mxu0 0.0
    %1548 = vmatprep.subr.mxu0 0.0
    %1549 = vmatpush1.msra.mxu0 %v1524
    %1550 = vmatprep.subr.mxu0 0.0
    %1551 = vmatpush1.msra.mxu0 %v1502
    %1552 = vmatprep.subr.mxu0 0.0
    %1553 = vmatpush1.msra.mxu0 %v1500
    %1554 = vmatprep.subr.mxu0 0.0
    %1555 = vmatpush1.msra.mxu0 %v1498
    %1556 = vmatprep.subr.mxu0 0.0
    %1557 = vmatpush1.msra.mxu0 %v1496
    %1558 = vmatprep.subr.mxu0 0.0
    %1559 = vmatpush2.msra.mxu0 0.0
    %1560 = vmatprep.subr.mxu0 0.0
    %1561 = vmatpush2.msra.mxu0 0.0
    %1562 = vmatprep.subr.mxu0 0.0
    %1563 = vmatpush2.msra.mxu0 0.0
    %1564 = vmatprep.subr.mxu0 0.0
    %1565 = vmatpush2.msra.mxu0 0.0
    %1566 = vmatprep.subr.mxu0 0.0
    %1567 = vmatpush2.msra.mxu0 0.0
    %1568 = vmatprep.subr.mxu0 0.0
    %1569 = vmatpush2.msra.mxu0 0.0
    %1570 = vmatprep.subr.mxu0 0.0
    %1571 = vmatpush2.msra.mxu0 0.0
    %1572 = vmatprep.subr.mxu0 0.0
    %1573 = vmatpush2.msra.mxu0 0.0
    %1574 = vmatprep.subr.mxu0 0.0
    %1575 = vmatpush2.msra.mxu0 0.0
    %1576 = vmatprep.subr.mxu0 0.0
    %1577 = vmatpush2.msra.mxu0 0.0
    %1578 = vmatprep.subr.mxu0 0.0
    %1579 = vmatpush2.msra.mxu0 0.0
    %1580 = vmatprep.subr.mxu0 0.0
    %1581 = vmatpush2.msra.mxu0 0.0
    %1582 = vmatprep.subr.mxu0 0.0
    %1583 = vmatpush2.msra.mxu0 0.0
    %1584 = vmatprep.subr.mxu0 0.0
    %1585 = vmatpush2.msra.mxu0 0.0
    %1586 = vmatprep.subr.mxu0 0.0
    %1587 = vmatpush2.msra.mxu0 0.0
    %1588 = vmatprep.subr.mxu0 0.0
    %1589 = vmatpush2.msra.mxu0 0.0
    %1590 = vmatprep.mubr.f32.mxu0 0.0
    %1591 = vmatmul.mubr.f32.gmra.mxu0 %v1510
    %v1592 = vpop.f32.mrf.mxu0
    %v1593 = vadd.f32 0.0, %v1592
    %v1594 = vpop.f32.mrf.mxu0
    %1595 = vmatprep.mubr.f32.mxu0 0.0
    %1596 = vmatmul.mubr.f32.gmra.mxu0 %v1513
    %v1597 = vpop.f32.mrf.mxu0
    %v1598 = vadd.f32 0.0, %v1597
    %v1599 = vpop.f32.mrf.mxu0
    %1600 = vmatprep.mubr.f32.mxu0 0.0
    %1601 = vmatmul.mubr.f32.gmra.mxu0 %v1516
    %v1602 = vpop.f32.mrf.mxu0
    %v1603 = vadd.f32 0.0, %v1602
    %v1604 = vpop.f32.mrf.mxu0
    %1605 = vmatprep.mubr.f32.mxu0 0.0
    %1606 = vmatmul.mubr.f32.gmra.mxu0 %v1519
    %v1607 = vpop.f32.mrf.mxu0
    %v1608 = vadd.f32 0.0, %v1607
    %v1609 = vpop.f32.mrf.mxu0
    %1610 = vmatprep.mubr.f32.mxu0 0.0
    %1611 = vmatmul.mubr.f32.gmra.mxu0 %v1522
    %v1612 = vpop.f32.mrf.mxu0
    %v1613 = vadd.f32 0.0, %v1612
    %v1614 = vpop.f32.mrf.mxu0
    %1615 = vdwg.mxu0
    %v1616 = vld [vmem:[%s7] sm:$0xff]
    %v1617 = vld [vmem:[%s7 + $0x8] sm:$0xff]
    %v1618 = vld [vmem:[%s7 + $0x10] sm:$0xff]
    %v1619 = vld [vmem:[%s7 + $0x18] sm:$0xff]
    %v1621 = vsel %vm438, %v1351, 0
    %v1624 = vsel %vm438, %v1356, 0
    %v1627 = vsel %vm438, %v1361, 0
    %v1630 = vsel %vm438, %v1366, 0
    %v1633 = vsel %vm438, %v1371, 0
    %1635 = vmatprep.subr.mxu0 0.0
    %1636 = vmatpush1.msra.mxu0 0.0
    %1637 = vmatprep.subr.mxu0 0.0
    %1638 = vmatpush1.msra.mxu0 0.0
    %1639 = vmatprep.subr.mxu0 0.0
    %1640 = vmatpush1.msra.mxu0 0.0
    %1641 = vmatprep.subr.mxu0 0.0
    %1642 = vmatpush1.msra.mxu0 0.0
    %1643 = vmatprep.subr.mxu0 0.0
    %1644 = vmatpush1.msra.mxu0 0.0
    %1645 = vmatprep.subr.mxu0 0.0
    %1646 = vmatpush1.msra.mxu0 0.0
    %1647 = vmatprep.subr.mxu0 0.0
    %1648 = vmatpush1.msra.mxu0 0.0
    %1649 = vmatprep.subr.mxu0 0.0
    %1650 = vmatpush1.msra.mxu0 0.0
    %1651 = vmatprep.subr.mxu0 0.0
    %1652 = vmatpush1.msra.mxu0 0.0
    %1653 = vmatprep.subr.mxu0 0.0
    %1654 = vmatpush1.msra.mxu0 0.0
    %1655 = vmatprep.subr.mxu0 0.0
    %1656 = vmatpush1.msra.mxu0 0.0
    %1657 = vmatprep.subr.mxu0 0.0
    %1658 = vmatpush1.msra.mxu0 0.0
    %1659 = vmatprep.subr.mxu0 0.0
    %1660 = vmatpush1.msra.mxu0 0.0
    %1661 = vmatprep.subr.mxu0 0.0
    %1662 = vmatpush1.msra.mxu0 0.0
    %1663 = vmatprep.subr.mxu0 0.0
    %1664 = vmatpush1.msra.mxu0 0.0
    %1665 = vmatprep.subr.mxu0 0.0
    %1666 = vmatpush1.msra.mxu0 %v1617
    %1667 = vmatprep.subr.mxu0 0.0
    %1668 = vmatpush2.msra.mxu0 0.0
    %1669 = vmatprep.subr.mxu0 0.0
    %1670 = vmatpush2.msra.mxu0 0.0
    %1671 = vmatprep.subr.mxu0 0.0
    %1672 = vmatpush2.msra.mxu0 0.0
    %1673 = vmatprep.subr.mxu0 0.0
    %1674 = vmatpush2.msra.mxu0 0.0
    %1675 = vmatprep.subr.mxu0 0.0
    %1676 = vmatpush2.msra.mxu0 0.0
    %1677 = vmatprep.subr.mxu0 0.0
    %1678 = vmatpush2.msra.mxu0 0.0
    %1679 = vmatprep.subr.mxu0 0.0
    %1680 = vmatpush2.msra.mxu0 0.0
    %1681 = vmatprep.subr.mxu0 0.0
    %1682 = vmatpush2.msra.mxu0 0.0
    %1683 = vmatprep.subr.mxu0 0.0
    %1684 = vmatpush2.msra.mxu0 0.0
    %1685 = vmatprep.subr.mxu0 0.0
    %1686 = vmatpush2.msra.mxu0 0.0
    %1687 = vmatprep.subr.mxu0 0.0
    %1688 = vmatpush2.msra.mxu0 0.0
    %1689 = vmatprep.subr.mxu0 0.0
    %1690 = vmatpush2.msra.mxu0 0.0
    %1691 = vmatprep.subr.mxu0 0.0
    %1692 = vmatpush2.msra.mxu0 0.0
    %1693 = vmatprep.subr.mxu0 0.0
    %1694 = vmatpush2.msra.mxu0 0.0
    %1695 = vmatprep.subr.mxu0 0.0
    %1696 = vmatpush2.msra.mxu0 0.0
    %1697 = vmatprep.subr.mxu0 0.0
    %1698 = vmatpush2.msra.mxu0 0.0
    %1699 = vmatprep.mubr.f32.mxu0 0.0
    %1700 = vmatmul.mubr.f32.gmra.mxu0 %v1621
    %v1701 = vpop.f32.mrf.mxu0
    %v1702 = vadd.f32 0.0, %v1701
    %v1703 = vpop.f32.mrf.mxu0
    %1704 = vmatprep.mubr.f32.mxu0 0.0
    %1705 = vmatmul.mubr.f32.gmra.mxu0 %v1624
    %v1706 = vpop.f32.mrf.mxu0
    %v1707 = vadd.f32 0.0, %v1706
    %v1708 = vpop.f32.mrf.mxu0
    %1709 = vmatprep.mubr.f32.mxu0 0.0
    %1710 = vmatmul.mubr.f32.gmra.mxu0 %v1627
    %v1711 = vpop.f32.mrf.mxu0
    %v1712 = vadd.f32 0.0, %v1711
    %v1713 = vpop.f32.mrf.mxu0
    %1714 = vmatprep.mubr.f32.mxu0 0.0
    %1715 = vmatmul.mubr.f32.gmra.mxu0 %v1630
    %v1716 = vpop.f32.mrf.mxu0
    %v1717 = vadd.f32 0.0, %v1716
    %v1718 = vpop.f32.mrf.mxu0
    %1719 = vmatprep.mubr.f32.mxu0 0.0
    %1720 = vmatmul.mubr.f32.gmra.mxu0 %v1633
    %v1721 = vpop.f32.mrf.mxu0
    %v1722 = vadd.f32 0.0, %v1721
    %v1723 = vpop.f32.mrf.mxu0
    %1724 = vdwg.mxu0
    %v1726 = vsel %vm438, %v1230, 0
    %v1729 = vsel %vm438, %v1235, 0
    %v1732 = vsel %vm438, %v1240, 0
    %v1735 = vsel %vm438, %v1245, 0
    %v1738 = vsel %vm438, %v1250, 0
    %1740 = vmatprep.subr.mxu0 0.0
    %1741 = vmatpush1.msra.mxu0 0.0
    %1742 = vmatprep.subr.mxu0 0.0
    %1743 = vmatpush1.msra.mxu0 0.0
    %1744 = vmatprep.subr.mxu0 0.0
    %1745 = vmatpush1.msra.mxu0 0.0
    %1746 = vmatprep.subr.mxu0 0.0
    %1747 = vmatpush1.msra.mxu0 0.0
    %1748 = vmatprep.subr.mxu0 0.0
    %1749 = vmatpush1.msra.mxu0 0.0
    %1750 = vmatprep.subr.mxu0 0.0
    %1751 = vmatpush1.msra.mxu0 0.0
    %1752 = vmatprep.subr.mxu0 0.0
    %1753 = vmatpush1.msra.mxu0 0.0
    %1754 = vmatprep.subr.mxu0 0.0
    %1755 = vmatpush1.msra.mxu0 0.0
    %1756 = vmatprep.subr.mxu0 0.0
    %1757 = vmatpush1.msra.mxu0 0.0
    %1758 = vmatprep.subr.mxu0 0.0
    %1759 = vmatpush1.msra.mxu0 0.0
    %1760 = vmatprep.subr.mxu0 0.0
    %1761 = vmatpush1.msra.mxu0 0.0
    %1762 = vmatprep.subr.mxu0 0.0
    %1763 = vmatpush1.msra.mxu0 0.0
    %1764 = vmatprep.subr.mxu0 0.0
    %1765 = vmatpush1.msra.mxu0 0.0
    %1766 = vmatprep.subr.mxu0 0.0
    %1767 = vmatpush1.msra.mxu0 0.0
    %1768 = vmatprep.subr.mxu0 0.0
    %1769 = vmatpush1.msra.mxu0 0.0
    %1770 = vmatprep.subr.mxu0 0.0
    %1771 = vmatpush1.msra.mxu0 %v1616
    %1772 = vmatprep.subr.mxu0 0.0
    %1773 = vmatpush2.msra.mxu0 0.0
    %1774 = vmatprep.subr.mxu0 0.0
    %1775 = vmatpush2.msra.mxu0 0.0
    %1776 = vmatprep.subr.mxu0 0.0
    %1777 = vmatpush2.msra.mxu0 0.0
    %1778 = vmatprep.subr.mxu0 0.0
    %1779 = vmatpush2.msra.mxu0 0.0
    %1780 = vmatprep.subr.mxu0 0.0
    %1781 = vmatpush2.msra.mxu0 0.0
    %1782 = vmatprep.subr.mxu0 0.0
    %1783 = vmatpush2.msra.mxu0 0.0
    %1784 = vmatprep.subr.mxu0 0.0
    %1785 = vmatpush2.msra.mxu0 0.0
    %1786 = vmatprep.subr.mxu0 0.0
    %1787 = vmatpush2.msra.mxu0 0.0
    %1788 = vmatprep.subr.mxu0 0.0
    %1789 = vmatpush2.msra.mxu0 0.0
    %1790 = vmatprep.subr.mxu0 0.0
    %1791 = vmatpush2.msra.mxu0 0.0
    %1792 = vmatprep.subr.mxu0 0.0
    %1793 = vmatpush2.msra.mxu0 0.0
    %1794 = vmatprep.subr.mxu0 0.0
    %1795 = vmatpush2.msra.mxu0 0.0
    %1796 = vmatprep.subr.mxu0 0.0
    %1797 = vmatpush2.msra.mxu0 0.0
    %1798 = vmatprep.subr.mxu0 0.0
    %1799 = vmatpush2.msra.mxu0 0.0
    %1800 = vmatprep.subr.mxu0 0.0
    %1801 = vmatpush2.msra.mxu0 0.0
    %1802 = vmatprep.subr.mxu0 0.0
    %1803 = vmatpush2.msra.mxu0 0.0
    %1804 = vmatprep.mubr.f32.mxu0 0.0
    %1805 = vmatmul.mubr.f32.gmra.mxu0 %v1726
    %v1806 = vpop.f32.mrf.mxu0
    %v1807 = vadd.f32 %v1702, %v1806
    %v1808 = vpop.f32.mrf.mxu0
    %1809 = vmatprep.mubr.f32.mxu0 0.0
    %1810 = vmatmul.mubr.f32.gmra.mxu0 %v1729
    %v1811 = vpop.f32.mrf.mxu0
    %v1812 = vadd.f32 %v1707, %v1811
    %v1813 = vpop.f32.mrf.mxu0
    %1814 = vmatprep.mubr.f32.mxu0 0.0
    %1815 = vmatmul.mubr.f32.gmra.mxu0 %v1732
    %v1816 = vpop.f32.mrf.mxu0
    %v1817 = vadd.f32 %v1712, %v1816
    %v1818 = vpop.f32.mrf.mxu0
    %1819 = vmatprep.mubr.f32.mxu0 0.0
    %1820 = vmatmul.mubr.f32.gmra.mxu0 %v1735
    %v1821 = vpop.f32.mrf.mxu0
    %v1822 = vadd.f32 %v1717, %v1821
    %v1823 = vpop.f32.mrf.mxu0
    %1824 = vmatprep.mubr.f32.mxu0 0.0
    %1825 = vmatmul.mubr.f32.gmra.mxu0 %v1738
    %v1826 = vpop.f32.mrf.mxu0
    %v1827 = vadd.f32 %v1722, %v1826
    %v1828 = vpop.f32.mrf.mxu0
    %1829 = vdwg.mxu0
    %v1831 = vsel %vm438, %v1472, 0
    %v1834 = vsel %vm438, %v1477, 0
    %v1837 = vsel %vm438, %v1482, 0
    %v1840 = vsel %vm438, %v1487, 0
    %v1843 = vsel %vm438, %v1492, 0
    %1845 = vmatprep.subr.mxu0 0.0
    %1846 = vmatpush1.msra.mxu0 0.0
    %1847 = vmatprep.subr.mxu0 0.0
    %1848 = vmatpush1.msra.mxu0 0.0
    %1849 = vmatprep.subr.mxu0 0.0
    %1850 = vmatpush1.msra.mxu0 0.0
    %1851 = vmatprep.subr.mxu0 0.0
    %1852 = vmatpush1.msra.mxu0 0.0
    %1853 = vmatprep.subr.mxu0 0.0
    %1854 = vmatpush1.msra.mxu0 0.0
    %1855 = vmatprep.subr.mxu0 0.0
    %1856 = vmatpush1.msra.mxu0 0.0
    %1857 = vmatprep.subr.mxu0 0.0
    %1858 = vmatpush1.msra.mxu0 0.0
    %1859 = vmatprep.subr.mxu0 0.0
    %1860 = vmatpush1.msra.mxu0 0.0
    %1861 = vmatprep.subr.mxu0 0.0
    %1862 = vmatpush1.msra.mxu0 0.0
    %1863 = vmatprep.subr.mxu0 0.0
    %1864 = vmatpush1.msra.mxu0 0.0
    %1865 = vmatprep.subr.mxu0 0.0
    %1866 = vmatpush1.msra.mxu0 0.0
    %1867 = vmatprep.subr.mxu0 0.0
    %1868 = vmatpush1.msra.mxu0 0.0
    %1869 = vmatprep.subr.mxu0 0.0
    %1870 = vmatpush1.msra.mxu0 0.0
    %1871 = vmatprep.subr.mxu0 0.0
    %1872 = vmatpush1.msra.mxu0 0.0
    %1873 = vmatprep.subr.mxu0 0.0
    %1874 = vmatpush1.msra.mxu0 0.0
    %1875 = vmatprep.subr.mxu0 0.0
    %1876 = vmatpush1.msra.mxu0 %v1618
    %1877 = vmatprep.subr.mxu0 0.0
    %1878 = vmatpush2.msra.mxu0 0.0
    %1879 = vmatprep.subr.mxu0 0.0
    %1880 = vmatpush2.msra.mxu0 0.0
    %1881 = vmatprep.subr.mxu0 0.0
    %1882 = vmatpush2.msra.mxu0 0.0
    %1883 = vmatprep.subr.mxu0 0.0
    %1884 = vmatpush2.msra.mxu0 0.0
    %1885 = vmatprep.subr.mxu0 0.0
    %1886 = vmatpush2.msra.mxu0 0.0
    %1887 = vmatprep.subr.mxu0 0.0
    %1888 = vmatpush2.msra.mxu0 0.0
    %1889 = vmatprep.subr.mxu0 0.0
    %1890 = vmatpush2.msra.mxu0 0.0
    %1891 = vmatprep.subr.mxu0 0.0
    %1892 = vmatpush2.msra.mxu0 0.0
    %1893 = vmatprep.subr.mxu0 0.0
    %1894 = vmatpush2.msra.mxu0 0.0
    %1895 = vmatprep.subr.mxu0 0.0
    %1896 = vmatpush2.msra.mxu0 0.0
    %1897 = vmatprep.subr.mxu0 0.0
    %1898 = vmatpush2.msra.mxu0 0.0
    %1899 = vmatprep.subr.mxu0 0.0
    %1900 = vmatpush2.msra.mxu0 0.0
    %1901 = vmatprep.subr.mxu0 0.0
    %1902 = vmatpush2.msra.mxu0 0.0
    %1903 = vmatprep.subr.mxu0 0.0
    %1904 = vmatpush2.msra.mxu0 0.0
    %1905 = vmatprep.subr.mxu0 0.0
    %1906 = vmatpush2.msra.mxu0 0.0
    %1907 = vmatprep.subr.mxu0 0.0
    %1908 = vmatpush2.msra.mxu0 0.0
    %1909 = vmatprep.mubr.f32.mxu0 0.0
    %1910 = vmatmul.mubr.f32.gmra.mxu0 %v1831
    %v1911 = vpop.f32.mrf.mxu0
    %v1912 = vadd.f32 0.0, %v1911
    %v1913 = vpop.f32.mrf.mxu0
    %1914 = vmatprep.mubr.f32.mxu0 0.0
    %1915 = vmatmul.mubr.f32.gmra.mxu0 %v1834
    %v1916 = vpop.f32.mrf.mxu0
    %v1917 = vadd.f32 0.0, %v1916
    %v1918 = vpop.f32.mrf.mxu0
    %1919 = vmatprep.mubr.f32.mxu0 0.0
    %1920 = vmatmul.mubr.f32.gmra.mxu0 %v1837
    %v1921 = vpop.f32.mrf.mxu0
    %v1922 = vadd.f32 0.0, %v1921
    %v1923 = vpop.f32.mrf.mxu0
    %1924 = vmatprep.mubr.f32.mxu0 0.0
    %1925 = vmatmul.mubr.f32.gmra.mxu0 %v1840
    %v1926 = vpop.f32.mrf.mxu0
    %v1927 = vadd.f32 0.0, %v1926
    %v1928 = vpop.f32.mrf.mxu0
    %1929 = vmatprep.mubr.f32.mxu0 0.0
    %1930 = vmatmul.mubr.f32.gmra.mxu0 %v1843
    %v1931 = vpop.f32.mrf.mxu0
    %v1932 = vadd.f32 0.0, %v1931
    %v1933 = vpop.f32.mrf.mxu0
    %1934 = vdwg.mxu0
    %v1935 = vadd.f32 %v1807, %v1912
    %v1936 = vadd.f32 %v1812, %v1917
    %v1937 = vadd.f32 %v1817, %v1922
    %v1938 = vadd.f32 %v1822, %v1927
    %v1939 = vadd.f32 %v1827, %v1932
    %v1941 = vsel %vm438, %v1593, 0
    %v1944 = vsel %vm438, %v1598, 0
    %v1947 = vsel %vm438, %v1603, 0
    %v1950 = vsel %vm438, %v1608, 0
    %v1953 = vsel %vm438, %v1613, 0
    %1955 = vmatprep.subr.mxu0 0.0
    %1956 = vmatpush1.msra.mxu0 0.0
    %1957 = vmatprep.subr.mxu0 0.0
    %1958 = vmatpush1.msra.mxu0 0.0
    %1959 = vmatprep.subr.mxu0 0.0
    %1960 = vmatpush1.msra.mxu0 0.0
    %1961 = vmatprep.subr.mxu0 0.0
    %1962 = vmatpush1.msra.mxu0 0.0
    %1963 = vmatprep.subr.mxu0 0.0
    %1964 = vmatpush1.msra.mxu0 0.0
    %1965 = vmatprep.subr.mxu0 0.0
    %1966 = vmatpush1.msra.mxu0 0.0
    %1967 = vmatprep.subr.mxu0 0.0
    %1968 = vmatpush1.msra.mxu0 0.0
    %1969 = vmatprep.subr.mxu0 0.0
    %1970 = vmatpush1.msra.mxu0 0.0
    %1971 = vmatprep.subr.mxu0 0.0
    %1972 = vmatpush1.msra.mxu0 0.0
    %1973 = vmatprep.subr.mxu0 0.0
    %1974 = vmatpush1.msra.mxu0 0.0
    %1975 = vmatprep.subr.mxu0 0.0
    %1976 = vmatpush1.msra.mxu0 0.0
    %1977 = vmatprep.subr.mxu0 0.0
    %1978 = vmatpush1.msra.mxu0 0.0
    %1979 = vmatprep.subr.mxu0 0.0
    %1980 = vmatpush1.msra.mxu0 0.0
    %1981 = vmatprep.subr.mxu0 0.0
    %1982 = vmatpush1.msra.mxu0 0.0
    %1983 = vmatprep.subr.mxu0 0.0
    %1984 = vmatpush1.msra.mxu0 0.0
    %1985 = vmatprep.subr.mxu0 0.0
    %1986 = vmatpush1.msra.mxu0 %v1619
    %1987 = vmatprep.subr.mxu0 0.0
    %1988 = vmatpush2.msra.mxu0 0.0
    %1989 = vmatprep.subr.mxu0 0.0
    %1990 = vmatpush2.msra.mxu0 0.0
    %1991 = vmatprep.subr.mxu0 0.0
    %1992 = vmatpush2.msra.mxu0 0.0
    %1993 = vmatprep.subr.mxu0 0.0
    %1994 = vmatpush2.msra.mxu0 0.0
    %1995 = vmatprep.subr.mxu0 0.0
    %1996 = vmatpush2.msra.mxu0 0.0
    %1997 = vmatprep.subr.mxu0 0.0
    %1998 = vmatpush2.msra.mxu0 0.0
    %1999 = vmatprep.subr.mxu0 0.0
    %2000 = vmatpush2.msra.mxu0 0.0
    %2001 = vmatprep.subr.mxu0 0.0
    %2002 = vmatpush2.msra.mxu0 0.0
    %2003 = vmatprep.subr.mxu0 0.0
    %2004 = vmatpush2.msra.mxu0 0.0
    %2005 = vmatprep.subr.mxu0 0.0
    %2006 = vmatpush2.msra.mxu0 0.0
    %2007 = vmatprep.subr.mxu0 0.0
    %2008 = vmatpush2.msra.mxu0 0.0
    %2009 = vmatprep.subr.mxu0 0.0
    %2010 = vmatpush2.msra.mxu0 0.0
    %2011 = vmatprep.subr.mxu0 0.0
    %2012 = vmatpush2.msra.mxu0 0.0
    %2013 = vmatprep.subr.mxu0 0.0
    %2014 = vmatpush2.msra.mxu0 0.0
    %2015 = vmatprep.subr.mxu0 0.0
    %2016 = vmatpush2.msra.mxu0 0.0
    %2017 = vmatprep.subr.mxu0 0.0
    %2018 = vmatpush2.msra.mxu0 0.0
    %2019 = vmatprep.mubr.f32.mxu0 0.0
    %2020 = vmatmul.mubr.f32.gmra.mxu0 %v1941
    %v2021 = vpop.f32.mrf.mxu0
    %v2022 = vadd.f32 0.0, %v2021
    %v2023 = vpop.f32.mrf.mxu0
    %2024 = vmatprep.mubr.f32.mxu0 0.0
    %2025 = vmatmul.mubr.f32.gmra.mxu0 %v1944
    %v2026 = vpop.f32.mrf.mxu0
    %v2027 = vadd.f32 0.0, %v2026
    %v2028 = vpop.f32.mrf.mxu0
    %2029 = vmatprep.mubr.f32.mxu0 0.0
    %2030 = vmatmul.mubr.f32.gmra.mxu0 %v1947
    %v2031 = vpop.f32.mrf.mxu0
    %v2032 = vadd.f32 0.0, %v2031
    %v2033 = vpop.f32.mrf.mxu0
    %2034 = vmatprep.mubr.f32.mxu0 0.0
    %2035 = vmatmul.mubr.f32.gmra.mxu0 %v1950
    %v2036 = vpop.f32.mrf.mxu0
    %v2037 = vadd.f32 0.0, %v2036
    %v2038 = vpop.f32.mrf.mxu0
    %2039 = vmatprep.mubr.f32.mxu0 0.0
    %2040 = vmatmul.mubr.f32.gmra.mxu0 %v1953
    %v2041 = vpop.f32.mrf.mxu0
    %v2042 = vadd.f32 0.0, %v2041
    %v2043 = vpop.f32.mrf.mxu0
    %2044 = vdwg.mxu0
    %v2045 = vadd.f32 %v1935, %v2022
    %v2046 = vadd.f32 %v1936, %v2027
    %v2047 = vadd.f32 %v1937, %v2032
    %v2048 = vadd.f32 %v1938, %v2037
    %v2049 = vadd.f32 %v1939, %v2042
    %v2050 = vadd.f32 %v164, %v2045
    %v2051 = vadd.f32 %v169, %v2046
    %v2052 = vadd.f32 %v174, %v2047
    %v2053 = vadd.f32 %v179, %v2048
    %v2054 = vadd.f32 %v184, %v2049
    %v2055 = vld [vmem:[%s8] sm:$0x1]
    %v2057 = vlaneseq
    %v2058 = vshrl.u32 %v2057, 7
    %v2059 = vsub.s32 0, %v2058
    %v2060 = vrot.slane %v2055, %v2059
    %v2062 = vadd.f32 %v2050, %v2060
    %v2063 = vadd.f32 %v2051, %v2060
    %v2064 = vadd.f32 %v2052, %v2060
    %v2065 = vadd.f32 %v2053, %v2060
    %v2066 = vadd.f32 %v2054, %v2060
    %v2067 = vld [vmem:[%s9] sm:$0x1]
    %v2068 = vld [vmem:[%s10] sm:$0x1]
    %v2069 = vsel %vm194, %v2062, 0.0
    %2070 = vadd.xlane.f32.xlu0 %v2069
    %v2071 = vpop.xlane.xlu0 %2070
    %v2072 = vsel %vm194, %v2063, 0.0
    %2073 = vadd.xlane.f32.xlu0 %v2072
    %v2074 = vpop.xlane.xlu0 %2073
    %v2075 = vsel %vm194, %v2064, 0.0
    %2076 = vadd.xlane.f32.xlu0 %v2075
    %v2077 = vpop.xlane.xlu0 %2076
    %v2078 = vsel %vm194, %v2065, 0.0
    %2079 = vadd.xlane.f32.xlu0 %v2078
    %v2080 = vpop.xlane.xlu0 %2079
    %v2081 = vsel %vm207, %v2066, 0.0
    %2082 = vadd.xlane.f32.xlu0 %v2081
    %v2083 = vpop.xlane.xlu0 %2082
    %v2084 = vmul.f32 %v2071, %v211
    %v2085 = vmul.f32 %v2074, %v211
    %v2086 = vmul.f32 %v2077, %v211
    %v2087 = vmul.f32 %v2080, %v211
    %v2088 = vmul.f32 %v2083, %v211
    %v2089 = vsub.f32 %v2062, %v2084
    %v2090 = vsub.f32 %v2063, %v2085
    %v2091 = vsub.f32 %v2064, %v2086
    %v2092 = vsub.f32 %v2065, %v2087
    %v2093 = vsub.f32 %v2066, %v2088
    %v2094 = vmul.f32 %v2089, %v2089
    %v2095 = vmul.f32 %v2090, %v2090
    %v2096 = vmul.f32 %v2091, %v2091
    %v2097 = vmul.f32 %v2092, %v2092
    %v2098 = vmul.f32 %v2093, %v2093
    %v2099 = vsel %vm194, %v2094, 0.0
    %2100 = vadd.xlane.f32.xlu0 %v2099
    %v2101 = vpop.xlane.xlu0 %2100
    %v2102 = vsel %vm194, %v2095, 0.0
    %2103 = vadd.xlane.f32.xlu0 %v2102
    %v2104 = vpop.xlane.xlu0 %2103
    %v2105 = vsel %vm194, %v2096, 0.0
    %2106 = vadd.xlane.f32.xlu0 %v2105
    %v2107 = vpop.xlane.xlu0 %2106
    %v2108 = vsel %vm194, %v2097, 0.0
    %2109 = vadd.xlane.f32.xlu0 %v2108
    %v2110 = vpop.xlane.xlu0 %2109
    %v2111 = vsel %vm207, %v2098, 0.0
    %2112 = vadd.xlane.f32.xlu0 %v2111
    %v2113 = vpop.xlane.xlu0 %2112
    %v2114 = vmul.f32 %v2101, %v211
    %v2115 = vmul.f32 %v2104, %v211
    %v2116 = vmul.f32 %v2107, %v211
    %v2117 = vmul.f32 %v2110, %v211
    %v2118 = vmul.f32 %v2113, %v211
    %v2119 = vadd.f32 %v2114, 1e-05
    %v2120 = vadd.f32 %v2115, 1e-05
    %v2121 = vadd.f32 %v2116, 1e-05
    %v2122 = vadd.f32 %v2117, 1e-05
    %v2123 = vadd.f32 %v2118, 1e-05
    %v2124 = vrsqrt.pop %v2119
    %v2125 = vrsqrt.pop %v2120
    %v2126 = vrsqrt.pop %v2121
    %v2127 = vrsqrt.pop %v2122
    %v2128 = vrsqrt.pop %v2123
    %v2129 = vmul.f32 %v2089, %v2124
    %v2130 = vmul.f32 %v2090, %v2125
    %v2131 = vmul.f32 %v2091, %v2126
    %v2132 = vmul.f32 %v2092, %v2127
    %v2133 = vmul.f32 %v2093, %v2128
    %v2135 = vlaneseq
    %v2136 = vshrl.u32 %v2135, 7
    %v2137 = vsub.s32 0, %v2136
    %v2138 = vrot.slane %v2067, %v2137
    %v2140 = vmul.f32 %v2129, %v2138
    %v2141 = vmul.f32 %v2130, %v2138
    %v2142 = vmul.f32 %v2131, %v2138
    %v2143 = vmul.f32 %v2132, %v2138
    %v2144 = vmul.f32 %v2133, %v2138
    %v2146 = vlaneseq
    %v2147 = vshrl.u32 %v2146, 7
    %v2148 = vsub.s32 0, %v2147
    %v2149 = vrot.slane %v2068, %v2148
    %v2151 = vadd.f32 %v2140, %v2149
    %v2152 = vadd.f32 %v2141, %v2149
    %v2153 = vadd.f32 %v2142, %v2149
    %v2154 = vadd.f32 %v2143, %v2149
    %v2155 = vadd.f32 %v2144, %v2149
    %v2156 = vld [vmem:[%s11] sm:$0xff]
    %v2157 = vld [vmem:[%s11 + $0x8] sm:$0xff]
    %v2158 = vld [vmem:[%s11 + $0x10] sm:$0xff]
    %v2159 = vld [vmem:[%s11 + $0x18] sm:$0xff]
    %v2160 = vld [vmem:[%s12] sm:$0x1]
    %v2162 = vlaneseq
    %v2163 = vshrl.u32 %v2162, 7
    %v2164 = vsub.s32 0, %v2163
    %v2165 = vrot.slane %v2160, %v2164
    %v2168 = vsel %vm194, %v2151, 0
    %v2171 = vsel %vm194, %v2152, 0
    %v2174 = vsel %vm194, %v2153, 0
    %v2177 = vsel %vm194, %v2154, 0
    %v2180 = vsel %vm194, %v2155, 0
    %2182 = vmatprep.subr.mxu0 0.0
    %2183 = vmatpush1.msra.mxu0 0.0
    %2184 = vmatprep.subr.mxu0 0.0
    %2185 = vmatpush1.msra.mxu0 0.0
    %2186 = vmatprep.subr.mxu0 0.0
    %2187 = vmatpush1.msra.mxu0 0.0
    %2188 = vmatprep.subr.mxu0 0.0
    %2189 = vmatpush1.msra.mxu0 0.0
    %2190 = vmatprep.subr.mxu0 0.0
    %2191 = vmatpush1.msra.mxu0 0.0
    %2192 = vmatprep.subr.mxu0 0.0
    %2193 = vmatpush1.msra.mxu0 0.0
    %2194 = vmatprep.subr.mxu0 0.0
    %2195 = vmatpush1.msra.mxu0 0.0
    %2196 = vmatprep.subr.mxu0 0.0
    %2197 = vmatpush1.msra.mxu0 0.0
    %2198 = vmatprep.subr.mxu0 0.0
    %2199 = vmatpush1.msra.mxu0 0.0
    %2200 = vmatprep.subr.mxu0 0.0
    %2201 = vmatpush1.msra.mxu0 0.0
    %2202 = vmatprep.subr.mxu0 0.0
    %2203 = vmatpush1.msra.mxu0 0.0
    %2204 = vmatprep.subr.mxu0 0.0
    %2205 = vmatpush1.msra.mxu0 0.0
    %2206 = vmatprep.subr.mxu0 0.0
    %2207 = vmatpush1.msra.mxu0 %v2159
    %2208 = vmatprep.subr.mxu0 0.0
    %2209 = vmatpush1.msra.mxu0 %v2158
    %2210 = vmatprep.subr.mxu0 0.0
    %2211 = vmatpush1.msra.mxu0 %v2157
    %2212 = vmatprep.subr.mxu0 0.0
    %2213 = vmatpush1.msra.mxu0 %v2156
    %2214 = vmatprep.subr.mxu0 0.0
    %2215 = vmatpush2.msra.mxu0 0.0
    %2216 = vmatprep.subr.mxu0 0.0
    %2217 = vmatpush2.msra.mxu0 0.0
    %2218 = vmatprep.subr.mxu0 0.0
    %2219 = vmatpush2.msra.mxu0 0.0
    %2220 = vmatprep.subr.mxu0 0.0
    %2221 = vmatpush2.msra.mxu0 0.0
    %2222 = vmatprep.subr.mxu0 0.0
    %2223 = vmatpush2.msra.mxu0 0.0
    %2224 = vmatprep.subr.mxu0 0.0
    %2225 = vmatpush2.msra.mxu0 0.0
    %2226 = vmatprep.subr.mxu0 0.0
    %2227 = vmatpush2.msra.mxu0 0.0
    %2228 = vmatprep.subr.mxu0 0.0
    %2229 = vmatpush2.msra.mxu0 0.0
    %2230 = vmatprep.subr.mxu0 0.0
    %2231 = vmatpush2.msra.mxu0 0.0
    %2232 = vmatprep.subr.mxu0 0.0
    %2233 = vmatpush2.msra.mxu0 0.0
    %2234 = vmatprep.subr.mxu0 0.0
    %2235 = vmatpush2.msra.mxu0 0.0
    %2236 = vmatprep.subr.mxu0 0.0
    %2237 = vmatpush2.msra.mxu0 0.0
    %2238 = vmatprep.subr.mxu0 0.0
    %2239 = vmatpush2.msra.mxu0 0.0
    %2240 = vmatprep.subr.mxu0 0.0
    %2241 = vmatpush2.msra.mxu0 0.0
    %2242 = vmatprep.subr.mxu0 0.0
    %2243 = vmatpush2.msra.mxu0 0.0
    %2244 = vmatprep.subr.mxu0 0.0
    %2245 = vmatpush2.msra.mxu0 0.0
    %2246 = vmatprep.mubr.f32.mxu0 0.0
    %2247 = vmatmul.mubr.f32.gmra.mxu0 %v2168
    %v2248 = vpop.f32.mrf.mxu0
    %v2249 = vadd.f32 %v2165, %v2248
    %v2250 = vpop.f32.mrf.mxu0
    %2251 = vmatprep.mubr.f32.mxu0 0.0
    %2252 = vmatmul.mubr.f32.gmra.mxu0 %v2171
    %v2253 = vpop.f32.mrf.mxu0
    %v2254 = vadd.f32 %v2165, %v2253
    %v2255 = vpop.f32.mrf.mxu0
    %2256 = vmatprep.mubr.f32.mxu0 0.0
    %2257 = vmatmul.mubr.f32.gmra.mxu0 %v2174
    %v2258 = vpop.f32.mrf.mxu0
    %v2259 = vadd.f32 %v2165, %v2258
    %v2260 = vpop.f32.mrf.mxu0
    %2261 = vmatprep.mubr.f32.mxu0 0.0
    %2262 = vmatmul.mubr.f32.gmra.mxu0 %v2177
    %v2263 = vpop.f32.mrf.mxu0
    %v2264 = vadd.f32 %v2165, %v2263
    %v2265 = vpop.f32.mrf.mxu0
    %2266 = vmatprep.mubr.f32.mxu0 0.0
    %2267 = vmatmul.mubr.f32.gmra.mxu0 %v2180
    %v2268 = vpop.f32.mrf.mxu0
    %v2269 = vadd.f32 %v2165, %v2268
    %v2270 = vpop.f32.mrf.mxu0
    %2271 = vdwg.mxu0
    %v2272 = vmul.f32 %v2249, 0.5
    %v2273 = vmul.f32 %v2254, 0.5
    %v2274 = vmul.f32 %v2259, 0.5
    %v2275 = vmul.f32 %v2264, 0.5
    %v2276 = vmul.f32 %v2269, 0.5
    %v2277 = vmul.f32 %v2249, 0.044715
    %v2278 = vmul.f32 %v2254, 0.044715
    %v2279 = vmul.f32 %v2259, 0.044715
    %v2280 = vmul.f32 %v2264, 0.044715
    %v2281 = vmul.f32 %v2269, 0.044715
    %v2282 = vmul.f32 %v2277, %v2249
    %v2283 = vmul.f32 %v2278, %v2254
    %v2284 = vmul.f32 %v2279, %v2259
    %v2285 = vmul.f32 %v2280, %v2264
    %v2286 = vmul.f32 %v2281, %v2269
    %v2287 = vmul.f32 %v2282, %v2249
    %v2288 = vmul.f32 %v2283, %v2254
    %v2289 = vmul.f32 %v2284, %v2259
    %v2290 = vmul.f32 %v2285, %v2264
    %v2291 = vmul.f32 %v2286, %v2269
    %v2292 = vadd.f32 %v2249, %v2287
    %v2293 = vadd.f32 %v2254, %v2288
    %v2294 = vadd.f32 %v2259, %v2289
    %v2295 = vadd.f32 %v2264, %v2290
    %v2296 = vadd.f32 %v2269, %v2291
    %v2297 = vmul.f32 %v2292, 0.7978846
    %v2298 = vmul.f32 %v2293, 0.7978846
    %v2299 = vmul.f32 %v2294, 0.7978846
    %v2300 = vmul.f32 %v2295, 0.7978846
    %v2301 = vmul.f32 %v2296, 0.7978846
    %v2302 = vtanh.pop %v2297
    %v2303 = vtanh.pop %v2298
    %v2304 = vtanh.pop %v2299
    %v2305 = vtanh.pop %v2300
    %v2306 = vtanh.pop %v2301
    %v2307 = vadd.f32 %v2302, 1.0
    %v2308 = vadd.f32 %v2303, 1.0
    %v2309 = vadd.f32 %v2304, 1.0
    %v2310 = vadd.f32 %v2305, 1.0
    %v2311 = vadd.f32 %v2306, 1.0
    %v2312 = vmul.f32 %v2272, %v2307
    %v2313 = vmul.f32 %v2273, %v2308
    %v2314 = vmul.f32 %v2274, %v2309
    %v2315 = vmul.f32 %v2275, %v2310
    %v2316 = vmul.f32 %v2276, %v2311
    %v2317 = vld [vmem:[%s13] sm:$0xff]
    %v2318 = vld [vmem:[%s13 + $0x8] sm:$0xff]
    %v2319 = vld [vmem:[%s13 + $0x10] sm:$0xff]
    %v2320 = vld [vmem:[%s13 + $0x18] sm:$0xff]
    %v2321 = vld [vmem:[%s13 + $0x20] sm:$0xff]
    %v2322 = vld [vmem:[%s13 + $0x28] sm:$0xff]
    %v2323 = vld [vmem:[%s13 + $0x30] sm:$0xff]
    %v2324 = vld [vmem:[%s13 + $0x38] sm:$0xff]
    %v2325 = vld [vmem:[%s14] sm:$0x1]
    %v2327 = vlaneseq
    %v2328 = vshrl.u32 %v2327, 7
    %v2329 = vsub.s32 0, %v2328
    %v2330 = vrot.slane %v2325, %v2329
    %v2333 = vsel %vm81, %v2312, 0
    %v2336 = vsel %vm81, %v2313, 0
    %v2339 = vsel %vm81, %v2314, 0
    %v2342 = vsel %vm81, %v2315, 0
    %v2345 = vsel %vm81, %v2316, 0
    %2347 = vmatprep.subr.mxu0 0.0
    %2348 = vmatpush1.msra.mxu0 0.0
    %2349 = vmatprep.subr.mxu0 0.0
    %2350 = vmatpush1.msra.mxu0 0.0
    %2351 = vmatprep.subr.mxu0 0.0
    %2352 = vmatpush1.msra.mxu0 0.0
    %2353 = vmatprep.subr.mxu0 0.0
    %2354 = vmatpush1.msra.mxu0 0.0
    %2355 = vmatprep.subr.mxu0 0.0
    %2356 = vmatpush1.msra.mxu0 0.0
    %2357 = vmatprep.subr.mxu0 0.0
    %2358 = vmatpush1.msra.mxu0 0.0
    %2359 = vmatprep.subr.mxu0 0.0
    %2360 = vmatpush1.msra.mxu0 0.0
    %2361 = vmatprep.subr.mxu0 0.0
    %2362 = vmatpush1.msra.mxu0 0.0
    %2363 = vmatprep.subr.mxu0 0.0
    %2364 = vmatpush1.msra.mxu0 %v2324
    %2365 = vmatprep.subr.mxu0 0.0
    %2366 = vmatpush1.msra.mxu0 %v2323
    %2367 = vmatprep.subr.mxu0 0.0
    %2368 = vmatpush1.msra.mxu0 %v2322
    %2369 = vmatprep.subr.mxu0 0.0
    %2370 = vmatpush1.msra.mxu0 %v2321
    %2371 = vmatprep.subr.mxu0 0.0
    %2372 = vmatpush1.msra.mxu0 %v2320
    %2373 = vmatprep.subr.mxu0 0.0
    %2374 = vmatpush1.msra.mxu0 %v2319
    %2375 = vmatprep.subr.mxu0 0.0
    %2376 = vmatpush1.msra.mxu0 %v2318
    %2377 = vmatprep.subr.mxu0 0.0
    %2378 = vmatpush1.msra.mxu0 %v2317
    %2379 = vmatprep.subr.mxu0 0.0
    %2380 = vmatpush2.msra.mxu0 0.0
    %2381 = vmatprep.subr.mxu0 0.0
    %2382 = vmatpush2.msra.mxu0 0.0
    %2383 = vmatprep.subr.mxu0 0.0
    %2384 = vmatpush2.msra.mxu0 0.0
    %2385 = vmatprep.subr.mxu0 0.0
    %2386 = vmatpush2.msra.mxu0 0.0
    %2387 = vmatprep.subr.mxu0 0.0
    %2388 = vmatpush2.msra.mxu0 0.0
    %2389 = vmatprep.subr.mxu0 0.0
    %2390 = vmatpush2.msra.mxu0 0.0
    %2391 = vmatprep.subr.mxu0 0.0
    %2392 = vmatpush2.msra.mxu0 0.0
    %2393 = vmatprep.subr.mxu0 0.0
    %2394 = vmatpush2.msra.mxu0 0.0
    %2395 = vmatprep.subr.mxu0 0.0
    %2396 = vmatpush2.msra.mxu0 0.0
    %2397 = vmatprep.subr.mxu0 0.0
    %2398 = vmatpush2.msra.mxu0 0.0
    %2399 = vmatprep.subr.mxu0 0.0
    %2400 = vmatpush2.msra.mxu0 0.0
    %2401 = vmatprep.subr.mxu0 0.0
    %2402 = vmatpush2.msra.mxu0 0.0
    %2403 = vmatprep.subr.mxu0 0.0
    %2404 = vmatpush2.msra.mxu0 0.0
    %2405 = vmatprep.subr.mxu0 0.0
    %2406 = vmatpush2.msra.mxu0 0.0
    %2407 = vmatprep.subr.mxu0 0.0
    %2408 = vmatpush2.msra.mxu0 0.0
    %2409 = vmatprep.subr.mxu0 0.0
    %2410 = vmatpush2.msra.mxu0 0.0
    %2411 = vmatprep.mubr.f32.mxu0 0.0
    %2412 = vmatmul.mubr.f32.gmra.mxu0 %v2333
    %v2413 = vpop.f32.mrf.mxu0
    %v2414 = vadd.f32 %v2330, %v2413
    %v2415 = vpop.f32.mrf.mxu0
    %2416 = vmatprep.mubr.f32.mxu0 0.0
    %2417 = vmatmul.mubr.f32.gmra.mxu0 %v2336
    %v2418 = vpop.f32.mrf.mxu0
    %v2419 = vadd.f32 %v2330, %v2418
    %v2420 = vpop.f32.mrf.mxu0
    %2421 = vmatprep.mubr.f32.mxu0 0.0
    %2422 = vmatmul.mubr.f32.gmra.mxu0 %v2339
    %v2423 = vpop.f32.mrf.mxu0
    %v2424 = vadd.f32 %v2330, %v2423
    %v2425 = vpop.f32.mrf.mxu0
    %2426 = vmatprep.mubr.f32.mxu0 0.0
    %2427 = vmatmul.mubr.f32.gmra.mxu0 %v2342
    %v2428 = vpop.f32.mrf.mxu0
    %v2429 = vadd.f32 %v2330, %v2428
    %v2430 = vpop.f32.mrf.mxu0
    %2431 = vmatprep.mubr.f32.mxu0 0.0
    %2432 = vmatmul.mubr.f32.gmra.mxu0 %v2345
    %v2433 = vpop.f32.mrf.mxu0
    %v2434 = vadd.f32 %v2330, %v2433
    %v2435 = vpop.f32.mrf.mxu0
    %2436 = vdwg.mxu0
    %v2437 = vadd.f32 %v2062, %v2414
    %v2438 = vadd.f32 %v2063, %v2419
    %v2439 = vadd.f32 %v2064, %v2424
    %v2440 = vadd.f32 %v2065, %v2429
    %v2441 = vadd.f32 %v2066, %v2434
    %s2442 = scalar_lea.vmem %s4, 1
    %v2443 = vld [vmem:[%s2442] sm:$0x1]
    %s2444 = scalar_lea.vmem %s5, 1
    %v2445 = vld [vmem:[%s2444] sm:$0x1]
    %v2446 = vsel %vm194, %v2437, 0.0
    %2447 = vadd.xlane.f32.xlu0 %v2446
    %v2448 = vpop.xlane.xlu0 %2447
    %v2449 = vsel %vm194, %v2438, 0.0
    %2450 = vadd.xlane.f32.xlu0 %v2449
    %v2451 = vpop.xlane.xlu0 %2450
    %v2452 = vsel %vm194, %v2439, 0.0
    %2453 = vadd.xlane.f32.xlu0 %v2452
    %v2454 = vpop.xlane.xlu0 %2453
    %v2455 = vsel %vm194, %v2440, 0.0
    %2456 = vadd.xlane.f32.xlu0 %v2455
    %v2457 = vpop.xlane.xlu0 %2456
    %v2458 = vsel %vm207, %v2441, 0.0
    %2459 = vadd.xlane.f32.xlu0 %v2458
    %v2460 = vpop.xlane.xlu0 %2459
    %v2461 = vmul.f32 %v2448, %v211
    %v2462 = vmul.f32 %v2451, %v211
    %v2463 = vmul.f32 %v2454, %v211
    %v2464 = vmul.f32 %v2457, %v211
    %v2465 = vmul.f32 %v2460, %v211
    %v2466 = vsub.f32 %v2437, %v2461
    %v2467 = vsub.f32 %v2438, %v2462
    %v2468 = vsub.f32 %v2439, %v2463
    %v2469 = vsub.f32 %v2440, %v2464
    %v2470 = vsub.f32 %v2441, %v2465
    %v2471 = vmul.f32 %v2466, %v2466
    %v2472 = vmul.f32 %v2467, %v2467
    %v2473 = vmul.f32 %v2468, %v2468
    %v2474 = vmul.f32 %v2469, %v2469
    %v2475 = vmul.f32 %v2470, %v2470
    %v2476 = vsel %vm194, %v2471, 0.0
    %2477 = vadd.xlane.f32.xlu0 %v2476
    %v2478 = vpop.xlane.xlu0 %2477
    %v2479 = vsel %vm194, %v2472, 0.0
    %2480 = vadd.xlane.f32.xlu0 %v2479
    %v2481 = vpop.xlane.xlu0 %2480
    %v2482 = vsel %vm194, %v2473, 0.0
    %2483 = vadd.xlane.f32.xlu0 %v2482
    %v2484 = vpop.xlane.xlu0 %2483
    %v2485 = vsel %vm194, %v2474, 0.0
    %2486 = vadd.xlane.f32.xlu0 %v2485
    %v2487 = vpop.xlane.xlu0 %2486
    %v2488 = vsel %vm207, %v2475, 0.0
    %2489 = vadd.xlane.f32.xlu0 %v2488
    %v2490 = vpop.xlane.xlu0 %2489
    %v2491 = vmul.f32 %v2478, %v211
    %v2492 = vmul.f32 %v2481, %v211
    %v2493 = vmul.f32 %v2484, %v211
    %v2494 = vmul.f32 %v2487, %v211
    %v2495 = vmul.f32 %v2490, %v211
    %v2496 = vadd.f32 %v2491, 1e-05
    %v2497 = vadd.f32 %v2492, 1e-05
    %v2498 = vadd.f32 %v2493, 1e-05
    %v2499 = vadd.f32 %v2494, 1e-05
    %v2500 = vadd.f32 %v2495, 1e-05
    %v2501 = vrsqrt.pop %v2496
    %v2502 = vrsqrt.pop %v2497
    %v2503 = vrsqrt.pop %v2498
    %v2504 = vrsqrt.pop %v2499
    %v2505 = vrsqrt.pop %v2500
    %v2506 = vmul.f32 %v2466, %v2501
    %v2507 = vmul.f32 %v2467, %v2502
    %v2508 = vmul.f32 %v2468, %v2503
    %v2509 = vmul.f32 %v2469, %v2504
    %v2510 = vmul.f32 %v2470, %v2505
    %v2512 = vlaneseq
    %v2513 = vshrl.u32 %v2512, 7
    %v2514 = vsub.s32 0, %v2513
    %v2515 = vrot.slane %v2443, %v2514
    %v2517 = vmul.f32 %v2506, %v2515
    %v2518 = vmul.f32 %v2507, %v2515
    %v2519 = vmul.f32 %v2508, %v2515
    %v2520 = vmul.f32 %v2509, %v2515
    %v2521 = vmul.f32 %v2510, %v2515
    %v2523 = vlaneseq
    %v2524 = vshrl.u32 %v2523, 7
    %v2525 = vsub.s32 0, %v2524
    %v2526 = vrot.slane %v2445, %v2525
    %v2528 = vadd.f32 %v2517, %v2526
    %v2529 = vadd.f32 %v2518, %v2526
    %v2530 = vadd.f32 %v2519, %v2526
    %v2531 = vadd.f32 %v2520, %v2526
    %v2532 = vadd.f32 %v2521, %v2526
    %s2533 = scalar_lea.vmem %s6, 32
    %v2534 = vld [vmem:[%s2533] sm:$0xff]
    %v2535 = vld [vmem:[%s2533 + $0x8] sm:$0xff]
    %v2536 = vld [vmem:[%s2533 + $0x10] sm:$0xff]
    %v2537 = vld [vmem:[%s2533 + $0x18] sm:$0xff]
    %v2539 = vsel %vm194, %v2528, 0
    %v2542 = vsel %vm194, %v2529, 0
    %v2545 = vsel %vm194, %v2530, 0
    %v2548 = vsel %vm194, %v2531, 0
    %v2551 = vsel %vm194, %v2532, 0
    %2553 = vmatprep.subr.mxu0 0.0
    %2554 = vmatpush1.msra.mxu0 0.0
    %2555 = vmatprep.subr.mxu0 0.0
    %2556 = vmatpush1.msra.mxu0 0.0
    %2557 = vmatprep.subr.mxu0 0.0
    %2558 = vmatpush1.msra.mxu0 0.0
    %2559 = vmatprep.subr.mxu0 0.0
    %2560 = vmatpush1.msra.mxu0 0.0
    %2561 = vmatprep.subr.mxu0 0.0
    %2562 = vmatpush1.msra.mxu0 0.0
    %2563 = vmatprep.subr.mxu0 0.0
    %2564 = vmatpush1.msra.mxu0 0.0
    %2565 = vmatprep.subr.mxu0 0.0
    %2566 = vmatpush1.msra.mxu0 0.0
    %2567 = vmatprep.subr.mxu0 0.0
    %2568 = vmatpush1.msra.mxu0 0.0
    %2569 = vmatprep.subr.mxu0 0.0
    %2570 = vmatpush1.msra.mxu0 0.0
    %2571 = vmatprep.subr.mxu0 0.0
    %2572 = vmatpush1.msra.mxu0 0.0
    %2573 = vmatprep.subr.mxu0 0.0
    %2574 = vmatpush1.msra.mxu0 0.0
    %2575 = vmatprep.subr.mxu0 0.0
    %2576 = vmatpush1.msra.mxu0 0.0
    %2577 = vmatprep.subr.mxu0 0.0
    %2578 = vmatpush1.msra.mxu0 %v2537
    %2579 = vmatprep.subr.mxu0 0.0
    %2580 = vmatpush1.msra.mxu0 %v2536
    %2581 = vmatprep.subr.mxu0 0.0
    %2582 = vmatpush1.msra.mxu0 %v2535
    %2583 = vmatprep.subr.mxu0 0.0
    %2584 = vmatpush1.msra.mxu0 %v2534
    %2585 = vmatprep.subr.mxu0 0.0
    %2586 = vmatpush2.msra.mxu0 0.0
    %2587 = vmatprep.subr.mxu0 0.0
    %2588 = vmatpush2.msra.mxu0 0.0
    %2589 = vmatprep.subr.mxu0 0.0
    %2590 = vmatpush2.msra.mxu0 0.0
    %2591 = vmatprep.subr.mxu0 0.0
    %2592 = vmatpush2.msra.mxu0 0.0
    %2593 = vmatprep.subr.mxu0 0.0
    %2594 = vmatpush2.msra.mxu0 0.0
    %2595 = vmatprep.subr.mxu0 0.0
    %2596 = vmatpush2.msra.mxu0 0.0
    %2597 = vmatprep.subr.mxu0 0.0
    %2598 = vmatpush2.msra.mxu0 0.0
    %2599 = vmatprep.subr.mxu0 0.0
    %2600 = vmatpush2.msra.mxu0 0.0
    %2601 = vmatprep.subr.mxu0 0.0
    %2602 = vmatpush2.msra.mxu0 0.0
    %2603 = vmatprep.subr.mxu0 0.0
    %2604 = vmatpush2.msra.mxu0 0.0
    %2605 = vmatprep.subr.mxu0 0.0
    %2606 = vmatpush2.msra.mxu0 0.0
    %2607 = vmatprep.subr.mxu0 0.0
    %2608 = vmatpush2.msra.mxu0 0.0
    %2609 = vmatprep.subr.mxu0 0.0
    %2610 = vmatpush2.msra.mxu0 0.0
    %2611 = vmatprep.subr.mxu0 0.0
    %2612 = vmatpush2.msra.mxu0 0.0
    %2613 = vmatprep.subr.mxu0 0.0
    %2614 = vmatpush2.msra.mxu0 0.0
    %2615 = vmatprep.subr.mxu0 0.0
    %2616 = vmatpush2.msra.mxu0 0.0
    %2617 = vmatprep.mubr.f32.mxu0 0.0
    %2618 = vmatmul.mubr.f32.gmra.mxu0 %v2539
    %v2619 = vpop.f32.mrf.mxu0
    %v2620 = vadd.f32 0.0, %v2619
    %v2621 = vpop.f32.mrf.mxu0
    %2622 = vmatprep.mubr.f32.mxu0 0.0
    %2623 = vmatmul.mubr.f32.gmra.mxu0 %v2542
    %v2624 = vpop.f32.mrf.mxu0
    %v2625 = vadd.f32 0.0, %v2624
    %v2626 = vpop.f32.mrf.mxu0
    %2627 = vmatprep.mubr.f32.mxu0 0.0
    %2628 = vmatmul.mubr.f32.gmra.mxu0 %v2545
    %v2629 = vpop.f32.mrf.mxu0
    %v2630 = vadd.f32 0.0, %v2629
    %v2631 = vpop.f32.mrf.mxu0
    %2632 = vmatprep.mubr.f32.mxu0 0.0
    %2633 = vmatmul.mubr.f32.gmra.mxu0 %v2548
    %v2634 = vpop.f32.mrf.mxu0
    %v2635 = vadd.f32 0.0, %v2634
    %v2636 = vpop.f32.mrf.mxu0
    %2637 = vmatprep.mubr.f32.mxu0 0.0
    %2638 = vmatmul.mubr.f32.gmra.mxu0 %v2551
    %v2639 = vpop.f32.mrf.mxu0
    %v2640 = vadd.f32 0.0, %v2639
    %v2641 = vpop.f32.mrf.mxu0
    %2642 = vdwg.mxu0
    %2648 = vrot.lane.b32.xlu0 %v2620, 120
    %v2649 = vpop.permute.xlu0 %2648
    %2650 = vrot.lane.b32.xlu0 %v2625, 120
    %v2651 = vpop.permute.xlu0 %2650
    %2652 = vrot.lane.b32.xlu0 %v2630, 120
    %v2653 = vpop.permute.xlu0 %2652
    %2654 = vrot.lane.b32.xlu0 %v2635, 120
    %v2655 = vpop.permute.xlu0 %2654
    %2656 = vrot.lane.b32.xlu0 %v2640, 120
    %v2657 = vpop.permute.xlu0 %2656
    %2658 = vrot.lane.b32.xlu0 %v2620, 112
    %v2659 = vpop.permute.xlu0 %2658
    %2660 = vrot.lane.b32.xlu0 %v2625, 112
    %v2661 = vpop.permute.xlu0 %2660
    %2662 = vrot.lane.b32.xlu0 %v2630, 112
    %v2663 = vpop.permute.xlu0 %2662
    %2664 = vrot.lane.b32.xlu0 %v2635, 112
    %v2665 = vpop.permute.xlu0 %2664
    %2666 = vrot.lane.b32.xlu0 %v2640, 112
    %v2667 = vpop.permute.xlu0 %2666
    %2668 = vrot.lane.b32.xlu0 %v2620, 104
    %v2669 = vpop.permute.xlu0 %2668
    %2670 = vrot.lane.b32.xlu0 %v2625, 104
    %v2671 = vpop.permute.xlu0 %2670
    %2672 = vrot.lane.b32.xlu0 %v2630, 104
    %v2673 = vpop.permute.xlu0 %2672
    %2674 = vrot.lane.b32.xlu0 %v2635, 104
    %v2675 = vpop.permute.xlu0 %2674
    %2676 = vrot.lane.b32.xlu0 %v2640, 104
    %v2677 = vpop.permute.xlu0 %2676
    %2678 = vrot.lane.b32.xlu0 %v2620, 96
    %v2679 = vpop.permute.xlu0 %2678
    %2680 = vrot.lane.b32.xlu0 %v2625, 96
    %v2681 = vpop.permute.xlu0 %2680
    %2682 = vrot.lane.b32.xlu0 %v2630, 96
    %v2683 = vpop.permute.xlu0 %2682
    %2684 = vrot.lane.b32.xlu0 %v2635, 96
    %v2685 = vpop.permute.xlu0 %2684
    %2686 = vrot.lane.b32.xlu0 %v2640, 96
    %v2687 = vpop.permute.xlu0 %2686
    %v2688 = vsel %vm438, %v2620, 0
    %v2690 = vsel %vm438, %v2625, 0
    %v2692 = vsel %vm438, %v2630, 0
    %v2694 = vsel %vm438, %v2635, 0
    %v2696 = vsel %vm438, %v2640, 0
    %v2698 = vsel %vm438, %v2679, 0
    %v2700 = vsel %vm438, %v2681, 0
    %v2702 = vsel %vm438, %v2683, 0
    %v2704 = vsel %vm438, %v2685, 0
    %v2706 = vsel %vm438, %v2687, 0
    %2708 = vmatprep.subr.mxu0 0.0
    %2709 = vmatpush1.xpose.msra.mxu0 0.0
    %2710 = vmatprep.subr.mxu0 0.0
    %2711 = vmatpush1.xpose.msra.mxu0 0.0
    %2712 = vmatprep.subr.mxu0 0.0
    %2713 = vmatpush1.xpose.msra.mxu0 0.0
    %2714 = vmatprep.subr.mxu0 0.0
    %2715 = vmatpush1.xpose.msra.mxu0 0.0
    %2716 = vmatprep.subr.mxu0 0.0
    %2717 = vmatpush1.xpose.msra.mxu0 0.0
    %2718 = vmatprep.subr.mxu0 0.0
    %2719 = vmatpush1.xpose.msra.mxu0 0.0
    %2720 = vmatprep.subr.mxu0 0.0
    %2721 = vmatpush1.xpose.msra.mxu0 0.0
    %2722 = vmatprep.subr.mxu0 0.0
    %2723 = vmatpush1.xpose.msra.mxu0 0.0
    %2724 = vmatprep.subr.mxu0 0.0
    %2725 = vmatpush1.xpose.msra.mxu0 0.0
    %2726 = vmatprep.subr.mxu0 0.0
    %2727 = vmatpush1.xpose.msra.mxu0 0.0
    %2728 = vmatprep.subr.mxu0 0.0
    %2729 = vmatpush1.xpose.msra.mxu0 0.0
    %2730 = vmatprep.subr.mxu0 0.0
    %2731 = vmatpush1.xpose.msra.mxu0 %v2706
    %2732 = vmatprep.subr.mxu0 0.0
    %2733 = vmatpush1.xpose.msra.mxu0 %v2704
    %2734 = vmatprep.subr.mxu0 0.0
    %2735 = vmatpush1.xpose.msra.mxu0 %v2702
    %2736 = vmatprep.subr.mxu0 0.0
    %2737 = vmatpush1.xpose.msra.mxu0 %v2700
    %2738 = vmatprep.subr.mxu0 0.0
    %2739 = vmatpush1.xpose.msra.mxu0 %v2698
    %2740 = vmatprep.subr.mxu0 0.0
    %2741 = vmatpush2.xpose.msra.mxu0 0.0
    %2742 = vmatprep.subr.mxu0 0.0
    %2743 = vmatpush2.xpose.msra.mxu0 0.0
    %2744 = vmatprep.subr.mxu0 0.0
    %2745 = vmatpush2.xpose.msra.mxu0 0.0
    %2746 = vmatprep.subr.mxu0 0.0
    %2747 = vmatpush2.xpose.msra.mxu0 0.0
    %2748 = vmatprep.subr.mxu0 0.0
    %2749 = vmatpush2.xpose.msra.mxu0 0.0
    %2750 = vmatprep.subr.mxu0 0.0
    %2751 = vmatpush2.xpose.msra.mxu0 0.0
    %2752 = vmatprep.subr.mxu0 0.0
    %2753 = vmatpush2.xpose.msra.mxu0 0.0
    %2754 = vmatprep.subr.mxu0 0.0
    %2755 = vmatpush2.xpose.msra.mxu0 0.0
    %2756 = vmatprep.subr.mxu0 0.0
    %2757 = vmatpush2.xpose.msra.mxu0 0.0
    %2758 = vmatprep.subr.mxu0 0.0
    %2759 = vmatpush2.xpose.msra.mxu0 0.0
    %2760 = vmatprep.subr.mxu0 0.0
    %2761 = vmatpush2.xpose.msra.mxu0 0.0
    %2762 = vmatprep.subr.mxu0 0.0
    %2763 = vmatpush2.xpose.msra.mxu0 0.0
    %2764 = vmatprep.subr.mxu0 0.0
    %2765 = vmatpush2.xpose.msra.mxu0 0.0
    %2766 = vmatprep.subr.mxu0 0.0
    %2767 = vmatpush2.xpose.msra.mxu0 0.0
    %2768 = vmatprep.subr.mxu0 0.0
    %2769 = vmatpush2.xpose.msra.mxu0 0.0
    %2770 = vmatprep.subr.mxu0 0.0
    %2771 = vmatpush2.xpose.msra.mxu0 0.0
    %2772 = vmatprep.mubr.f32.mxu0 0.0
    %2773 = vmatmul.mubr.f32.gmra.mxu0 %v2688
    %v2774 = vpop.f32.mrf.mxu0
    %v2775 = vadd.f32 %v187, %v2774
    %v2776 = vpop.f32.mrf.mxu0
    %2777 = vmatprep.mubr.f32.mxu0 0.0
    %2778 = vmatmul.mubr.f32.gmra.mxu0 %v2690
    %v2779 = vpop.f32.mrf.mxu0
    %v2780 = vadd.f32 %v188, %v2779
    %v2781 = vpop.f32.mrf.mxu0
    %2782 = vmatprep.mubr.f32.mxu0 0.0
    %2783 = vmatmul.mubr.f32.gmra.mxu0 %v2692
    %v2784 = vpop.f32.mrf.mxu0
    %v2785 = vadd.f32 %v189, %v2784
    %v2786 = vpop.f32.mrf.mxu0
    %2787 = vmatprep.mubr.f32.mxu0 0.0
    %2788 = vmatmul.mubr.f32.gmra.mxu0 %v2694
    %v2789 = vpop.f32.mrf.mxu0
    %v2790 = vadd.f32 %v190, %v2789
    %v2791 = vpop.f32.mrf.mxu0
    %2792 = vmatprep.mubr.f32.mxu0 0.0
    %2793 = vmatmul.mubr.f32.gmra.mxu0 %v2696
    %v2794 = vpop.f32.mrf.mxu0
    %v2795 = vadd.f32 %v191, %v2794
    %v2796 = vpop.f32.mrf.mxu0
    %2797 = vdwg.mxu0
    %2798 = vrot.lane.b32.xlu0 %v2649, 96
    %v2799 = vpop.permute.xlu0 %2798
    %2800 = vrot.lane.b32.xlu0 %v2651, 96
    %v2801 = vpop.permute.xlu0 %2800
    %2802 = vrot.lane.b32.xlu0 %v2653, 96
    %v2803 = vpop.permute.xlu0 %2802
    %2804 = vrot.lane.b32.xlu0 %v2655, 96
    %v2805 = vpop.permute.xlu0 %2804
    %2806 = vrot.lane.b32.xlu0 %v2657, 96
    %v2807 = vpop.permute.xlu0 %2806
    %v2808 = vsel %vm438, %v2649, 0
    %v2810 = vsel %vm438, %v2651, 0
    %v2812 = vsel %vm438, %v2653, 0
    %v2814 = vsel %vm438, %v2655, 0
    %v2816 = vsel %vm438, %v2657, 0
    %v2818 = vsel %vm438, %v2799, 0
    %v2820 = vsel %vm438, %v2801, 0
    %v2822 = vsel %vm438, %v2803, 0
    %v2824 = vsel %vm438, %v2805, 0
    %v2826 = vsel %vm438, %v2807, 0
    %2828 = vmatprep.subr.mxu0 0.0
    %2829 = vmatpush1.xpose.msra.mxu0 0.0
    %2830 = vmatprep.subr.mxu0 0.0
    %2831 = vmatpush1.xpose.msra.mxu0 0.0
    %2832 = vmatprep.subr.mxu0 0.0
    %2833 = vmatpush1.xpose.msra.mxu0 0.0
    %2834 = vmatprep.subr.mxu0 0.0
    %2835 = vmatpush1.xpose.msra.mxu0 0.0
    %2836 = vmatprep.subr.mxu0 0.0
    %2837 = vmatpush1.xpose.msra.mxu0 0.0
    %2838 = vmatprep.subr.mxu0 0.0
    %2839 = vmatpush1.xpose.msra.mxu0 0.0
    %2840 = vmatprep.subr.mxu0 0.0
    %2841 = vmatpush1.xpose.msra.mxu0 0.0
    %2842 = vmatprep.subr.mxu0 0.0
    %2843 = vmatpush1.xpose.msra.mxu0 0.0
    %2844 = vmatprep.subr.mxu0 0.0
    %2845 = vmatpush1.xpose.msra.mxu0 0.0
    %2846 = vmatprep.subr.mxu0 0.0
    %2847 = vmatpush1.xpose.msra.mxu0 0.0
    %2848 = vmatprep.subr.mxu0 0.0
    %2849 = vmatpush1.xpose.msra.mxu0 0.0
    %2850 = vmatprep.subr.mxu0 0.0
    %2851 = vmatpush1.xpose.msra.mxu0 %v2826
    %2852 = vmatprep.subr.mxu0 0.0
    %2853 = vmatpush1.xpose.msra.mxu0 %v2824
    %2854 = vmatprep.subr.mxu0 0.0
    %2855 = vmatpush1.xpose.msra.mxu0 %v2822
    %2856 = vmatprep.subr.mxu0 0.0
    %2857 = vmatpush1.xpose.msra.mxu0 %v2820
    %2858 = vmatprep.subr.mxu0 0.0
    %2859 = vmatpush1.xpose.msra.mxu0 %v2818
    %2860 = vmatprep.subr.mxu0 0.0
    %2861 = vmatpush2.xpose.msra.mxu0 0.0
    %2862 = vmatprep.subr.mxu0 0.0
    %2863 = vmatpush2.xpose.msra.mxu0 0.0
    %2864 = vmatprep.subr.mxu0 0.0
    %2865 = vmatpush2.xpose.msra.mxu0 0.0
    %2866 = vmatprep.subr.mxu0 0.0
    %2867 = vmatpush2.xpose.msra.mxu0 0.0
    %2868 = vmatprep.subr.mxu0 0.0
    %2869 = vmatpush2.xpose.msra.mxu0 0.0
    %2870 = vmatprep.subr.mxu0 0.0
    %2871 = vmatpush2.xpose.msra.mxu0 0.0
    %2872 = vmatprep.subr.mxu0 0.0
    %2873 = vmatpush2.xpose.msra.mxu0 0.0
    %2874 = vmatprep.subr.mxu0 0.0
    %2875 = vmatpush2.xpose.msra.mxu0 0.0
    %2876 = vmatprep.subr.mxu0 0.0
    %2877 = vmatpush2.xpose.msra.mxu0 0.0
    %2878 = vmatprep.subr.mxu0 0.0
    %2879 = vmatpush2.xpose.msra.mxu0 0.0
    %2880 = vmatprep.subr.mxu0 0.0
    %2881 = vmatpush2.xpose.msra.mxu0 0.0
    %2882 = vmatprep.subr.mxu0 0.0
    %2883 = vmatpush2.xpose.msra.mxu0 0.0
    %2884 = vmatprep.subr.mxu0 0.0
    %2885 = vmatpush2.xpose.msra.mxu0 0.0
    %2886 = vmatprep.subr.mxu0 0.0
    %2887 = vmatpush2.xpose.msra.mxu0 0.0
    %2888 = vmatprep.subr.mxu0 0.0
    %2889 = vmatpush2.xpose.msra.mxu0 0.0
    %2890 = vmatprep.subr.mxu0 0.0
    %2891 = vmatpush2.xpose.msra.mxu0 0.0
    %2892 = vmatprep.mubr.f32.mxu0 0.0
    %2893 = vmatmul.mubr.f32.gmra.mxu0 %v2808
    %v2894 = vpop.f32.mrf.mxu0
    %v2895 = vadd.f32 %v187, %v2894
    %v2896 = vpop.f32.mrf.mxu0
    %2897 = vmatprep.mubr.f32.mxu0 0.0
    %2898 = vmatmul.mubr.f32.gmra.mxu0 %v2810
    %v2899 = vpop.f32.mrf.mxu0
    %v2900 = vadd.f32 %v188, %v2899
    %v2901 = vpop.f32.mrf.mxu0
    %2902 = vmatprep.mubr.f32.mxu0 0.0
    %2903 = vmatmul.mubr.f32.gmra.mxu0 %v2812
    %v2904 = vpop.f32.mrf.mxu0
    %v2905 = vadd.f32 %v189, %v2904
    %v2906 = vpop.f32.mrf.mxu0
    %2907 = vmatprep.mubr.f32.mxu0 0.0
    %2908 = vmatmul.mubr.f32.gmra.mxu0 %v2814
    %v2909 = vpop.f32.mrf.mxu0
    %v2910 = vadd.f32 %v190, %v2909
    %v2911 = vpop.f32.mrf.mxu0
    %2912 = vmatprep.mubr.f32.mxu0 0.0
    %2913 = vmatmul.mubr.f32.gmra.mxu0 %v2816
    %v2914 = vpop.f32.mrf.mxu0
    %v2915 = vadd.f32 %v191, %v2914
    %v2916 = vpop.f32.mrf.mxu0
    %2917 = vdwg.mxu0
    %2918 = vrot.lane.b32.xlu0 %v2659, 96
    %v2919 = vpop.permute.xlu0 %2918
    %2920 = vrot.lane.b32.xlu0 %v2661, 96
    %v2921 = vpop.permute.xlu0 %2920
    %2922 = vrot.lane.b32.xlu0 %v2663, 96
    %v2923 = vpop.permute.xlu0 %2922
    %2924 = vrot.lane.b32.xlu0 %v2665, 96
    %v2925 = vpop.permute.xlu0 %2924
    %2926 = vrot.lane.b32.xlu0 %v2667, 96
    %v2927 = vpop.permute.xlu0 %2926
    %v2928 = vsel %vm438, %v2659, 0
    %v2930 = vsel %vm438, %v2661, 0
    %v2932 = vsel %vm438, %v2663, 0
    %v2934 = vsel %vm438, %v2665, 0
    %v2936 = vsel %vm438, %v2667, 0
    %v2938 = vsel %vm438, %v2919, 0
    %v2940 = vsel %vm438, %v2921, 0
    %v2942 = vsel %vm438, %v2923, 0
    %v2944 = vsel %vm438, %v2925, 0
    %v2946 = vsel %vm438, %v2927, 0
    %2948 = vmatprep.subr.mxu0 0.0
    %2949 = vmatpush1.xpose.msra.mxu0 0.0
    %2950 = vmatprep.subr.mxu0 0.0
    %2951 = vmatpush1.xpose.msra.mxu0 0.0
    %2952 = vmatprep.subr.mxu0 0.0
    %2953 = vmatpush1.xpose.msra.mxu0 0.0
    %2954 = vmatprep.subr.mxu0 0.0
    %2955 = vmatpush1.xpose.msra.mxu0 0.0
    %2956 = vmatprep.subr.mxu0 0.0
    %2957 = vmatpush1.xpose.msra.mxu0 0.0
    %2958 = vmatprep.subr.mxu0 0.0
    %2959 = vmatpush1.xpose.msra.mxu0 0.0
    %2960 = vmatprep.subr.mxu0 0.0
    %2961 = vmatpush1.xpose.msra.mxu0 0.0
    %2962 = vmatprep.subr.mxu0 0.0
    %2963 = vmatpush1.xpose.msra.mxu0 0.0
    %2964 = vmatprep.subr.mxu0 0.0
    %2965 = vmatpush1.xpose.msra.mxu0 0.0
    %2966 = vmatprep.subr.mxu0 0.0
    %2967 = vmatpush1.xpose.msra.mxu0 0.0
    %2968 = vmatprep.subr.mxu0 0.0
    %2969 = vmatpush1.xpose.msra.mxu0 0.0
    %2970 = vmatprep.subr.mxu0 0.0
    %2971 = vmatpush1.xpose.msra.mxu0 %v2946
    %2972 = vmatprep.subr.mxu0 0.0
    %2973 = vmatpush1.xpose.msra.mxu0 %v2944
    %2974 = vmatprep.subr.mxu0 0.0
    %2975 = vmatpush1.xpose.msra.mxu0 %v2942
    %2976 = vmatprep.subr.mxu0 0.0
    %2977 = vmatpush1.xpose.msra.mxu0 %v2940
    %2978 = vmatprep.subr.mxu0 0.0
    %2979 = vmatpush1.xpose.msra.mxu0 %v2938
    %2980 = vmatprep.subr.mxu0 0.0
    %2981 = vmatpush2.xpose.msra.mxu0 0.0
    %2982 = vmatprep.subr.mxu0 0.0
    %2983 = vmatpush2.xpose.msra.mxu0 0.0
    %2984 = vmatprep.subr.mxu0 0.0
    %2985 = vmatpush2.xpose.msra.mxu0 0.0
    %2986 = vmatprep.subr.mxu0 0.0
    %2987 = vmatpush2.xpose.msra.mxu0 0.0
    %2988 = vmatprep.subr.mxu0 0.0
    %2989 = vmatpush2.xpose.msra.mxu0 0.0
    %2990 = vmatprep.subr.mxu0 0.0
    %2991 = vmatpush2.xpose.msra.mxu0 0.0
    %2992 = vmatprep.subr.mxu0 0.0
    %2993 = vmatpush2.xpose.msra.mxu0 0.0
    %2994 = vmatprep.subr.mxu0 0.0
    %2995 = vmatpush2.xpose.msra.mxu0 0.0
    %2996 = vmatprep.subr.mxu0 0.0
    %2997 = vmatpush2.xpose.msra.mxu0 0.0
    %2998 = vmatprep.subr.mxu0 0.0
    %2999 = vmatpush2.xpose.msra.mxu0 0.0
    %3000 = vmatprep.subr.mxu0 0.0
    %3001 = vmatpush2.xpose.msra.mxu0 0.0
    %3002 = vmatprep.subr.mxu0 0.0
    %3003 = vmatpush2.xpose.msra.mxu0 0.0
    %3004 = vmatprep.subr.mxu0 0.0
    %3005 = vmatpush2.xpose.msra.mxu0 0.0
    %3006 = vmatprep.subr.mxu0 0.0
    %3007 = vmatpush2.xpose.msra.mxu0 0.0
    %3008 = vmatprep.subr.mxu0 0.0
    %3009 = vmatpush2.xpose.msra.mxu0 0.0
    %3010 = vmatprep.subr.mxu0 0.0
    %3011 = vmatpush2.xpose.msra.mxu0 0.0
    %3012 = vmatprep.mubr.f32.mxu0 0.0
    %3013 = vmatmul.mubr.f32.gmra.mxu0 %v2928
    %v3014 = vpop.f32.mrf.mxu0
    %v3015 = vadd.f32 %v187, %v3014
    %v3016 = vpop.f32.mrf.mxu0
    %3017 = vmatprep.mubr.f32.mxu0 0.0
    %3018 = vmatmul.mubr.f32.gmra.mxu0 %v2930
    %v3019 = vpop.f32.mrf.mxu0
    %v3020 = vadd.f32 %v188, %v3019
    %v3021 = vpop.f32.mrf.mxu0
    %3022 = vmatprep.mubr.f32.mxu0 0.0
    %3023 = vmatmul.mubr.f32.gmra.mxu0 %v2932
    %v3024 = vpop.f32.mrf.mxu0
    %v3025 = vadd.f32 %v189, %v3024
    %v3026 = vpop.f32.mrf.mxu0
    %3027 = vmatprep.mubr.f32.mxu0 0.0
    %3028 = vmatmul.mubr.f32.gmra.mxu0 %v2934
    %v3029 = vpop.f32.mrf.mxu0
    %v3030 = vadd.f32 %v190, %v3029
    %v3031 = vpop.f32.mrf.mxu0
    %3032 = vmatprep.mubr.f32.mxu0 0.0
    %3033 = vmatmul.mubr.f32.gmra.mxu0 %v2936
    %v3034 = vpop.f32.mrf.mxu0
    %v3035 = vadd.f32 %v191, %v3034
    %v3036 = vpop.f32.mrf.mxu0
    %3037 = vdwg.mxu0
    %3038 = vrot.lane.b32.xlu0 %v2669, 96
    %v3039 = vpop.permute.xlu0 %3038
    %3040 = vrot.lane.b32.xlu0 %v2671, 96
    %v3041 = vpop.permute.xlu0 %3040
    %3042 = vrot.lane.b32.xlu0 %v2673, 96
    %v3043 = vpop.permute.xlu0 %3042
    %3044 = vrot.lane.b32.xlu0 %v2675, 96
    %v3045 = vpop.permute.xlu0 %3044
    %3046 = vrot.lane.b32.xlu0 %v2677, 96
    %v3047 = vpop.permute.xlu0 %3046
    %v3048 = vsel %vm438, %v2669, 0
    %v3050 = vsel %vm438, %v2671, 0
    %v3052 = vsel %vm438, %v2673, 0
    %v3054 = vsel %vm438, %v2675, 0
    %v3056 = vsel %vm438, %v2677, 0
    %v3058 = vsel %vm438, %v3039, 0
    %v3060 = vsel %vm438, %v3041, 0
    %v3062 = vsel %vm438, %v3043, 0
    %v3064 = vsel %vm438, %v3045, 0
    %v3066 = vsel %vm438, %v3047, 0
    %3068 = vmatprep.subr.mxu0 0.0
    %3069 = vmatpush1.xpose.msra.mxu0 0.0
    %3070 = vmatprep.subr.mxu0 0.0
    %3071 = vmatpush1.xpose.msra.mxu0 0.0
    %3072 = vmatprep.subr.mxu0 0.0
    %3073 = vmatpush1.xpose.msra.mxu0 0.0
    %3074 = vmatprep.subr.mxu0 0.0
    %3075 = vmatpush1.xpose.msra.mxu0 0.0
    %3076 = vmatprep.subr.mxu0 0.0
    %3077 = vmatpush1.xpose.msra.mxu0 0.0
    %3078 = vmatprep.subr.mxu0 0.0
    %3079 = vmatpush1.xpose.msra.mxu0 0.0
    %3080 = vmatprep.subr.mxu0 0.0
    %3081 = vmatpush1.xpose.msra.mxu0 0.0
    %3082 = vmatprep.subr.mxu0 0.0
    %3083 = vmatpush1.xpose.msra.mxu0 0.0
    %3084 = vmatprep.subr.mxu0 0.0
    %3085 = vmatpush1.xpose.msra.mxu0 0.0
    %3086 = vmatprep.subr.mxu0 0.0
    %3087 = vmatpush1.xpose.msra.mxu0 0.0
    %3088 = vmatprep.subr.mxu0 0.0
    %3089 = vmatpush1.xpose.msra.mxu0 0.0
    %3090 = vmatprep.subr.mxu0 0.0
    %3091 = vmatpush1.xpose.msra.mxu0 %v3066
    %3092 = vmatprep.subr.mxu0 0.0
    %3093 = vmatpush1.xpose.msra.mxu0 %v3064
    %3094 = vmatprep.subr.mxu0 0.0
    %3095 = vmatpush1.xpose.msra.mxu0 %v3062
    %3096 = vmatprep.subr.mxu0 0.0
    %3097 = vmatpush1.xpose.msra.mxu0 %v3060
    %3098 = vmatprep.subr.mxu0 0.0
    %3099 = vmatpush1.xpose.msra.mxu0 %v3058
    %3100 = vmatprep.subr.mxu0 0.0
    %3101 = vmatpush2.xpose.msra.mxu0 0.0
    %3102 = vmatprep.subr.mxu0 0.0
    %3103 = vmatpush2.xpose.msra.mxu0 0.0
    %3104 = vmatprep.subr.mxu0 0.0
    %3105 = vmatpush2.xpose.msra.mxu0 0.0
    %3106 = vmatprep.subr.mxu0 0.0
    %3107 = vmatpush2.xpose.msra.mxu0 0.0
    %3108 = vmatprep.subr.mxu0 0.0
    %3109 = vmatpush2.xpose.msra.mxu0 0.0
    %3110 = vmatprep.subr.mxu0 0.0
    %3111 = vmatpush2.xpose.msra.mxu0 0.0
    %3112 = vmatprep.subr.mxu0 0.0
    %3113 = vmatpush2.xpose.msra.mxu0 0.0
    %3114 = vmatprep.subr.mxu0 0.0
    %3115 = vmatpush2.xpose.msra.mxu0 0.0
    %3116 = vmatprep.subr.mxu0 0.0
    %3117 = vmatpush2.xpose.msra.mxu0 0.0
    %3118 = vmatprep.subr.mxu0 0.0
    %3119 = vmatpush2.xpose.msra.mxu0 0.0
    %3120 = vmatprep.subr.mxu0 0.0
    %3121 = vmatpush2.xpose.msra.mxu0 0.0
    %3122 = vmatprep.subr.mxu0 0.0
    %3123 = vmatpush2.xpose.msra.mxu0 0.0
    %3124 = vmatprep.subr.mxu0 0.0
    %3125 = vmatpush2.xpose.msra.mxu0 0.0
    %3126 = vmatprep.subr.mxu0 0.0
    %3127 = vmatpush2.xpose.msra.mxu0 0.0
    %3128 = vmatprep.subr.mxu0 0.0
    %3129 = vmatpush2.xpose.msra.mxu0 0.0
    %3130 = vmatprep.subr.mxu0 0.0
    %3131 = vmatpush2.xpose.msra.mxu0 0.0
    %3132 = vmatprep.mubr.f32.mxu0 0.0
    %3133 = vmatmul.mubr.f32.gmra.mxu0 %v3048
    %v3134 = vpop.f32.mrf.mxu0
    %v3135 = vadd.f32 %v187, %v3134
    %v3136 = vpop.f32.mrf.mxu0
    %3137 = vmatprep.mubr.f32.mxu0 0.0
    %3138 = vmatmul.mubr.f32.gmra.mxu0 %v3050
    %v3139 = vpop.f32.mrf.mxu0
    %v3140 = vadd.f32 %v188, %v3139
    %v3141 = vpop.f32.mrf.mxu0
    %3142 = vmatprep.mubr.f32.mxu0 0.0
    %3143 = vmatmul.mubr.f32.gmra.mxu0 %v3052
    %v3144 = vpop.f32.mrf.mxu0
    %v3145 = vadd.f32 %v189, %v3144
    %v3146 = vpop.f32.mrf.mxu0
    %3147 = vmatprep.mubr.f32.mxu0 0.0
    %3148 = vmatmul.mubr.f32.gmra.mxu0 %v3054
    %v3149 = vpop.f32.mrf.mxu0
    %v3150 = vadd.f32 %v190, %v3149
    %v3151 = vpop.f32.mrf.mxu0
    %3152 = vmatprep.mubr.f32.mxu0 0.0
    %3153 = vmatmul.mubr.f32.gmra.mxu0 %v3056
    %v3154 = vpop.f32.mrf.mxu0
    %v3155 = vadd.f32 %v191, %v3154
    %v3156 = vpop.f32.mrf.mxu0
    %3157 = vdwg.mxu0
    %v3158 = vsel %vm909, %v2775, -inf
    %3159 = vmax.xlane.f32.xlu0 %v3158
    %v3160 = vpop.xlane.xlu0 %3159
    %v3161 = vsel %vm909, %v2780, -inf
    %3162 = vmax.xlane.f32.xlu0 %v3161
    %v3163 = vpop.xlane.xlu0 %3162
    %v3164 = vsel %vm909, %v2785, -inf
    %3165 = vmax.xlane.f32.xlu0 %v3164
    %v3166 = vpop.xlane.xlu0 %3165
    %v3167 = vsel %vm909, %v2790, -inf
    %3168 = vmax.xlane.f32.xlu0 %v3167
    %v3169 = vpop.xlane.xlu0 %3168
    %v3170 = vsel %vm922, %v2795, -inf
    %3171 = vmax.xlane.f32.xlu0 %v3170
    %v3172 = vpop.xlane.xlu0 %3171
    %v3173 = vsel %vm909, %v2895, -inf
    %3174 = vmax.xlane.f32.xlu0 %v3173
    %v3175 = vpop.xlane.xlu0 %3174
    %v3176 = vsel %vm909, %v2900, -inf
    %3177 = vmax.xlane.f32.xlu0 %v3176
    %v3178 = vpop.xlane.xlu0 %3177
    %v3179 = vsel %vm909, %v2905, -inf
    %3180 = vmax.xlane.f32.xlu0 %v3179
    %v3181 = vpop.xlane.xlu0 %3180
    %v3182 = vsel %vm909, %v2910, -inf
    %3183 = vmax.xlane.f32.xlu0 %v3182
    %v3184 = vpop.xlane.xlu0 %3183
    %v3185 = vsel %vm922, %v2915, -inf
    %3186 = vmax.xlane.f32.xlu0 %v3185
    %v3187 = vpop.xlane.xlu0 %3186
    %v3188 = vsel %vm909, %v3015, -inf
    %3189 = vmax.xlane.f32.xlu0 %v3188
    %v3190 = vpop.xlane.xlu0 %3189
    %v3191 = vsel %vm909, %v3020, -inf
    %3192 = vmax.xlane.f32.xlu0 %v3191
    %v3193 = vpop.xlane.xlu0 %3192
    %v3194 = vsel %vm909, %v3025, -inf
    %3195 = vmax.xlane.f32.xlu0 %v3194
    %v3196 = vpop.xlane.xlu0 %3195
    %v3197 = vsel %vm909, %v3030, -inf
    %3198 = vmax.xlane.f32.xlu0 %v3197
    %v3199 = vpop.xlane.xlu0 %3198
    %v3200 = vsel %vm922, %v3035, -inf
    %3201 = vmax.xlane.f32.xlu0 %v3200
    %v3202 = vpop.xlane.xlu0 %3201
    %v3203 = vsel %vm909, %v3135, -inf
    %3204 = vmax.xlane.f32.xlu0 %v3203
    %v3205 = vpop.xlane.xlu0 %3204
    %v3206 = vsel %vm909, %v3140, -inf
    %3207 = vmax.xlane.f32.xlu0 %v3206
    %v3208 = vpop.xlane.xlu0 %3207
    %v3209 = vsel %vm909, %v3145, -inf
    %3210 = vmax.xlane.f32.xlu0 %v3209
    %v3211 = vpop.xlane.xlu0 %3210
    %v3212 = vsel %vm909, %v3150, -inf
    %3213 = vmax.xlane.f32.xlu0 %v3212
    %v3214 = vpop.xlane.xlu0 %3213
    %v3215 = vsel %vm922, %v3155, -inf
    %3216 = vmax.xlane.f32.xlu0 %v3215
    %v3217 = vpop.xlane.xlu0 %3216
    %v3218 = vsub.f32 %v2775, %v3160
    %v3219 = vsub.f32 %v2780, %v3163
    %v3220 = vsub.f32 %v2785, %v3166
    %v3221 = vsub.f32 %v2790, %v3169
    %v3222 = vsub.f32 %v2795, %v3172
    %v3223 = vsub.f32 %v2895, %v3175
    %v3224 = vsub.f32 %v2900, %v3178
    %v3225 = vsub.f32 %v2905, %v3181
    %v3226 = vsub.f32 %v2910, %v3184
    %v3227 = vsub.f32 %v2915, %v3187
    %v3228 = vsub.f32 %v3015, %v3190
    %v3229 = vsub.f32 %v3020, %v3193
    %v3230 = vsub.f32 %v3025, %v3196
    %v3231 = vsub.f32 %v3030, %v3199
    %v3232 = vsub.f32 %v3035, %v3202
    %v3233 = vsub.f32 %v3135, %v3205
    %v3234 = vsub.f32 %v3140, %v3208
    %v3235 = vsub.f32 %v3145, %v3211
    %v3236 = vsub.f32 %v3150, %v3214
    %v3237 = vsub.f32 %v3155, %v3217
    %v3238 = vmul.f32 %v3218, 1.442695
    %v3239 = vpow.pop %v3238
    %v3240 = vmul.f32 %v3219, 1.442695
    %v3241 = vpow.pop %v3240
    %v3242 = vmul.f32 %v3220, 1.442695
    %v3243 = vpow.pop %v3242
    %v3244 = vmul.f32 %v3221, 1.442695
    %v3245 = vpow.pop %v3244
    %v3246 = vmul.f32 %v3222, 1.442695
    %v3247 = vpow.pop %v3246
    %v3248 = vmul.f32 %v3223, 1.442695
    %v3249 = vpow.pop %v3248
    %v3250 = vmul.f32 %v3224, 1.442695
    %v3251 = vpow.pop %v3250
    %v3252 = vmul.f32 %v3225, 1.442695
    %v3253 = vpow.pop %v3252
    %v3254 = vmul.f32 %v3226, 1.442695
    %v3255 = vpow.pop %v3254
    %v3256 = vmul.f32 %v3227, 1.442695
    %v3257 = vpow.pop %v3256
    %v3258 = vmul.f32 %v3228, 1.442695
    %v3259 = vpow.pop %v3258
    %v3260 = vmul.f32 %v3229, 1.442695
    %v3261 = vpow.pop %v3260
    %v3262 = vmul.f32 %v3230, 1.442695
    %v3263 = vpow.pop %v3262
    %v3264 = vmul.f32 %v3231, 1.442695
    %v3265 = vpow.pop %v3264
    %v3266 = vmul.f32 %v3232, 1.442695
    %v3267 = vpow.pop %v3266
    %v3268 = vmul.f32 %v3233, 1.442695
    %v3269 = vpow.pop %v3268
    %v3270 = vmul.f32 %v3234, 1.442695
    %v3271 = vpow.pop %v3270
    %v3272 = vmul.f32 %v3235, 1.442695
    %v3273 = vpow.pop %v3272
    %v3274 = vmul.f32 %v3236, 1.442695
    %v3275 = vpow.pop %v3274
    %v3276 = vmul.f32 %v3237, 1.442695
    %v3277 = vpow.pop %v3276
    %v3278 = vsel %vm909, %v3239, 0.0
    %3279 = vadd.xlane.f32.xlu0 %v3278
    %v3280 = vpop.xlane.xlu0 %3279
    %v3281 = vsel %vm909, %v3241, 0.0
    %3282 = vadd.xlane.f32.xlu0 %v3281
    %v3283 = vpop.xlane.xlu0 %3282
    %v3284 = vsel %vm909, %v3243, 0.0
    %3285 = vadd.xlane.f32.xlu0 %v3284
    %v3286 = vpop.xlane.xlu0 %3285
    %v3287 = vsel %vm909, %v3245, 0.0
    %3288 = vadd.xlane.f32.xlu0 %v3287
    %v3289 = vpop.xlane.xlu0 %3288
    %v3290 = vsel %vm922, %v3247, 0.0
    %3291 = vadd.xlane.f32.xlu0 %v3290
    %v3292 = vpop.xlane.xlu0 %3291
    %v3293 = vsel %vm909, %v3249, 0.0
    %3294 = vadd.xlane.f32.xlu0 %v3293
    %v3295 = vpop.xlane.xlu0 %3294
    %v3296 = vsel %vm909, %v3251, 0.0
    %3297 = vadd.xlane.f32.xlu0 %v3296
    %v3298 = vpop.xlane.xlu0 %3297
    %v3299 = vsel %vm909, %v3253, 0.0
    %3300 = vadd.xlane.f32.xlu0 %v3299
    %v3301 = vpop.xlane.xlu0 %3300
    %v3302 = vsel %vm909, %v3255, 0.0
    %3303 = vadd.xlane.f32.xlu0 %v3302
    %v3304 = vpop.xlane.xlu0 %3303
    %v3305 = vsel %vm922, %v3257, 0.0
    %3306 = vadd.xlane.f32.xlu0 %v3305
    %v3307 = vpop.xlane.xlu0 %3306
    %v3308 = vsel %vm909, %v3259, 0.0
    %3309 = vadd.xlane.f32.xlu0 %v3308
    %v3310 = vpop.xlane.xlu0 %3309
    %v3311 = vsel %vm909, %v3261, 0.0
    %3312 = vadd.xlane.f32.xlu0 %v3311
    %v3313 = vpop.xlane.xlu0 %3312
    %v3314 = vsel %vm909, %v3263, 0.0
    %3315 = vadd.xlane.f32.xlu0 %v3314
    %v3316 = vpop.xlane.xlu0 %3315
    %v3317 = vsel %vm909, %v3265, 0.0
    %3318 = vadd.xlane.f32.xlu0 %v3317
    %v3319 = vpop.xlane.xlu0 %3318
    %v3320 = vsel %vm922, %v3267, 0.0
    %3321 = vadd.xlane.f32.xlu0 %v3320
    %v3322 = vpop.xlane.xlu0 %3321
    %v3323 = vsel %vm909, %v3269, 0.0
    %3324 = vadd.xlane.f32.xlu0 %v3323
    %v3325 = vpop.xlane.xlu0 %3324
    %v3326 = vsel %vm909, %v3271, 0.0
    %3327 = vadd.xlane.f32.xlu0 %v3326
    %v3328 = vpop.xlane.xlu0 %3327
    %v3329 = vsel %vm909, %v3273, 0.0
    %3330 = vadd.xlane.f32.xlu0 %v3329
    %v3331 = vpop.xlane.xlu0 %3330
    %v3332 = vsel %vm909, %v3275, 0.0
    %3333 = vadd.xlane.f32.xlu0 %v3332
    %v3334 = vpop.xlane.xlu0 %3333
    %v3335 = vsel %vm922, %v3277, 0.0
    %3336 = vadd.xlane.f32.xlu0 %v3335
    %v3337 = vpop.xlane.xlu0 %3336
    %v3338 = vrcp.pop %v3280
    %v3339 = vrcp.pop %v3283
    %v3340 = vrcp.pop %v3286
    %v3341 = vrcp.pop %v3289
    %v3342 = vrcp.pop %v3292
    %v3343 = vrcp.pop %v3295
    %v3344 = vrcp.pop %v3298
    %v3345 = vrcp.pop %v3301
    %v3346 = vrcp.pop %v3304
    %v3347 = vrcp.pop %v3307
    %v3348 = vrcp.pop %v3310
    %v3349 = vrcp.pop %v3313
    %v3350 = vrcp.pop %v3316
    %v3351 = vrcp.pop %v3319
    %v3352 = vrcp.pop %v3322
    %v3353 = vrcp.pop %v3325
    %v3354 = vrcp.pop %v3328
    %v3355 = vrcp.pop %v3331
    %v3356 = vrcp.pop %v3334
    %v3357 = vrcp.pop %v3337
    %v3358 = vmul.f32 %v3239, %v3338
    %v3359 = vmul.f32 %v3241, %v3339
    %v3360 = vmul.f32 %v3243, %v3340
    %v3361 = vmul.f32 %v3245, %v3341
    %v3362 = vmul.f32 %v3247, %v3342
    %v3363 = vmul.f32 %v3249, %v3343
    %v3364 = vmul.f32 %v3251, %v3344
    %v3365 = vmul.f32 %v3253, %v3345
    %v3366 = vmul.f32 %v3255, %v3346
    %v3367 = vmul.f32 %v3257, %v3347
    %v3368 = vmul.f32 %v3259, %v3348
    %v3369 = vmul.f32 %v3261, %v3349
    %v3370 = vmul.f32 %v3263, %v3350
    %v3371 = vmul.f32 %v3265, %v3351
    %v3372 = vmul.f32 %v3267, %v3352
    %v3373 = vmul.f32 %v3269, %v3353
    %v3374 = vmul.f32 %v3271, %v3354
    %v3375 = vmul.f32 %v3273, %v3355
    %v3376 = vmul.f32 %v3275, %v3356
    %v3377 = vmul.f32 %v3277, %v3357
    %3378 = vrot.lane.b32.xlu0 %v2620, 64
    %v3379 = vpop.permute.xlu0 %3378
    %3380 = vrot.lane.b32.xlu0 %v2625, 64
    %v3381 = vpop.permute.xlu0 %3380
    %3382 = vrot.lane.b32.xlu0 %v2630, 64
    %v3383 = vpop.permute.xlu0 %3382
    %3384 = vrot.lane.b32.xlu0 %v2635, 64
    %v3385 = vpop.permute.xlu0 %3384
    %3386 = vrot.lane.b32.xlu0 %v2640, 64
    %v3387 = vpop.permute.xlu0 %3386
    %v3393 = vsel %vm909, %v3358, 0
    %v3396 = vsel %vm909, %v3359, 0
    %v3399 = vsel %vm909, %v3360, 0
    %v3402 = vsel %vm909, %v3361, 0
    %v3405 = vsel %vm909, %v3362, 0
    %v3407 = vsel %vm1160, %v3387, 0
    %3409 = vmatprep.subr.mxu0 0.0
    %3410 = vmatpush1.msra.mxu0 0.0
    %3411 = vmatprep.subr.mxu0 0.0
    %3412 = vmatpush1.msra.mxu0 0.0
    %3413 = vmatprep.subr.mxu0 0.0
    %3414 = vmatpush1.msra.mxu0 0.0
    %3415 = vmatprep.subr.mxu0 0.0
    %3416 = vmatpush1.msra.mxu0 0.0
    %3417 = vmatprep.subr.mxu0 0.0
    %3418 = vmatpush1.msra.mxu0 0.0
    %3419 = vmatprep.subr.mxu0 0.0
    %3420 = vmatpush1.msra.mxu0 0.0
    %3421 = vmatprep.subr.mxu0 0.0
    %3422 = vmatpush1.msra.mxu0 0.0
    %3423 = vmatprep.subr.mxu0 0.0
    %3424 = vmatpush1.msra.mxu0 0.0
    %3425 = vmatprep.subr.mxu0 0.0
    %3426 = vmatpush1.msra.mxu0 0.0
    %3427 = vmatprep.subr.mxu0 0.0
    %3428 = vmatpush1.msra.mxu0 0.0
    %3429 = vmatprep.subr.mxu0 0.0
    %3430 = vmatpush1.msra.mxu0 0.0
    %3431 = vmatprep.subr.mxu0 0.0
    %3432 = vmatpush1.msra.mxu0 %v3407
    %3433 = vmatprep.subr.mxu0 0.0
    %3434 = vmatpush1.msra.mxu0 %v3385
    %3435 = vmatprep.subr.mxu0 0.0
    %3436 = vmatpush1.msra.mxu0 %v3383
    %3437 = vmatprep.subr.mxu0 0.0
    %3438 = vmatpush1.msra.mxu0 %v3381
    %3439 = vmatprep.subr.mxu0 0.0
    %3440 = vmatpush1.msra.mxu0 %v3379
    %3441 = vmatprep.subr.mxu0 0.0
    %3442 = vmatpush2.msra.mxu0 0.0
    %3443 = vmatprep.subr.mxu0 0.0
    %3444 = vmatpush2.msra.mxu0 0.0
    %3445 = vmatprep.subr.mxu0 0.0
    %3446 = vmatpush2.msra.mxu0 0.0
    %3447 = vmatprep.subr.mxu0 0.0
    %3448 = vmatpush2.msra.mxu0 0.0
    %3449 = vmatprep.subr.mxu0 0.0
    %3450 = vmatpush2.msra.mxu0 0.0
    %3451 = vmatprep.subr.mxu0 0.0
    %3452 = vmatpush2.msra.mxu0 0.0
    %3453 = vmatprep.subr.mxu0 0.0
    %3454 = vmatpush2.msra.mxu0 0.0
    %3455 = vmatprep.subr.mxu0 0.0
    %3456 = vmatpush2.msra.mxu0 0.0
    %3457 = vmatprep.subr.mxu0 0.0
    %3458 = vmatpush2.msra.mxu0 0.0
    %3459 = vmatprep.subr.mxu0 0.0
    %3460 = vmatpush2.msra.mxu0 0.0
    %3461 = vmatprep.subr.mxu0 0.0
    %3462 = vmatpush2.msra.mxu0 0.0
    %3463 = vmatprep.subr.mxu0 0.0
    %3464 = vmatpush2.msra.mxu0 0.0
    %3465 = vmatprep.subr.mxu0 0.0
    %3466 = vmatpush2.msra.mxu0 0.0
    %3467 = vmatprep.subr.mxu0 0.0
    %3468 = vmatpush2.msra.mxu0 0.0
    %3469 = vmatprep.subr.mxu0 0.0
    %3470 = vmatpush2.msra.mxu0 0.0
    %3471 = vmatprep.subr.mxu0 0.0
    %3472 = vmatpush2.msra.mxu0 0.0
    %3473 = vmatprep.mubr.f32.mxu0 0.0
    %3474 = vmatmul.mubr.f32.gmra.mxu0 %v3393
    %v3475 = vpop.f32.mrf.mxu0
    %v3476 = vadd.f32 0.0, %v3475
    %v3477 = vpop.f32.mrf.mxu0
    %3478 = vmatprep.mubr.f32.mxu0 0.0
    %3479 = vmatmul.mubr.f32.gmra.mxu0 %v3396
    %v3480 = vpop.f32.mrf.mxu0
    %v3481 = vadd.f32 0.0, %v3480
    %v3482 = vpop.f32.mrf.mxu0
    %3483 = vmatprep.mubr.f32.mxu0 0.0
    %3484 = vmatmul.mubr.f32.gmra.mxu0 %v3399
    %v3485 = vpop.f32.mrf.mxu0
    %v3486 = vadd.f32 0.0, %v3485
    %v3487 = vpop.f32.mrf.mxu0
    %3488 = vmatprep.mubr.f32.mxu0 0.0
    %3489 = vmatmul.mubr.f32.gmra.mxu0 %v3402
    %v3490 = vpop.f32.mrf.mxu0
    %v3491 = vadd.f32 0.0, %v3490
    %v3492 = vpop.f32.mrf.mxu0
    %3493 = vmatprep.mubr.f32.mxu0 0.0
    %3494 = vmatmul.mubr.f32.gmra.mxu0 %v3405
    %v3495 = vpop.f32.mrf.mxu0
    %v3496 = vadd.f32 0.0, %v3495
    %v3497 = vpop.f32.mrf.mxu0
    %3498 = vdwg.mxu0
    %3499 = vrot.lane.b32.xlu0 %v2649, 64
    %v3500 = vpop.permute.xlu0 %3499
    %3501 = vrot.lane.b32.xlu0 %v2651, 64
    %v3502 = vpop.permute.xlu0 %3501
    %3503 = vrot.lane.b32.xlu0 %v2653, 64
    %v3504 = vpop.permute.xlu0 %3503
    %3505 = vrot.lane.b32.xlu0 %v2655, 64
    %v3506 = vpop.permute.xlu0 %3505
    %3507 = vrot.lane.b32.xlu0 %v2657, 64
    %v3508 = vpop.permute.xlu0 %3507
    %v3514 = vsel %vm909, %v3363, 0
    %v3517 = vsel %vm909, %v3364, 0
    %v3520 = vsel %vm909, %v3365, 0
    %v3523 = vsel %vm909, %v3366, 0
    %v3526 = vsel %vm909, %v3367, 0
    %v3528 = vsel %vm1160, %v3508, 0
    %3530 = vmatprep.subr.mxu0 0.0
    %3531 = vmatpush1.msra.mxu0 0.0
    %3532 = vmatprep.subr.mxu0 0.0
    %3533 = vmatpush1.msra.mxu0 0.0
    %3534 = vmatprep.subr.mxu0 0.0
    %3535 = vmatpush1.msra.mxu0 0.0
    %3536 = vmatprep.subr.mxu0 0.0
    %3537 = vmatpush1.msra.mxu0 0.0
    %3538 = vmatprep.subr.mxu0 0.0
    %3539 = vmatpush1.msra.mxu0 0.0
    %3540 = vmatprep.subr.mxu0 0.0
    %3541 = vmatpush1.msra.mxu0 0.0
    %3542 = vmatprep.subr.mxu0 0.0
    %3543 = vmatpush1.msra.mxu0 0.0
    %3544 = vmatprep.subr.mxu0 0.0
    %3545 = vmatpush1.msra.mxu0 0.0
    %3546 = vmatprep.subr.mxu0 0.0
    %3547 = vmatpush1.msra.mxu0 0.0
    %3548 = vmatprep.subr.mxu0 0.0
    %3549 = vmatpush1.msra.mxu0 0.0
    %3550 = vmatprep.subr.mxu0 0.0
    %3551 = vmatpush1.msra.mxu0 0.0
    %3552 = vmatprep.subr.mxu0 0.0
    %3553 = vmatpush1.msra.mxu0 %v3528
    %3554 = vmatprep.subr.mxu0 0.0
    %3555 = vmatpush1.msra.mxu0 %v3506
    %3556 = vmatprep.subr.mxu0 0.0
    %3557 = vmatpush1.msra.mxu0 %v3504
    %3558 = vmatprep.subr.mxu0 0.0
    %3559 = vmatpush1.msra.mxu0 %v3502
    %3560 = vmatprep.subr.mxu0 0.0
    %3561 = vmatpush1.msra.mxu0 %v3500
    %3562 = vmatprep.subr.mxu0 0.0
    %3563 = vmatpush2.msra.mxu0 0.0
    %3564 = vmatprep.subr.mxu0 0.0
    %3565 = vmatpush2.msra.mxu0 0.0
    %3566 = vmatprep.subr.mxu0 0.0
    %3567 = vmatpush2.msra.mxu0 0.0
    %3568 = vmatprep.subr.mxu0 0.0
    %3569 = vmatpush2.msra.mxu0 0.0
    %3570 = vmatprep.subr.mxu0 0.0
    %3571 = vmatpush2.msra.mxu0 0.0
    %3572 = vmatprep.subr.mxu0 0.0
    %3573 = vmatpush2.msra.mxu0 0.0
    %3574 = vmatprep.subr.mxu0 0.0
    %3575 = vmatpush2.msra.mxu0 0.0
    %3576 = vmatprep.subr.mxu0 0.0
    %3577 = vmatpush2.msra.mxu0 0.0
    %3578 = vmatprep.subr.mxu0 0.0
    %3579 = vmatpush2.msra.mxu0 0.0
    %3580 = vmatprep.subr.mxu0 0.0
    %3581 = vmatpush2.msra.mxu0 0.0
    %3582 = vmatprep.subr.mxu0 0.0
    %3583 = vmatpush2.msra.mxu0 0.0
    %3584 = vmatprep.subr.mxu0 0.0
    %3585 = vmatpush2.msra.mxu0 0.0
    %3586 = vmatprep.subr.mxu0 0.0
    %3587 = vmatpush2.msra.mxu0 0.0
    %3588 = vmatprep.subr.mxu0 0.0
    %3589 = vmatpush2.msra.mxu0 0.0
    %3590 = vmatprep.subr.mxu0 0.0
    %3591 = vmatpush2.msra.mxu0 0.0
    %3592 = vmatprep.subr.mxu0 0.0
    %3593 = vmatpush2.msra.mxu0 0.0
    %3594 = vmatprep.mubr.f32.mxu0 0.0
    %3595 = vmatmul.mubr.f32.gmra.mxu0 %v3514
    %v3596 = vpop.f32.mrf.mxu0
    %v3597 = vadd.f32 0.0, %v3596
    %v3598 = vpop.f32.mrf.mxu0
    %3599 = vmatprep.mubr.f32.mxu0 0.0
    %3600 = vmatmul.mubr.f32.gmra.mxu0 %v3517
    %v3601 = vpop.f32.mrf.mxu0
    %v3602 = vadd.f32 0.0, %v3601
    %v3603 = vpop.f32.mrf.mxu0
    %3604 = vmatprep.mubr.f32.mxu0 0.0
    %3605 = vmatmul.mubr.f32.gmra.mxu0 %v3520
    %v3606 = vpop.f32.mrf.mxu0
    %v3607 = vadd.f32 0.0, %v3606
    %v3608 = vpop.f32.mrf.mxu0
    %3609 = vmatprep.mubr.f32.mxu0 0.0
    %3610 = vmatmul.mubr.f32.gmra.mxu0 %v3523
    %v3611 = vpop.f32.mrf.mxu0
    %v3612 = vadd.f32 0.0, %v3611
    %v3613 = vpop.f32.mrf.mxu0
    %3614 = vmatprep.mubr.f32.mxu0 0.0
    %3615 = vmatmul.mubr.f32.gmra.mxu0 %v3526
    %v3616 = vpop.f32.mrf.mxu0
    %v3617 = vadd.f32 0.0, %v3616
    %v3618 = vpop.f32.mrf.mxu0
    %3619 = vdwg.mxu0
    %3620 = vrot.lane.b32.xlu0 %v2659, 64
    %v3621 = vpop.permute.xlu0 %3620
    %3622 = vrot.lane.b32.xlu0 %v2661, 64
    %v3623 = vpop.permute.xlu0 %3622
    %3624 = vrot.lane.b32.xlu0 %v2663, 64
    %v3625 = vpop.permute.xlu0 %3624
    %3626 = vrot.lane.b32.xlu0 %v2665, 64
    %v3627 = vpop.permute.xlu0 %3626
    %3628 = vrot.lane.b32.xlu0 %v2667, 64
    %v3629 = vpop.permute.xlu0 %3628
    %v3635 = vsel %vm909, %v3368, 0
    %v3638 = vsel %vm909, %v3369, 0
    %v3641 = vsel %vm909, %v3370, 0
    %v3644 = vsel %vm909, %v3371, 0
    %v3647 = vsel %vm909, %v3372, 0
    %v3649 = vsel %vm1160, %v3629, 0
    %3651 = vmatprep.subr.mxu0 0.0
    %3652 = vmatpush1.msra.mxu0 0.0
    %3653 = vmatprep.subr.mxu0 0.0
    %3654 = vmatpush1.msra.mxu0 0.0
    %3655 = vmatprep.subr.mxu0 0.0
    %3656 = vmatpush1.msra.mxu0 0.0
    %3657 = vmatprep.subr.mxu0 0.0
    %3658 = vmatpush1.msra.mxu0 0.0
    %3659 = vmatprep.subr.mxu0 0.0
    %3660 = vmatpush1.msra.mxu0 0.0
    %3661 = vmatprep.subr.mxu0 0.0
    %3662 = vmatpush1.msra.mxu0 0.0
    %3663 = vmatprep.subr.mxu0 0.0
    %3664 = vmatpush1.msra.mxu0 0.0
    %3665 = vmatprep.subr.mxu0 0.0
    %3666 = vmatpush1.msra.mxu0 0.0
    %3667 = vmatprep.subr.mxu0 0.0
    %3668 = vmatpush1.msra.mxu0 0.0
    %3669 = vmatprep.subr.mxu0 0.0
    %3670 = vmatpush1.msra.mxu0 0.0
    %3671 = vmatprep.subr.mxu0 0.0
    %3672 = vmatpush1.msra.mxu0 0.0
    %3673 = vmatprep.subr.mxu0 0.0
    %3674 = vmatpush1.msra.mxu0 %v3649
    %3675 = vmatprep.subr.mxu0 0.0
    %3676 = vmatpush1.msra.mxu0 %v3627
    %3677 = vmatprep.subr.mxu0 0.0
    %3678 = vmatpush1.msra.mxu0 %v3625
    %3679 = vmatprep.subr.mxu0 0.0
    %3680 = vmatpush1.msra.mxu0 %v3623
    %3681 = vmatprep.subr.mxu0 0.0
    %3682 = vmatpush1.msra.mxu0 %v3621
    %3683 = vmatprep.subr.mxu0 0.0
    %3684 = vmatpush2.msra.mxu0 0.0
    %3685 = vmatprep.subr.mxu0 0.0
    %3686 = vmatpush2.msra.mxu0 0.0
    %3687 = vmatprep.subr.mxu0 0.0
    %3688 = vmatpush2.msra.mxu0 0.0
    %3689 = vmatprep.subr.mxu0 0.0
    %3690 = vmatpush2.msra.mxu0 0.0
    %3691 = vmatprep.subr.mxu0 0.0
    %3692 = vmatpush2.msra.mxu0 0.0
    %3693 = vmatprep.subr.mxu0 0.0
    %3694 = vmatpush2.msra.mxu0 0.0
    %3695 = vmatprep.subr.mxu0 0.0
    %3696 = vmatpush2.msra.mxu0 0.0
    %3697 = vmatprep.subr.mxu0 0.0
    %3698 = vmatpush2.msra.mxu0 0.0
    %3699 = vmatprep.subr.mxu0 0.0
    %3700 = vmatpush2.msra.mxu0 0.0
    %3701 = vmatprep.subr.mxu0 0.0
    %3702 = vmatpush2.msra.mxu0 0.0
    %3703 = vmatprep.subr.mxu0 0.0
    %3704 = vmatpush2.msra.mxu0 0.0
    %3705 = vmatprep.subr.mxu0 0.0
    %3706 = vmatpush2.msra.mxu0 0.0
    %3707 = vmatprep.subr.mxu0 0.0
    %3708 = vmatpush2.msra.mxu0 0.0
    %3709 = vmatprep.subr.mxu0 0.0
    %3710 = vmatpush2.msra.mxu0 0.0
    %3711 = vmatprep.subr.mxu0 0.0
    %3712 = vmatpush2.msra.mxu0 0.0
    %3713 = vmatprep.subr.mxu0 0.0
    %3714 = vmatpush2.msra.mxu0 0.0
    %3715 = vmatprep.mubr.f32.mxu0 0.0
    %3716 = vmatmul.mubr.f32.gmra.mxu0 %v3635
    %v3717 = vpop.f32.mrf.mxu0
    %v3718 = vadd.f32 0.0, %v3717
    %v3719 = vpop.f32.mrf.mxu0
    %3720 = vmatprep.mubr.f32.mxu0 0.0
    %3721 = vmatmul.mubr.f32.gmra.mxu0 %v3638
    %v3722 = vpop.f32.mrf.mxu0
    %v3723 = vadd.f32 0.0, %v3722
    %v3724 = vpop.f32.mrf.mxu0
    %3725 = vmatprep.mubr.f32.mxu0 0.0
    %3726 = vmatmul.mubr.f32.gmra.mxu0 %v3641
    %v3727 = vpop.f32.mrf.mxu0
    %v3728 = vadd.f32 0.0, %v3727
    %v3729 = vpop.f32.mrf.mxu0
    %3730 = vmatprep.mubr.f32.mxu0 0.0
    %3731 = vmatmul.mubr.f32.gmra.mxu0 %v3644
    %v3732 = vpop.f32.mrf.mxu0
    %v3733 = vadd.f32 0.0, %v3732
    %v3734 = vpop.f32.mrf.mxu0
    %3735 = vmatprep.mubr.f32.mxu0 0.0
    %3736 = vmatmul.mubr.f32.gmra.mxu0 %v3647
    %v3737 = vpop.f32.mrf.mxu0
    %v3738 = vadd.f32 0.0, %v3737
    %v3739 = vpop.f32.mrf.mxu0
    %3740 = vdwg.mxu0
    %3741 = vrot.lane.b32.xlu0 %v2669, 64
    %v3742 = vpop.permute.xlu0 %3741
    %3743 = vrot.lane.b32.xlu0 %v2671, 64
    %v3744 = vpop.permute.xlu0 %3743
    %3745 = vrot.lane.b32.xlu0 %v2673, 64
    %v3746 = vpop.permute.xlu0 %3745
    %3747 = vrot.lane.b32.xlu0 %v2675, 64
    %v3748 = vpop.permute.xlu0 %3747
    %3749 = vrot.lane.b32.xlu0 %v2677, 64
    %v3750 = vpop.permute.xlu0 %3749
    %v3756 = vsel %vm909, %v3373, 0
    %v3759 = vsel %vm909, %v3374, 0
    %v3762 = vsel %vm909, %v3375, 0
    %v3765 = vsel %vm909, %v3376, 0
    %v3768 = vsel %vm909, %v3377, 0
    %v3770 = vsel %vm1160, %v3750, 0
    %3772 = vmatprep.subr.mxu0 0.0
    %3773 = vmatpush1.msra.mxu0 0.0
    %3774 = vmatprep.subr.mxu0 0.0
    %3775 = vmatpush1.msra.mxu0 0.0
    %3776 = vmatprep.subr.mxu0 0.0
    %3777 = vmatpush1.msra.mxu0 0.0
    %3778 = vmatprep.subr.mxu0 0.0
    %3779 = vmatpush1.msra.mxu0 0.0
    %3780 = vmatprep.subr.mxu0 0.0
    %3781 = vmatpush1.msra.mxu0 0.0
    %3782 = vmatprep.subr.mxu0 0.0
    %3783 = vmatpush1.msra.mxu0 0.0
    %3784 = vmatprep.subr.mxu0 0.0
    %3785 = vmatpush1.msra.mxu0 0.0
    %3786 = vmatprep.subr.mxu0 0.0
    %3787 = vmatpush1.msra.mxu0 0.0
    %3788 = vmatprep.subr.mxu0 0.0
    %3789 = vmatpush1.msra.mxu0 0.0
    %3790 = vmatprep.subr.mxu0 0.0
    %3791 = vmatpush1.msra.mxu0 0.0
    %3792 = vmatprep.subr.mxu0 0.0
    %3793 = vmatpush1.msra.mxu0 0.0
    %3794 = vmatprep.subr.mxu0 0.0
    %3795 = vmatpush1.msra.mxu0 %v3770
    %3796 = vmatprep.subr.mxu0 0.0
    %3797 = vmatpush1.msra.mxu0 %v3748
    %3798 = vmatprep.subr.mxu0 0.0
    %3799 = vmatpush1.msra.mxu0 %v3746
    %3800 = vmatprep.subr.mxu0 0.0
    %3801 = vmatpush1.msra.mxu0 %v3744
    %3802 = vmatprep.subr.mxu0 0.0
    %3803 = vmatpush1.msra.mxu0 %v3742
    %3804 = vmatprep.subr.mxu0 0.0
    %3805 = vmatpush2.msra.mxu0 0.0
    %3806 = vmatprep.subr.mxu0 0.0
    %3807 = vmatpush2.msra.mxu0 0.0
    %3808 = vmatprep.subr.mxu0 0.0
    %3809 = vmatpush2.msra.mxu0 0.0
    %3810 = vmatprep.subr.mxu0 0.0
    %3811 = vmatpush2.msra.mxu0 0.0
    %3812 = vmatprep.subr.mxu0 0.0
    %3813 = vmatpush2.msra.mxu0 0.0
    %3814 = vmatprep.subr.mxu0 0.0
    %3815 = vmatpush2.msra.mxu0 0.0
    %3816 = vmatprep.subr.mxu0 0.0
    %3817 = vmatpush2.msra.mxu0 0.0
    %3818 = vmatprep.subr.mxu0 0.0
    %3819 = vmatpush2.msra.mxu0 0.0
    %3820 = vmatprep.subr.mxu0 0.0
    %3821 = vmatpush2.msra.mxu0 0.0
    %3822 = vmatprep.subr.mxu0 0.0
    %3823 = vmatpush2.msra.mxu0 0.0
    %3824 = vmatprep.subr.mxu0 0.0
    %3825 = vmatpush2.msra.mxu0 0.0
    %3826 = vmatprep.subr.mxu0 0.0
    %3827 = vmatpush2.msra.mxu0 0.0
    %3828 = vmatprep.subr.mxu0 0.0
    %3829 = vmatpush2.msra.mxu0 0.0
    %3830 = vmatprep.subr.mxu0 0.0
    %3831 = vmatpush2.msra.mxu0 0.0
    %3832 = vmatprep.subr.mxu0 0.0
    %3833 = vmatpush2.msra.mxu0 0.0
    %3834 = vmatprep.subr.mxu0 0.0
    %3835 = vmatpush2.msra.mxu0 0.0
    %3836 = vmatprep.mubr.f32.mxu0 0.0
    %3837 = vmatmul.mubr.f32.gmra.mxu0 %v3756
    %v3838 = vpop.f32.mrf.mxu0
    %v3839 = vadd.f32 0.0, %v3838
    %v3840 = vpop.f32.mrf.mxu0
    %3841 = vmatprep.mubr.f32.mxu0 0.0
    %3842 = vmatmul.mubr.f32.gmra.mxu0 %v3759
    %v3843 = vpop.f32.mrf.mxu0
    %v3844 = vadd.f32 0.0, %v3843
    %v3845 = vpop.f32.mrf.mxu0
    %3846 = vmatprep.mubr.f32.mxu0 0.0
    %3847 = vmatmul.mubr.f32.gmra.mxu0 %v3762
    %v3848 = vpop.f32.mrf.mxu0
    %v3849 = vadd.f32 0.0, %v3848
    %v3850 = vpop.f32.mrf.mxu0
    %3851 = vmatprep.mubr.f32.mxu0 0.0
    %3852 = vmatmul.mubr.f32.gmra.mxu0 %v3765
    %v3853 = vpop.f32.mrf.mxu0
    %v3854 = vadd.f32 0.0, %v3853
    %v3855 = vpop.f32.mrf.mxu0
    %3856 = vmatprep.mubr.f32.mxu0 0.0
    %3857 = vmatmul.mubr.f32.gmra.mxu0 %v3768
    %v3858 = vpop.f32.mrf.mxu0
    %v3859 = vadd.f32 0.0, %v3858
    %v3860 = vpop.f32.mrf.mxu0
    %3861 = vdwg.mxu0
    %s3862 = scalar_lea.vmem %s7, 32
    %v3863 = vld [vmem:[%s3862] sm:$0xff]
    %v3864 = vld [vmem:[%s3862 + $0x8] sm:$0xff]
    %v3865 = vld [vmem:[%s3862 + $0x10] sm:$0xff]
    %v3866 = vld [vmem:[%s3862 + $0x18] sm:$0xff]
    %v3868 = vsel %vm438, %v3597, 0
    %v3871 = vsel %vm438, %v3602, 0
    %v3874 = vsel %vm438, %v3607, 0
    %v3877 = vsel %vm438, %v3612, 0
    %v3880 = vsel %vm438, %v3617, 0
    %3882 = vmatprep.subr.mxu0 0.0
    %3883 = vmatpush1.msra.mxu0 0.0
    %3884 = vmatprep.subr.mxu0 0.0
    %3885 = vmatpush1.msra.mxu0 0.0
    %3886 = vmatprep.subr.mxu0 0.0
    %3887 = vmatpush1.msra.mxu0 0.0
    %3888 = vmatprep.subr.mxu0 0.0
    %3889 = vmatpush1.msra.mxu0 0.0
    %3890 = vmatprep.subr.mxu0 0.0
    %3891 = vmatpush1.msra.mxu0 0.0
    %3892 = vmatprep.subr.mxu0 0.0
    %3893 = vmatpush1.msra.mxu0 0.0
    %3894 = vmatprep.subr.mxu0 0.0
    %3895 = vmatpush1.msra.mxu0 0.0
    %3896 = vmatprep.subr.mxu0 0.0
    %3897 = vmatpush1.msra.mxu0 0.0
    %3898 = vmatprep.subr.mxu0 0.0
    %3899 = vmatpush1.msra.mxu0 0.0
    %3900 = vmatprep.subr.mxu0 0.0
    %3901 = vmatpush1.msra.mxu0 0.0
    %3902 = vmatprep.subr.mxu0 0.0
    %3903 = vmatpush1.msra.mxu0 0.0
    %3904 = vmatprep.subr.mxu0 0.0
    %3905 = vmatpush1.msra.mxu0 0.0
    %3906 = vmatprep.subr.mxu0 0.0
    %3907 = vmatpush1.msra.mxu0 0.0
    %3908 = vmatprep.subr.mxu0 0.0
    %3909 = vmatpush1.msra.mxu0 0.0
    %3910 = vmatprep.subr.mxu0 0.0
    %3911 = vmatpush1.msra.mxu0 0.0
    %3912 = vmatprep.subr.mxu0 0.0
    %3913 = vmatpush1.msra.mxu0 %v3864
    %3914 = vmatprep.subr.mxu0 0.0
    %3915 = vmatpush2.msra.mxu0 0.0
    %3916 = vmatprep.subr.mxu0 0.0
    %3917 = vmatpush2.msra.mxu0 0.0
    %3918 = vmatprep.subr.mxu0 0.0
    %3919 = vmatpush2.msra.mxu0 0.0
    %3920 = vmatprep.subr.mxu0 0.0
    %3921 = vmatpush2.msra.mxu0 0.0
    %3922 = vmatprep.subr.mxu0 0.0
    %3923 = vmatpush2.msra.mxu0 0.0
    %3924 = vmatprep.subr.mxu0 0.0
    %3925 = vmatpush2.msra.mxu0 0.0
    %3926 = vmatprep.subr.mxu0 0.0
    %3927 = vmatpush2.msra.mxu0 0.0
    %3928 = vmatprep.subr.mxu0 0.0
    %3929 = vmatpush2.msra.mxu0 0.0
    %3930 = vmatprep.subr.mxu0 0.0
    %3931 = vmatpush2.msra.mxu0 0.0
    %3932 = vmatprep.subr.mxu0 0.0
    %3933 = vmatpush2.msra.mxu0 0.0
    %3934 = vmatprep.subr.mxu0 0.0
    %3935 = vmatpush2.msra.mxu0 0.0
    %3936 = vmatprep.subr.mxu0 0.0
    %3937 = vmatpush2.msra.mxu0 0.0
    %3938 = vmatprep.subr.mxu0 0.0
    %3939 = vmatpush2.msra.mxu0 0.0
    %3940 = vmatprep.subr.mxu0 0.0
    %3941 = vmatpush2.msra.mxu0 0.0
    %3942 = vmatprep.subr.mxu0 0.0
    %3943 = vmatpush2.msra.mxu0 0.0
    %3944 = vmatprep.subr.mxu0 0.0
    %3945 = vmatpush2.msra.mxu0 0.0
    %3946 = vmatprep.mubr.f32.mxu0 0.0
    %3947 = vmatmul.mubr.f32.gmra.mxu0 %v3868
    %v3948 = vpop.f32.mrf.mxu0
    %v3949 = vadd.f32 0.0, %v3948
    %v3950 = vpop.f32.mrf.mxu0
    %3951 = vmatprep.mubr.f32.mxu0 0.0
    %3952 = vmatmul.mubr.f32.gmra.mxu0 %v3871
    %v3953 = vpop.f32.mrf.mxu0
    %v3954 = vadd.f32 0.0, %v3953
    %v3955 = vpop.f32.mrf.mxu0
    %3956 = vmatprep.mubr.f32.mxu0 0.0
    %3957 = vmatmul.mubr.f32.gmra.mxu0 %v3874
    %v3958 = vpop.f32.mrf.mxu0
    %v3959 = vadd.f32 0.0, %v3958
    %v3960 = vpop.f32.mrf.mxu0
    %3961 = vmatprep.mubr.f32.mxu0 0.0
    %3962 = vmatmul.mubr.f32.gmra.mxu0 %v3877
    %v3963 = vpop.f32.mrf.mxu0
    %v3964 = vadd.f32 0.0, %v3963
    %v3965 = vpop.f32.mrf.mxu0
    %3966 = vmatprep.mubr.f32.mxu0 0.0
    %3967 = vmatmul.mubr.f32.gmra.mxu0 %v3880
    %v3968 = vpop.f32.mrf.mxu0
    %v3969 = vadd.f32 0.0, %v3968
    %v3970 = vpop.f32.mrf.mxu0
    %3971 = vdwg.mxu0
    %v3973 = vsel %vm438, %v3476, 0
    %v3976 = vsel %vm438, %v3481, 0
    %v3979 = vsel %vm438, %v3486, 0
    %v3982 = vsel %vm438, %v3491, 0
    %v3985 = vsel %vm438, %v3496, 0
    %3987 = vmatprep.subr.mxu0 0.0
    %3988 = vmatpush1.msra.mxu0 0.0
    %3989 = vmatprep.subr.mxu0 0.0
    %3990 = vmatpush1.msra.mxu0 0.0
    %3991 = vmatprep.subr.mxu0 0.0
    %3992 = vmatpush1.msra.mxu0 0.0
    %3993 = vmatprep.subr.mxu0 0.0
    %3994 = vmatpush1.msra.mxu0 0.0
    %3995 = vmatprep.subr.mxu0 0.0
    %3996 = vmatpush1.msra.mxu0 0.0
    %3997 = vmatprep.subr.mxu0 0.0
    %3998 = vmatpush1.msra.mxu0 0.0
    %3999 = vmatprep.subr.mxu0 0.0
    %4000 = vmatpush1.msra.mxu0 0.0
    %4001 = vmatprep.subr.mxu0 0.0
    %4002 = vmatpush1.msra.mxu0 0.0
    %4003 = vmatprep.subr.mxu0 0.0
    %4004 = vmatpush1.msra.mxu0 0.0
    %4005 = vmatprep.subr.mxu0 0.0
    %4006 = vmatpush1.msra.mxu0 0.0
    %4007 = vmatprep.subr.mxu0 0.0
    %4008 = vmatpush1.msra.mxu0 0.0
    %4009 = vmatprep.subr.mxu0 0.0
    %4010 = vmatpush1.msra.mxu0 0.0
    %4011 = vmatprep.subr.mxu0 0.0
    %4012 = vmatpush1.msra.mxu0 0.0
    %4013 = vmatprep.subr.mxu0 0.0
    %4014 = vmatpush1.msra.mxu0 0.0
    %4015 = vmatprep.subr.mxu0 0.0
    %4016 = vmatpush1.msra.mxu0 0.0
    %4017 = vmatprep.subr.mxu0 0.0
    %4018 = vmatpush1.msra.mxu0 %v3863
    %4019 = vmatprep.subr.mxu0 0.0
    %4020 = vmatpush2.msra.mxu0 0.0
    %4021 = vmatprep.subr.mxu0 0.0
    %4022 = vmatpush2.msra.mxu0 0.0
    %4023 = vmatprep.subr.mxu0 0.0
    %4024 = vmatpush2.msra.mxu0 0.0
    %4025 = vmatprep.subr.mxu0 0.0
    %4026 = vmatpush2.msra.mxu0 0.0
    %4027 = vmatprep.subr.mxu0 0.0
    %4028 = vmatpush2.msra.mxu0 0.0
    %4029 = vmatprep.subr.mxu0 0.0
    %4030 = vmatpush2.msra.mxu0 0.0
    %4031 = vmatprep.subr.mxu0 0.0
    %4032 = vmatpush2.msra.mxu0 0.0
    %4033 = vmatprep.subr.mxu0 0.0
    %4034 = vmatpush2.msra.mxu0 0.0
    %4035 = vmatprep.subr.mxu0 0.0
    %4036 = vmatpush2.msra.mxu0 0.0
    %4037 = vmatprep.subr.mxu0 0.0
    %4038 = vmatpush2.msra.mxu0 0.0
    %4039 = vmatprep.subr.mxu0 0.0
    %4040 = vmatpush2.msra.mxu0 0.0
    %4041 = vmatprep.subr.mxu0 0.0
    %4042 = vmatpush2.msra.mxu0 0.0
    %4043 = vmatprep.subr.mxu0 0.0
    %4044 = vmatpush2.msra.mxu0 0.0
    %4045 = vmatprep.subr.mxu0 0.0
    %4046 = vmatpush2.msra.mxu0 0.0
    %4047 = vmatprep.subr.mxu0 0.0
    %4048 = vmatpush2.msra.mxu0 0.0
    %4049 = vmatprep.subr.mxu0 0.0
    %4050 = vmatpush2.msra.mxu0 0.0
    %4051 = vmatprep.mubr.f32.mxu0 0.0
    %4052 = vmatmul.mubr.f32.gmra.mxu0 %v3973
    %v4053 = vpop.f32.mrf.mxu0
    %v4054 = vadd.f32 %v3949, %v4053
    %v4055 = vpop.f32.mrf.mxu0
    %4056 = vmatprep.mubr.f32.mxu0 0.0
    %4057 = vmatmul.mubr.f32.gmra.mxu0 %v3976
    %v4058 = vpop.f32.mrf.mxu0
    %v4059 = vadd.f32 %v3954, %v4058
    %v4060 = vpop.f32.mrf.mxu0
    %4061 = vmatprep.mubr.f32.mxu0 0.0
    %4062 = vmatmul.mubr.f32.gmra.mxu0 %v3979
    %v4063 = vpop.f32.mrf.mxu0
    %v4064 = vadd.f32 %v3959, %v4063
    %v4065 = vpop.f32.mrf.mxu0
    %4066 = vmatprep.mubr.f32.mxu0 0.0
    %4067 = vmatmul.mubr.f32.gmra.mxu0 %v3982
    %v4068 = vpop.f32.mrf.mxu0
    %v4069 = vadd.f32 %v3964, %v4068
    %v4070 = vpop.f32.mrf.mxu0
    %4071 = vmatprep.mubr.f32.mxu0 0.0
    %4072 = vmatmul.mubr.f32.gmra.mxu0 %v3985
    %v4073 = vpop.f32.mrf.mxu0
    %v4074 = vadd.f32 %v3969, %v4073
    %v4075 = vpop.f32.mrf.mxu0
    %4076 = vdwg.mxu0
    %v4078 = vsel %vm438, %v3718, 0
    %v4081 = vsel %vm438, %v3723, 0
    %v4084 = vsel %vm438, %v3728, 0
    %v4087 = vsel %vm438, %v3733, 0
    %v4090 = vsel %vm438, %v3738, 0
    %4092 = vmatprep.subr.mxu0 0.0
    %4093 = vmatpush1.msra.mxu0 0.0
    %4094 = vmatprep.subr.mxu0 0.0
    %4095 = vmatpush1.msra.mxu0 0.0
    %4096 = vmatprep.subr.mxu0 0.0
    %4097 = vmatpush1.msra.mxu0 0.0
    %4098 = vmatprep.subr.mxu0 0.0
    %4099 = vmatpush1.msra.mxu0 0.0
    %4100 = vmatprep.subr.mxu0 0.0
    %4101 = vmatpush1.msra.mxu0 0.0
    %4102 = vmatprep.subr.mxu0 0.0
    %4103 = vmatpush1.msra.mxu0 0.0
    %4104 = vmatprep.subr.mxu0 0.0
    %4105 = vmatpush1.msra.mxu0 0.0
    %4106 = vmatprep.subr.mxu0 0.0
    %4107 = vmatpush1.msra.mxu0 0.0
    %4108 = vmatprep.subr.mxu0 0.0
    %4109 = vmatpush1.msra.mxu0 0.0
    %4110 = vmatprep.subr.mxu0 0.0
    %4111 = vmatpush1.msra.mxu0 0.0
    %4112 = vmatprep.subr.mxu0 0.0
    %4113 = vmatpush1.msra.mxu0 0.0
    %4114 = vmatprep.subr.mxu0 0.0
    %4115 = vmatpush1.msra.mxu0 0.0
    %4116 = vmatprep.subr.mxu0 0.0
    %4117 = vmatpush1.msra.mxu0 0.0
    %4118 = vmatprep.subr.mxu0 0.0
    %4119 = vmatpush1.msra.mxu0 0.0
    %4120 = vmatprep.subr.mxu0 0.0
    %4121 = vmatpush1.msra.mxu0 0.0
    %4122 = vmatprep.subr.mxu0 0.0
    %4123 = vmatpush1.msra.mxu0 %v3865
    %4124 = vmatprep.subr.mxu0 0.0
    %4125 = vmatpush2.msra.mxu0 0.0
    %4126 = vmatprep.subr.mxu0 0.0
    %4127 = vmatpush2.msra.mxu0 0.0
    %4128 = vmatprep.subr.mxu0 0.0
    %4129 = vmatpush2.msra.mxu0 0.0
    %4130 = vmatprep.subr.mxu0 0.0
    %4131 = vmatpush2.msra.mxu0 0.0
    %4132 = vmatprep.subr.mxu0 0.0
    %4133 = vmatpush2.msra.mxu0 0.0
    %4134 = vmatprep.subr.mxu0 0.0
    %4135 = vmatpush2.msra.mxu0 0.0
    %4136 = vmatprep.subr.mxu0 0.0
    %4137 = vmatpush2.msra.mxu0 0.0
    %4138 = vmatprep.subr.mxu0 0.0
    %4139 = vmatpush2.msra.mxu0 0.0
    %4140 = vmatprep.subr.mxu0 0.0
    %4141 = vmatpush2.msra.mxu0 0.0
    %4142 = vmatprep.subr.mxu0 0.0
    %4143 = vmatpush2.msra.mxu0 0.0
    %4144 = vmatprep.subr.mxu0 0.0
    %4145 = vmatpush2.msra.mxu0 0.0
    %4146 = vmatprep.subr.mxu0 0.0
    %4147 = vmatpush2.msra.mxu0 0.0
    %4148 = vmatprep.subr.mxu0 0.0
    %4149 = vmatpush2.msra.mxu0 0.0
    %4150 = vmatprep.subr.mxu0 0.0
    %4151 = vmatpush2.msra.mxu0 0.0
    %4152 = vmatprep.subr.mxu0 0.0
    %4153 = vmatpush2.msra.mxu0 0.0
    %4154 = vmatprep.subr.mxu0 0.0
    %4155 = vmatpush2.msra.mxu0 0.0
    %4156 = vmatprep.mubr.f32.mxu0 0.0
    %4157 = vmatmul.mubr.f32.gmra.mxu0 %v4078
    %v4158 = vpop.f32.mrf.mxu0
    %v4159 = vadd.f32 0.0, %v4158
    %v4160 = vpop.f32.mrf.mxu0
    %4161 = vmatprep.mubr.f32.mxu0 0.0
    %4162 = vmatmul.mubr.f32.gmra.mxu0 %v4081
    %v4163 = vpop.f32.mrf.mxu0
    %v4164 = vadd.f32 0.0, %v4163
    %v4165 = vpop.f32.mrf.mxu0
    %4166 = vmatprep.mubr.f32.mxu0 0.0
    %4167 = vmatmul.mubr.f32.gmra.mxu0 %v4084
    %v4168 = vpop.f32.mrf.mxu0
    %v4169 = vadd.f32 0.0, %v4168
    %v4170 = vpop.f32.mrf.mxu0
    %4171 = vmatprep.mubr.f32.mxu0 0.0
    %4172 = vmatmul.mubr.f32.gmra.mxu0 %v4087
    %v4173 = vpop.f32.mrf.mxu0
    %v4174 = vadd.f32 0.0, %v4173
    %v4175 = vpop.f32.mrf.mxu0
    %4176 = vmatprep.mubr.f32.mxu0 0.0
    %4177 = vmatmul.mubr.f32.gmra.mxu0 %v4090
    %v4178 = vpop.f32.mrf.mxu0
    %v4179 = vadd.f32 0.0, %v4178
    %v4180 = vpop.f32.mrf.mxu0
    %4181 = vdwg.mxu0
    %v4182 = vadd.f32 %v4054, %v4159
    %v4183 = vadd.f32 %v4059, %v4164
    %v4184 = vadd.f32 %v4064, %v4169
    %v4185 = vadd.f32 %v4069, %v4174
    %v4186 = vadd.f32 %v4074, %v4179
    %v4188 = vsel %vm438, %v3839, 0
    %v4191 = vsel %vm438, %v3844, 0
    %v4194 = vsel %vm438, %v3849, 0
    %v4197 = vsel %vm438, %v3854, 0
    %v4200 = vsel %vm438, %v3859, 0
    %4202 = vmatprep.subr.mxu0 0.0
    %4203 = vmatpush1.msra.mxu0 0.0
    %4204 = vmatprep.subr.mxu0 0.0
    %4205 = vmatpush1.msra.mxu0 0.0
    %4206 = vmatprep.subr.mxu0 0.0
    %4207 = vmatpush1.msra.mxu0 0.0
    %4208 = vmatprep.subr.mxu0 0.0
    %4209 = vmatpush1.msra.mxu0 0.0
    %4210 = vmatprep.subr.mxu0 0.0
    %4211 = vmatpush1.msra.mxu0 0.0
    %4212 = vmatprep.subr.mxu0 0.0
    %4213 = vmatpush1.msra.mxu0 0.0
    %4214 = vmatprep.subr.mxu0 0.0
    %4215 = vmatpush1.msra.mxu0 0.0
    %4216 = vmatprep.subr.mxu0 0.0
    %4217 = vmatpush1.msra.mxu0 0.0
    %4218 = vmatprep.subr.mxu0 0.0
    %4219 = vmatpush1.msra.mxu0 0.0
    %4220 = vmatprep.subr.mxu0 0.0
    %4221 = vmatpush1.msra.mxu0 0.0
    %4222 = vmatprep.subr.mxu0 0.0
    %4223 = vmatpush1.msra.mxu0 0.0
    %4224 = vmatprep.subr.mxu0 0.0
    %4225 = vmatpush1.msra.mxu0 0.0
    %4226 = vmatprep.subr.mxu0 0.0
    %4227 = vmatpush1.msra.mxu0 0.0
    %4228 = vmatprep.subr.mxu0 0.0
    %4229 = vmatpush1.msra.mxu0 0.0
    %4230 = vmatprep.subr.mxu0 0.0
    %4231 = vmatpush1.msra.mxu0 0.0
    %4232 = vmatprep.subr.mxu0 0.0
    %4233 = vmatpush1.msra.mxu0 %v3866
    %4234 = vmatprep.subr.mxu0 0.0
    %4235 = vmatpush2.msra.mxu0 0.0
    %4236 = vmatprep.subr.mxu0 0.0
    %4237 = vmatpush2.msra.mxu0 0.0
    %4238 = vmatprep.subr.mxu0 0.0
    %4239 = vmatpush2.msra.mxu0 0.0
    %4240 = vmatprep.subr.mxu0 0.0
    %4241 = vmatpush2.msra.mxu0 0.0
    %4242 = vmatprep.subr.mxu0 0.0
    %4243 = vmatpush2.msra.mxu0 0.0
    %4244 = vmatprep.subr.mxu0 0.0
    %4245 = vmatpush2.msra.mxu0 0.0
    %4246 = vmatprep.subr.mxu0 0.0
    %4247 = vmatpush2.msra.mxu0 0.0
    %4248 = vmatprep.subr.mxu0 0.0
    %4249 = vmatpush2.msra.mxu0 0.0
    %4250 = vmatprep.subr.mxu0 0.0
    %4251 = vmatpush2.msra.mxu0 0.0
    %4252 = vmatprep.subr.mxu0 0.0
    %4253 = vmatpush2.msra.mxu0 0.0
    %4254 = vmatprep.subr.mxu0 0.0
    %4255 = vmatpush2.msra.mxu0 0.0
    %4256 = vmatprep.subr.mxu0 0.0
    %4257 = vmatpush2.msra.mxu0 0.0
    %4258 = vmatprep.subr.mxu0 0.0
    %4259 = vmatpush2.msra.mxu0 0.0
    %4260 = vmatprep.subr.mxu0 0.0
    %4261 = vmatpush2.msra.mxu0 0.0
    %4262 = vmatprep.subr.mxu0 0.0
    %4263 = vmatpush2.msra.mxu0 0.0
    %4264 = vmatprep.subr.mxu0 0.0
    %4265 = vmatpush2.msra.mxu0 0.0
    %4266 = vmatprep.mubr.f32.mxu0 0.0
    %4267 = vmatmul.mubr.f32.gmra.mxu0 %v4188
    %v4268 = vpop.f32.mrf.mxu0
    %v4269 = vadd.f32 0.0, %v4268
    %v4270 = vpop.f32.mrf.mxu0
    %4271 = vmatprep.mubr.f32.mxu0 0.0
    %4272 = vmatmul.mubr.f32.gmra.mxu0 %v4191
    %v4273 = vpop.f32.mrf.mxu0
    %v4274 = vadd.f32 0.0, %v4273
    %v4275 = vpop.f32.mrf.mxu0
    %4276 = vmatprep.mubr.f32.mxu0 0.0
    %4277 = vmatmul.mubr.f32.gmra.mxu0 %v4194
    %v4278 = vpop.f32.mrf.mxu0
    %v4279 = vadd.f32 0.0, %v4278
    %v4280 = vpop.f32.mrf.mxu0
    %4281 = vmatprep.mubr.f32.mxu0 0.0
    %4282 = vmatmul.mubr.f32.gmra.mxu0 %v4197
    %v4283 = vpop.f32.mrf.mxu0
    %v4284 = vadd.f32 0.0, %v4283
    %v4285 = vpop.f32.mrf.mxu0
    %4286 = vmatprep.mubr.f32.mxu0 0.0
    %4287 = vmatmul.mubr.f32.gmra.mxu0 %v4200
    %v4288 = vpop.f32.mrf.mxu0
    %v4289 = vadd.f32 0.0, %v4288
    %v4290 = vpop.f32.mrf.mxu0
    %4291 = vdwg.mxu0
    %v4292 = vadd.f32 %v4182, %v4269
    %v4293 = vadd.f32 %v4183, %v4274
    %v4294 = vadd.f32 %v4184, %v4279
    %v4295 = vadd.f32 %v4185, %v4284
    %v4296 = vadd.f32 %v4186, %v4289
    %v4297 = vadd.f32 %v2437, %v4292
    %v4298 = vadd.f32 %v2438, %v4293
    %v4299 = vadd.f32 %v2439, %v4294
    %v4300 = vadd.f32 %v2440, %v4295
    %v4301 = vadd.f32 %v2441, %v4296
    %s4302 = scalar_lea.vmem %s8, 1
    %v4303 = vld [vmem:[%s4302] sm:$0x1]
    %v4305 = vlaneseq
    %v4306 = vshrl.u32 %v4305, 7
    %v4307 = vsub.s32 0, %v4306
    %v4308 = vrot.slane %v4303, %v4307
    %v4310 = vadd.f32 %v4297, %v4308
    %v4311 = vadd.f32 %v4298, %v4308
    %v4312 = vadd.f32 %v4299, %v4308
    %v4313 = vadd.f32 %v4300, %v4308
    %v4314 = vadd.f32 %v4301, %v4308
    %s4315 = scalar_lea.vmem %s9, 1
    %v4316 = vld [vmem:[%s4315] sm:$0x1]
    %s4317 = scalar_lea.vmem %s10, 1
    %v4318 = vld [vmem:[%s4317] sm:$0x1]
    %v4319 = vsel %vm194, %v4310, 0.0
    %4320 = vadd.xlane.f32.xlu0 %v4319
    %v4321 = vpop.xlane.xlu0 %4320
    %v4322 = vsel %vm194, %v4311, 0.0
    %4323 = vadd.xlane.f32.xlu0 %v4322
    %v4324 = vpop.xlane.xlu0 %4323
    %v4325 = vsel %vm194, %v4312, 0.0
    %4326 = vadd.xlane.f32.xlu0 %v4325
    %v4327 = vpop.xlane.xlu0 %4326
    %v4328 = vsel %vm194, %v4313, 0.0
    %4329 = vadd.xlane.f32.xlu0 %v4328
    %v4330 = vpop.xlane.xlu0 %4329
    %v4331 = vsel %vm207, %v4314, 0.0
    %4332 = vadd.xlane.f32.xlu0 %v4331
    %v4333 = vpop.xlane.xlu0 %4332
    %v4334 = vmul.f32 %v4321, %v211
    %v4335 = vmul.f32 %v4324, %v211
    %v4336 = vmul.f32 %v4327, %v211
    %v4337 = vmul.f32 %v4330, %v211
    %v4338 = vmul.f32 %v4333, %v211
    %v4339 = vsub.f32 %v4310, %v4334
    %v4340 = vsub.f32 %v4311, %v4335
    %v4341 = vsub.f32 %v4312, %v4336
    %v4342 = vsub.f32 %v4313, %v4337
    %v4343 = vsub.f32 %v4314, %v4338
    %v4344 = vmul.f32 %v4339, %v4339
    %v4345 = vmul.f32 %v4340, %v4340
    %v4346 = vmul.f32 %v4341, %v4341
    %v4347 = vmul.f32 %v4342, %v4342
    %v4348 = vmul.f32 %v4343, %v4343
    %v4349 = vsel %vm194, %v4344, 0.0
    %4350 = vadd.xlane.f32.xlu0 %v4349
    %v4351 = vpop.xlane.xlu0 %4350
    %v4352 = vsel %vm194, %v4345, 0.0
    %4353 = vadd.xlane.f32.xlu0 %v4352
    %v4354 = vpop.xlane.xlu0 %4353
    %v4355 = vsel %vm194, %v4346, 0.0
    %4356 = vadd.xlane.f32.xlu0 %v4355
    %v4357 = vpop.xlane.xlu0 %4356
    %v4358 = vsel %vm194, %v4347, 0.0
    %4359 = vadd.xlane.f32.xlu0 %v4358
    %v4360 = vpop.xlane.xlu0 %4359
    %v4361 = vsel %vm207, %v4348, 0.0
    %4362 = vadd.xlane.f32.xlu0 %v4361
    %v4363 = vpop.xlane.xlu0 %4362
    %v4364 = vmul.f32 %v4351, %v211
    %v4365 = vmul.f32 %v4354, %v211
    %v4366 = vmul.f32 %v4357, %v211
    %v4367 = vmul.f32 %v4360, %v211
    %v4368 = vmul.f32 %v4363, %v211
    %v4369 = vadd.f32 %v4364, 1e-05
    %v4370 = vadd.f32 %v4365, 1e-05
    %v4371 = vadd.f32 %v4366, 1e-05
    %v4372 = vadd.f32 %v4367, 1e-05
    %v4373 = vadd.f32 %v4368, 1e-05
    %v4374 = vrsqrt.pop %v4369
    %v4375 = vrsqrt.pop %v4370
    %v4376 = vrsqrt.pop %v4371
    %v4377 = vrsqrt.pop %v4372
    %v4378 = vrsqrt.pop %v4373
    %v4379 = vmul.f32 %v4339, %v4374
    %v4380 = vmul.f32 %v4340, %v4375
    %v4381 = vmul.f32 %v4341, %v4376
    %v4382 = vmul.f32 %v4342, %v4377
    %v4383 = vmul.f32 %v4343, %v4378
    %v4385 = vlaneseq
    %v4386 = vshrl.u32 %v4385, 7
    %v4387 = vsub.s32 0, %v4386
    %v4388 = vrot.slane %v4316, %v4387
    %v4390 = vmul.f32 %v4379, %v4388
    %v4391 = vmul.f32 %v4380, %v4388
    %v4392 = vmul.f32 %v4381, %v4388
    %v4393 = vmul.f32 %v4382, %v4388
    %v4394 = vmul.f32 %v4383, %v4388
    %v4396 = vlaneseq
    %v4397 = vshrl.u32 %v4396, 7
    %v4398 = vsub.s32 0, %v4397
    %v4399 = vrot.slane %v4318, %v4398
    %v4401 = vadd.f32 %v4390, %v4399
    %v4402 = vadd.f32 %v4391, %v4399
    %v4403 = vadd.f32 %v4392, %v4399
    %v4404 = vadd.f32 %v4393, %v4399
    %v4405 = vadd.f32 %v4394, %v4399
    %s4406 = scalar_lea.vmem %s11, 32
    %v4407 = vld [vmem:[%s4406] sm:$0xff]
    %v4408 = vld [vmem:[%s4406 + $0x8] sm:$0xff]
    %v4409 = vld [vmem:[%s4406 + $0x10] sm:$0xff]
    %v4410 = vld [vmem:[%s4406 + $0x18] sm:$0xff]
    %s4411 = scalar_lea.vmem %s12, 1
    %v4412 = vld [vmem:[%s4411] sm:$0x1]
    %v4414 = vlaneseq
    %v4415 = vshrl.u32 %v4414, 7
    %v4416 = vsub.s32 0, %v4415
    %v4417 = vrot.slane %v4412, %v4416
    %v4420 = vsel %vm194, %v4401, 0
    %v4423 = vsel %vm194, %v4402, 0
    %v4426 = vsel %vm194, %v4403, 0
    %v4429 = vsel %vm194, %v4404, 0
    %v4432 = vsel %vm194, %v4405, 0
    %4434 = vmatprep.subr.mxu0 0.0
    %4435 = vmatpush1.msra.mxu0 0.0
    %4436 = vmatprep.subr.mxu0 0.0
    %4437 = vmatpush1.msra.mxu0 0.0
    %4438 = vmatprep.subr.mxu0 0.0
    %4439 = vmatpush1.msra.mxu0 0.0
    %4440 = vmatprep.subr.mxu0 0.0
    %4441 = vmatpush1.msra.mxu0 0.0
    %4442 = vmatprep.subr.mxu0 0.0
    %4443 = vmatpush1.msra.mxu0 0.0
    %4444 = vmatprep.subr.mxu0 0.0
    %4445 = vmatpush1.msra.mxu0 0.0
    %4446 = vmatprep.subr.mxu0 0.0
    %4447 = vmatpush1.msra.mxu0 0.0
    %4448 = vmatprep.subr.mxu0 0.0
    %4449 = vmatpush1.msra.mxu0 0.0
    %4450 = vmatprep.subr.mxu0 0.0
    %4451 = vmatpush1.msra.mxu0 0.0
    %4452 = vmatprep.subr.mxu0 0.0
    %4453 = vmatpush1.msra.mxu0 0.0
    %4454 = vmatprep.subr.mxu0 0.0
    %4455 = vmatpush1.msra.mxu0 0.0
    %4456 = vmatprep.subr.mxu0 0.0
    %4457 = vmatpush1.msra.mxu0 0.0
    %4458 = vmatprep.subr.mxu0 0.0
    %4459 = vmatpush1.msra.mxu0 %v4410
    %4460 = vmatprep.subr.mxu0 0.0
    %4461 = vmatpush1.msra.mxu0 %v4409
    %4462 = vmatprep.subr.mxu0 0.0
    %4463 = vmatpush1.msra.mxu0 %v4408
    %4464 = vmatprep.subr.mxu0 0.0
    %4465 = vmatpush1.msra.mxu0 %v4407
    %4466 = vmatprep.subr.mxu0 0.0
    %4467 = vmatpush2.msra.mxu0 0.0
    %4468 = vmatprep.subr.mxu0 0.0
    %4469 = vmatpush2.msra.mxu0 0.0
    %4470 = vmatprep.subr.mxu0 0.0
    %4471 = vmatpush2.msra.mxu0 0.0
    %4472 = vmatprep.subr.mxu0 0.0
    %4473 = vmatpush2.msra.mxu0 0.0
    %4474 = vmatprep.subr.mxu0 0.0
    %4475 = vmatpush2.msra.mxu0 0.0
    %4476 = vmatprep.subr.mxu0 0.0
    %4477 = vmatpush2.msra.mxu0 0.0
    %4478 = vmatprep.subr.mxu0 0.0
    %4479 = vmatpush2.msra.mxu0 0.0
    %4480 = vmatprep.subr.mxu0 0.0
    %4481 = vmatpush2.msra.mxu0 0.0
    %4482 = vmatprep.subr.mxu0 0.0
    %4483 = vmatpush2.msra.mxu0 0.0
    %4484 = vmatprep.subr.mxu0 0.0
    %4485 = vmatpush2.msra.mxu0 0.0
    %4486 = vmatprep.subr.mxu0 0.0
    %4487 = vmatpush2.msra.mxu0 0.0
    %4488 = vmatprep.subr.mxu0 0.0
    %4489 = vmatpush2.msra.mxu0 0.0
    %4490 = vmatprep.subr.mxu0 0.0
    %4491 = vmatpush2.msra.mxu0 0.0
    %4492 = vmatprep.subr.mxu0 0.0
    %4493 = vmatpush2.msra.mxu0 0.0
    %4494 = vmatprep.subr.mxu0 0.0
    %4495 = vmatpush2.msra.mxu0 0.0
    %4496 = vmatprep.subr.mxu0 0.0
    %4497 = vmatpush2.msra.mxu0 0.0
    %4498 = vmatprep.mubr.f32.mxu0 0.0
    %4499 = vmatmul.mubr.f32.gmra.mxu0 %v4420
    %v4500 = vpop.f32.mrf.mxu0
    %v4501 = vadd.f32 %v4417, %v4500
    %v4502 = vpop.f32.mrf.mxu0
    %4503 = vmatprep.mubr.f32.mxu0 0.0
    %4504 = vmatmul.mubr.f32.gmra.mxu0 %v4423
    %v4505 = vpop.f32.mrf.mxu0
    %v4506 = vadd.f32 %v4417, %v4505
    %v4507 = vpop.f32.mrf.mxu0
    %4508 = vmatprep.mubr.f32.mxu0 0.0
    %4509 = vmatmul.mubr.f32.gmra.mxu0 %v4426
    %v4510 = vpop.f32.mrf.mxu0
    %v4511 = vadd.f32 %v4417, %v4510
    %v4512 = vpop.f32.mrf.mxu0
    %4513 = vmatprep.mubr.f32.mxu0 0.0
    %4514 = vmatmul.mubr.f32.gmra.mxu0 %v4429
    %v4515 = vpop.f32.mrf.mxu0
    %v4516 = vadd.f32 %v4417, %v4515
    %v4517 = vpop.f32.mrf.mxu0
    %4518 = vmatprep.mubr.f32.mxu0 0.0
    %4519 = vmatmul.mubr.f32.gmra.mxu0 %v4432
    %v4520 = vpop.f32.mrf.mxu0
    %v4521 = vadd.f32 %v4417, %v4520
    %v4522 = vpop.f32.mrf.mxu0
    %4523 = vdwg.mxu0
    %v4524 = vmul.f32 %v4501, 0.5
    %v4525 = vmul.f32 %v4506, 0.5
    %v4526 = vmul.f32 %v4511, 0.5
    %v4527 = vmul.f32 %v4516, 0.5
    %v4528 = vmul.f32 %v4521, 0.5
    %v4529 = vmul.f32 %v4501, 0.044715
    %v4530 = vmul.f32 %v4506, 0.044715
    %v4531 = vmul.f32 %v4511, 0.044715
    %v4532 = vmul.f32 %v4516, 0.044715
    %v4533 = vmul.f32 %v4521, 0.044715
    %v4534 = vmul.f32 %v4529, %v4501
    %v4535 = vmul.f32 %v4530, %v4506
    %v4536 = vmul.f32 %v4531, %v4511
    %v4537 = vmul.f32 %v4532, %v4516
    %v4538 = vmul.f32 %v4533, %v4521
    %v4539 = vmul.f32 %v4534, %v4501
    %v4540 = vmul.f32 %v4535, %v4506
    %v4541 = vmul.f32 %v4536, %v4511
    %v4542 = vmul.f32 %v4537, %v4516
    %v4543 = vmul.f32 %v4538, %v4521
    %v4544 = vadd.f32 %v4501, %v4539
    %v4545 = vadd.f32 %v4506, %v4540
    %v4546 = vadd.f32 %v4511, %v4541
    %v4547 = vadd.f32 %v4516, %v4542
    %v4548 = vadd.f32 %v4521, %v4543
    %v4549 = vmul.f32 %v4544, 0.7978846
    %v4550 = vmul.f32 %v4545, 0.7978846
    %v4551 = vmul.f32 %v4546, 0.7978846
    %v4552 = vmul.f32 %v4547, 0.7978846
    %v4553 = vmul.f32 %v4548, 0.7978846
    %v4554 = vtanh.pop %v4549
    %v4555 = vtanh.pop %v4550
    %v4556 = vtanh.pop %v4551
    %v4557 = vtanh.pop %v4552
    %v4558 = vtanh.pop %v4553
    %v4559 = vadd.f32 %v4554, 1.0
    %v4560 = vadd.f32 %v4555, 1.0
    %v4561 = vadd.f32 %v4556, 1.0
    %v4562 = vadd.f32 %v4557, 1.0
    %v4563 = vadd.f32 %v4558, 1.0
    %v4564 = vmul.f32 %v4524, %v4559
    %v4565 = vmul.f32 %v4525, %v4560
    %v4566 = vmul.f32 %v4526, %v4561
    %v4567 = vmul.f32 %v4527, %v4562
    %v4568 = vmul.f32 %v4528, %v4563
    %s4569 = scalar_lea.vmem %s13, 64
    %v4570 = vld [vmem:[%s4569] sm:$0xff]
    %v4571 = vld [vmem:[%s4569 + $0x8] sm:$0xff]
    %v4572 = vld [vmem:[%s4569 + $0x10] sm:$0xff]
    %v4573 = vld [vmem:[%s4569 + $0x18] sm:$0xff]
    %v4574 = vld [vmem:[%s4569 + $0x20] sm:$0xff]
    %v4575 = vld [vmem:[%s4569 + $0x28] sm:$0xff]
    %v4576 = vld [vmem:[%s4569 + $0x30] sm:$0xff]
    %v4577 = vld [vmem:[%s4569 + $0x38] sm:$0xff]
    %s4578 = scalar_lea.vmem %s14, 1
    %v4579 = vld [vmem:[%s4578] sm:$0x1]
    %v4581 = vlaneseq
    %v4582 = vshrl.u32 %v4581, 7
    %v4583 = vsub.s32 0, %v4582
    %v4584 = vrot.slane %v4579, %v4583
    %v4587 = vsel %vm81, %v4564, 0
    %v4590 = vsel %vm81, %v4565, 0
    %v4593 = vsel %vm81, %v4566, 0
    %v4596 = vsel %vm81, %v4567, 0
    %v4599 = vsel %vm81, %v4568, 0
    %4601 = vmatprep.subr.mxu0 0.0
    %4602 = vmatpush1.msra.mxu0 0.0
    %4603 = vmatprep.subr.mxu0 0.0
    %4604 = vmatpush1.msra.mxu0 0.0
    %4605 = vmatprep.subr.mxu0 0.0
    %4606 = vmatpush1.msra.mxu0 0.0
    %4607 = vmatprep.subr.mxu0 0.0
    %4608 = vmatpush1.msra.mxu0 0.0
    %4609 = vmatprep.subr.mxu0 0.0
    %4610 = vmatpush1.msra.mxu0 0.0
    %4611 = vmatprep.subr.mxu0 0.0
    %4612 = vmatpush1.msra.mxu0 0.0
    %4613 = vmatprep.subr.mxu0 0.0
    %4614 = vmatpush1.msra.mxu0 0.0
    %4615 = vmatprep.subr.mxu0 0.0
    %4616 = vmatpush1.msra.mxu0 0.0
    %4617 = vmatprep.subr.mxu0 0.0
    %4618 = vmatpush1.msra.mxu0 %v4577
    %4619 = vmatprep.subr.mxu0 0.0
    %4620 = vmatpush1.msra.mxu0 %v4576
    %4621 = vmatprep.subr.mxu0 0.0
    %4622 = vmatpush1.msra.mxu0 %v4575
    %4623 = vmatprep.subr.mxu0 0.0
    %4624 = vmatpush1.msra.mxu0 %v4574
    %4625 = vmatprep.subr.mxu0 0.0
    %4626 = vmatpush1.msra.mxu0 %v4573
    %4627 = vmatprep.subr.mxu0 0.0
    %4628 = vmatpush1.msra.mxu0 %v4572
    %4629 = vmatprep.subr.mxu0 0.0
    %4630 = vmatpush1.msra.mxu0 %v4571
    %4631 = vmatprep.subr.mxu0 0.0
    %4632 = vmatpush1.msra.mxu0 %v4570
    %4633 = vmatprep.subr.mxu0 0.0
    %4634 = vmatpush2.msra.mxu0 0.0
    %4635 = vmatprep.subr.mxu0 0.0
    %4636 = vmatpush2.msra.mxu0 0.0
    %4637 = vmatprep.subr.mxu0 0.0
    %4638 = vmatpush2.msra.mxu0 0.0
    %4639 = vmatprep.subr.mxu0 0.0
    %4640 = vmatpush2.msra.mxu0 0.0
    %4641 = vmatprep.subr.mxu0 0.0
    %4642 = vmatpush2.msra.mxu0 0.0
    %4643 = vmatprep.subr.mxu0 0.0
    %4644 = vmatpush2.msra.mxu0 0.0
    %4645 = vmatprep.subr.mxu0 0.0
    %4646 = vmatpush2.msra.mxu0 0.0
    %4647 = vmatprep.subr.mxu0 0.0
    %4648 = vmatpush2.msra.mxu0 0.0
    %4649 = vmatprep.subr.mxu0 0.0
    %4650 = vmatpush2.msra.mxu0 0.0
    %4651 = vmatprep.subr.mxu0 0.0
    %4652 = vmatpush2.msra.mxu0 0.0
    %4653 = vmatprep.subr.mxu0 0.0
    %4654 = vmatpush2.msra.mxu0 0.0
    %4655 = vmatprep.subr.mxu0 0.0
    %4656 = vmatpush2.msra.mxu0 0.0
    %4657 = vmatprep.subr.mxu0 0.0
    %4658 = vmatpush2.msra.mxu0 0.0
    %4659 = vmatprep.subr.mxu0 0.0
    %4660 = vmatpush2.msra.mxu0 0.0
    %4661 = vmatprep.subr.mxu0 0.0
    %4662 = vmatpush2.msra.mxu0 0.0
    %4663 = vmatprep.subr.mxu0 0.0
    %4664 = vmatpush2.msra.mxu0 0.0
    %4665 = vmatprep.mubr.f32.mxu0 0.0
    %4666 = vmatmul.mubr.f32.gmra.mxu0 %v4587
    %v4667 = vpop.f32.mrf.mxu0
    %v4668 = vadd.f32 %v4584, %v4667
    %v4669 = vpop.f32.mrf.mxu0
    %4670 = vmatprep.mubr.f32.mxu0 0.0
    %4671 = vmatmul.mubr.f32.gmra.mxu0 %v4590
    %v4672 = vpop.f32.mrf.mxu0
    %v4673 = vpop.f32.mrf.mxu0
    %4674 = vmatprep.mubr.f32.mxu0 0.0
    %4675 = vmatmul.mubr.f32.gmra.mxu0 %v4593
    %v4676 = vpop.f32.mrf.mxu0
    %v4677 = vadd.f32 %v4584, %v4676
    %v4678 = vpop.f32.mrf.mxu0
    %4679 = vmatprep.mubr.f32.mxu0 0.0
    %4680 = vmatmul.mubr.f32.gmra.mxu0 %v4596
    %v4681 = vpop.f32.mrf.mxu0
    %v4682 = vpop.f32.mrf.mxu0
    %4683 = vmatprep.mubr.f32.mxu0 0.0
    %4684 = vmatmul.mubr.f32.gmra.mxu0 %v4599
    %v4685 = vpop.f32.mrf.mxu0
    %v4686 = vpop.f32.mrf.mxu0
    %4687 = vdwg.mxu0
    %v4688 = vadd.f32 %v4310, %v4668
    %v4689 = vadd.f32 %v4312, %v4677
    %vm4690 = vcmask 1040384
    %v4691 = vsel %vm4690, %v4688, %v4689
    %v4692 = vld [vmem:[%s15] sm:$0x1]
    %v4693 = vld [vmem:[%s16] sm:$0x1]
    %v4694 = vsel %vm207, %v4691, 0.0
    %4695 = vadd.xlane.f32.xlu0 %v4694
    %v4696 = vpop.xlane.xlu0 %4695
    %v4697 = vmul.f32 %v4696, %v211
    %v4698 = vsub.f32 %v4691, %v4697
    %v4699 = vmul.f32 %v4698, %v4698
    %v4700 = vsel %vm207, %v4699, 0.0
    %4701 = vadd.xlane.f32.xlu0 %v4700
    %v4702 = vpop.xlane.xlu0 %4701
    %v4703 = vmul.f32 %v4702, %v211
    %v4704 = vadd.f32 %v4703, 1e-05
    %v4705 = vrsqrt.pop %v4704
    %v4706 = vmul.f32 %v4698, %v4705
    %v4708 = vlaneseq
    %v4709 = vshrl.u32 %v4708, 7
    %v4710 = vsub.s32 0, %v4709
    %v4711 = vrot.slane %v4692, %v4710
    %v4713 = vmul.f32 %v4706, %v4711
    %v4715 = vlaneseq
    %v4716 = vshrl.u32 %v4715, 7
    %v4717 = vsub.s32 0, %v4716
    %v4718 = vrot.slane %v4693, %v4717
    %v4720 = vadd.f32 %v4713, %v4718
    %v4721 = vld [vmem:[%s17] sm:$0xff]
    %v4722 = vld [vmem:[%s17 + $0x8] sm:$0xff]
    %v4723 = vld [vmem:[%s17 + $0x10] sm:$0xff]
    %v4724 = vld [vmem:[%s17 + $0x18] sm:$0xff]
    %v4725 = vld [vmem:[%s18] sm:$0x1]
    %v4727 = vlaneseq
    %v4728 = vshrl.u32 %v4727, 7
    %v4729 = vsub.s32 0, %v4728
    %v4730 = vrot.slane %v4725, %v4729
    %v4733 = vsel %vm194, %v4720, 0
    %4735 = vmatprep.subr.mxu0 0.0
    %4736 = vmatpush1.msra.mxu0 0.0
    %4737 = vmatprep.subr.mxu0 0.0
    %4738 = vmatpush1.msra.mxu0 0.0
    %4739 = vmatprep.subr.mxu0 0.0
    %4740 = vmatpush1.msra.mxu0 0.0
    %4741 = vmatprep.subr.mxu0 0.0
    %4742 = vmatpush1.msra.mxu0 0.0
    %4743 = vmatprep.subr.mxu0 0.0
    %4744 = vmatpush1.msra.mxu0 0.0
    %4745 = vmatprep.subr.mxu0 0.0
    %4746 = vmatpush1.msra.mxu0 0.0
    %4747 = vmatprep.subr.mxu0 0.0
    %4748 = vmatpush1.msra.mxu0 0.0
    %4749 = vmatprep.subr.mxu0 0.0
    %4750 = vmatpush1.msra.mxu0 0.0
    %4751 = vmatprep.subr.mxu0 0.0
    %4752 = vmatpush1.msra.mxu0 0.0
    %4753 = vmatprep.subr.mxu0 0.0
    %4754 = vmatpush1.msra.mxu0 0.0
    %4755 = vmatprep.subr.mxu0 0.0
    %4756 = vmatpush1.msra.mxu0 0.0
    %4757 = vmatprep.subr.mxu0 0.0
    %4758 = vmatpush1.msra.mxu0 0.0
    %4759 = vmatprep.subr.mxu0 0.0
    %4760 = vmatpush1.msra.mxu0 %v4724
    %4761 = vmatprep.subr.mxu0 0.0
    %4762 = vmatpush1.msra.mxu0 %v4723
    %4763 = vmatprep.subr.mxu0 0.0
    %4764 = vmatpush1.msra.mxu0 %v4722
    %4765 = vmatprep.subr.mxu0 0.0
    %4766 = vmatpush1.msra.mxu0 %v4721
    %4767 = vmatprep.subr.mxu0 0.0
    %4768 = vmatpush2.msra.mxu0 0.0
    %4769 = vmatprep.subr.mxu0 0.0
    %4770 = vmatpush2.msra.mxu0 0.0
    %4771 = vmatprep.subr.mxu0 0.0
    %4772 = vmatpush2.msra.mxu0 0.0
    %4773 = vmatprep.subr.mxu0 0.0
    %4774 = vmatpush2.msra.mxu0 0.0
    %4775 = vmatprep.subr.mxu0 0.0
    %4776 = vmatpush2.msra.mxu0 0.0
    %4777 = vmatprep.subr.mxu0 0.0
    %4778 = vmatpush2.msra.mxu0 0.0
    %4779 = vmatprep.subr.mxu0 0.0
    %4780 = vmatpush2.msra.mxu0 0.0
    %4781 = vmatprep.subr.mxu0 0.0
    %4782 = vmatpush2.msra.mxu0 0.0
    %4783 = vmatprep.subr.mxu0 0.0
    %4784 = vmatpush2.msra.mxu0 0.0
    %4785 = vmatprep.subr.mxu0 0.0
    %4786 = vmatpush2.msra.mxu0 0.0
    %4787 = vmatprep.subr.mxu0 0.0
    %4788 = vmatpush2.msra.mxu0 0.0
    %4789 = vmatprep.subr.mxu0 0.0
    %4790 = vmatpush2.msra.mxu0 0.0
    %4791 = vmatprep.subr.mxu0 0.0
    %4792 = vmatpush2.msra.mxu0 0.0
    %4793 = vmatprep.subr.mxu0 0.0
    %4794 = vmatpush2.msra.mxu0 0.0
    %4795 = vmatprep.subr.mxu0 0.0
    %4796 = vmatpush2.msra.mxu0 0.0
    %4797 = vmatprep.subr.mxu0 0.0
    %4798 = vmatpush2.msra.mxu0 0.0
    %4799 = vmatprep.mubr.f32.mxu0 0.0
    %4800 = vmatmul.mubr.f32.gmra.mxu0 %v4733
    %v4801 = vpop.f32.mrf.mxu0
    %v4802 = vadd.f32 %v4730, %v4801
    %v4803 = vpop.f32.mrf.mxu0
    %4804 = vdwg.mxu0
    %vm4805 = vcmask 74752
    %4806 = vst.msk [vmem:[#allocation2] sm:$0x3] %vm4805, %v4802
    // Predicated region
    $region78: #{vit_forward.1} parent=1 // pred_check
      _
    $region79: #{vit_forward.1} parent=1 // pred_check_branch
      %4808 = sbr.rel (0) target = $region81
    $region80: #{vit_forward.1} parent=1 // pred_region
      %s4810 = ssub.s32 32, 32
      %4811 = vsyncadd [#allocation3], %s4810
      %s4813 = sshll.u32 [#allocation2], 4
      %s4814 = int_to_ptr.vmem [resolvable:$true] %s4813
      %4816 = dma.vmem_to_hbm [thread:$0]  %s4814, 32, %s19, [#allocation3]
    $region81: #{vit_forward.1} parent=1 // pred_fallthru
      _
    // Predicated region
    $region82: #{vit_forward.1} parent=1 // pred_check
      _
    $region83: #{vit_forward.1} parent=1 // pred_check_branch
      %4818 = sbr.rel (0) target = $region85
    $region84: #{vit_forward.1} parent=1 // pred_region
      %4819 = dma.done [#allocation3], 32
    $region85: #{vit_forward.1} parent=1 // pred_fallthru
      _
    %4820 = vsyncpa [#allocation3], 1

</llo_original>
